<compile_context>
chip_gen: v7x
topology: tpu7x:2x2x1
jax: 0.10.0
libtpu: 0.0.40
codegen_flags: <defaults>
</compile_context>

<pallas_src>
import functools

import jax
import jax.numpy as jnp
from jax import lax
from jax.experimental import pallas as pl
from jax.experimental.pallas import tpu as pltpu

EPS = 1e-5


def _round_up(x, m):
    return (x + m - 1) // m * m


# ----------------------------- Pallas kernels ------------------------------ #

def _conv_stats_kernel(x_ref, w_ref, y_ref, sum_ref, ssq_ref, *, ksize, stride):
    """Conv for one image via on-the-fly im2col + per-image BN partial stats.

    x_ref:   (1, Hp, Wp, Cin)  bf16  padded NHWC input, one image
    w_ref:   (K, C8)           bf16  K = ksize*ksize*Cin, rows = (di, dj, cin)
    y_ref:   (1, OH, OW, C8)   bf16  conv output (pre-BN)
    sum_ref: (1, 1, C8)        f32   per-image per-channel sum
    ssq_ref: (1, 1, C8)        f32   per-image per-channel sum of squares
    """
    _, oh_dim, ow_dim, c8 = y_ref.shape
    w = w_ref[...]                                   # (K, C8), loaded once
    s = jnp.zeros((1, c8), jnp.float32)
    q = jnp.zeros((1, c8), jnp.float32)
    for r in range(oh_dim):                          # static unroll (small OH)
        taps = []
        for di in range(ksize):
            row = x_ref[0, r * stride + di]          # (Wp, Cin)
            for dj in range(ksize):
                if stride == 1:
                    taps.append(row[dj:dj + ow_dim, :])
                else:
                    taps.append(lax.slice(
                        row, (dj, 0),
                        (dj + (ow_dim - 1) * stride + 1, row.shape[1]),
                        (stride, 1)))
        # On-the-fly im2col row: lane-dim concat -> (OW, K); never touches HBM.
        patch = jnp.concatenate(taps, axis=1)
        acc = jnp.dot(patch, w, preferred_element_type=jnp.float32)   # (OW, C8)
        y_ref[0, r] = acc.astype(y_ref.dtype)        # bf16 store of intermediate
        s = s + jnp.sum(acc, axis=0, keepdims=True)  # stats from the f32 acc
        q = q + jnp.sum(acc * acc, axis=0, keepdims=True)
    sum_ref[0] = s
    ssq_ref[0] = q


def _bn_relu_kernel(y_ref, scale_ref, offset_ref, o_ref):
    # Fused BN affine (per-channel scale/offset precomputed) + ReLU.
    # y_ref: (1, OH, OW, C8) bf16; scale/offset: (1, 1, 1, C8) f32; o_ref: f32.
    y = y_ref[...].astype(jnp.float32)
    o_ref[...] = jnp.maximum(y * scale_ref[...] + offset_ref[...], 0.0)


# ------------------------------ JAX wrapper --------------------------------- #

def conv_bn_relu(x_nchw, weight, bias, gamma, beta, *, stride=1, padding=0):
    """Forward of the PyTorch `Conv` module (relu=True, bn=True).

    x: (N, Cin, H, W); weight: (Cout, Cin, k, k); bias/gamma/beta: (Cout,)
    returns (N, Cout, OH, OW) float32.
    """
    # Training-mode BN over the same rows cancels any additive per-channel conv
    # bias exactly, so it is dropped.  (Re-add it if bn=False is ever wanted.)
    del bias

    N, Cin, H, W = x_nchw.shape
    Cout, _, kh, kw = weight.shape
    assert kh == kw, "square kernels only"
    k = kh
    OH = (H + 2 * padding - k) // stride + 1
    OW = (W + 2 * padding - k) // stride + 1
    assert OH > 0 and OW > 0
    K = k * k * Cin
    C8 = _round_up(Cout, 8)
    Hp, Wp = H + 2 * padding, W + 2 * padding

    # Input-side glue: NCHW -> NHWC (channel-minor patch rows) + spatial padding.
    x_nhwc = jnp.transpose(x_nchw, (0, 2, 3, 1))
    xp = jnp.pad(x_nhwc, ((0, 0), (padding, padding), (padding, padding), (0, 0)))
    xp = xp.astype(jnp.bfloat16)

    # w_mat[(di*k + dj)*Cin + c, cout] == torch_weight[cout, c, di, dj]
    w_mat = jnp.transpose(weight, (2, 3, 1, 0)).reshape(K, Cout)
    w_mat = jnp.pad(w_mat, ((0, 0), (0, C8 - Cout))).astype(jnp.bfloat16)

    compiler_params = pltpu.CompilerParams(
        dimension_semantics=("parallel",),   # independent images -> v7x megacore
        vmem_limit_bytes=32 << 20,
    )

    # ---------------- Pass 1: conv (MXU) + per-image BN partials ---------------- #
    cost1 = pl.CostEstimate(
        flops=2 * N * OH * OW * K * C8,
        transcendentals=0,
        bytes_accessed=(xp.size * 2 + w_mat.size * 2        # weight DMA'd once
                        + N * OH * OW * C8 * 2 + 2 * N * C8 * 4),
    )
    kernel1 = functools.partial(_conv_stats_kernel, ksize=k, stride=stride)
    y, sums, ssqs = pl.pallas_call(
        kernel1,
        grid=(N,),
        in_specs=[
            pl.BlockSpec((1, Hp, Wp, Cin), lambda n: (n, 0, 0, 0)),
            pl.BlockSpec((K, C8), lambda n: (0, 0)),
        ],
        out_specs=(
            pl.BlockSpec((1, OH, OW, C8), lambda n: (n, 0, 0, 0)),
            pl.BlockSpec((1, 1, C8), lambda n: (n, 0, 0)),
            pl.BlockSpec((1, 1, C8), lambda n: (n, 0, 0)),
        ),
        out_shape=(
            jax.ShapeDtypeStruct((N, OH, OW, C8), jnp.bfloat16),
            jax.ShapeDtypeStruct((N, 1, C8), jnp.float32),
            jax.ShapeDtypeStruct((N, 1, C8), jnp.float32),
        ),
        compiler_params=compiler_params,
        cost_estimate=cost1,
    )(xp, w_mat)

    # -------- Tiny cross-image reduction -> fused BN scale / offset (f32) -------- #
    # NOTE: E[y^2]-E[y]^2 in f32 is fine at these magnitudes; switch to a
    # Welford-style combine of per-image (count, mean, M2) for very large M.
    cnt = N * OH * OW
    mean = jnp.sum(sums, axis=(0, 1)) / cnt                 # (C8,)
    msq = jnp.sum(ssqs, axis=(0, 1)) / cnt
    var = jnp.maximum(msq - mean * mean, 0.0)               # biased (training) var
    gamma_p = jnp.pad(gamma.astype(jnp.float32), (0, C8 - Cout))
    beta_p = jnp.pad(beta.astype(jnp.float32), (0, C8 - Cout))
    scale = gamma_p * lax.rsqrt(var + EPS)
    offset = beta_p - mean * scale
    scale = scale.reshape(1, 1, 1, C8)
    offset = offset.reshape(1, 1, 1, C8)

    # -------------------- Pass 2: y*scale + offset, then ReLU -------------------- #
    cost2 = pl.CostEstimate(
        flops=3 * N * OH * OW * C8,
        transcendentals=0,
        bytes_accessed=N * OH * OW * C8 * (2 + 4) + 2 * C8 * 4,
    )
    out_nhwc = pl.pallas_call(
        _bn_relu_kernel,
        grid=(N,),
        in_specs=[
            pl.BlockSpec((1, OH, OW, C8), lambda n: (n, 0, 0, 0)),
            pl.BlockSpec((1, 1, 1, C8), lambda n: (0, 0, 0, 0)),
            pl.BlockSpec((1, 1, 1, C8), lambda n: (0, 0, 0, 0)),
        ],
        out_specs=pl.BlockSpec((1, OH, OW, C8), lambda n: (n, 0, 0, 0)),
        out_shape=jax.ShapeDtypeStruct((N, OH, OW, C8), jnp.float32),
        compiler_params=compiler_params,
        cost_estimate=cost2,
    )(y, scale, offset)

    # TODO(synk): fold this channel slice + NHWC->NCHW permute into Pass 2 by
    # storing channel-major tiles; for the final (small) output it is one XLA copy.
    return jnp.transpose(out_nhwc[..., :Cout], (0, 3, 1, 2))


# ------------------------------- Reference ---------------------------------- #

def _reference(x, weight, bias, gamma, beta, *, stride, padding,
               conv_dtype=jnp.float32, quantize_y=False):
    y = lax.conv_general_dilated(
        x.astype(conv_dtype), weight.astype(conv_dtype),
        window_strides=(stride, stride),
        padding=[(padding, padding), (padding, padding)],
        dimension_numbers=("NCHW", "OIHW", "NCHW"),
        preferred_element_type=jnp.float32,
    ) + bias.reshape(1, -1, 1, 1)
    mean = y.mean(axis=(0, 2, 3), keepdims=True)
    var = ((y - mean) ** 2).mean(axis=(0, 2, 3), keepdims=True)
    scale = gamma.reshape(1, -1, 1, 1) * lax.rsqrt(var + EPS)
    offset = beta.reshape(1, -1, 1, 1) - mean * scale
    if quantize_y:
        # Mirror the kernel: stats come from the f32 accumulator, the conv
        # intermediate is stored/reloaded as bf16 before the BN affine.
        y = y.astype(jnp.bfloat16).astype(jnp.float32)
    return jnp.maximum(y * scale + offset, 0.0)


if __name__ == "__main__":
    # Module config: Conv(in_channel=4, out_channel=8, kernel_size=3, padding=0,
    #                     stride=1, relu=True, bn=True)
    N, Cin, H, W = 2, 4, 16, 16
    Cout, ksize, stride, padding = 8, 3, 1, 0

    key = jax.random.PRNGKey(0)
    kx, kw_, kb = jax.random.split(key, 3)

    x = jax.random.normal(kx, (N, Cin, H, W), dtype=jnp.float32)

    # PyTorch-like uniform fan-in init for conv; BatchNorm2d: gamma=1, beta=0.
    fan_in = Cin * ksize * ksize
    bound = 1.0 / (fan_in ** 0.5)
    weight = jax.random.uniform(kw_, (Cout, Cin, ksize, ksize),
                                minval=-bound, maxval=bound, dtype=jnp.float32)
    bias = jax.random.uniform(kb, (Cout,), minval=-bound, maxval=bound,
                              dtype=jnp.float32)
    gamma = jnp.ones((Cout,), dtype=jnp.float32)
    beta = jnp.zeros((Cout,), dtype=jnp.float32)

    fwd = jax.jit(functools.partial(conv_bn_relu, stride=stride, padding=padding))
    out = jax.block_until_ready(fwd(x, weight, bias, gamma, beta))
    assert out.shape == (N, Cout, 14, 14), out.shape
    assert bool(jnp.all(jnp.isfinite(out)))

    # Tight check: reference on the kernel's exact precision path (bf16 MXU
    # operands, f32 batch stats, bf16-stored conv intermediate; zero bias is
    # exact because training-mode BN cancels any per-channel bias).
    ref_match = _reference(x, weight, jnp.zeros_like(bias), gamma, beta,
                           stride=stride, padding=padding,
                           conv_dtype=jnp.bfloat16, quantize_y=True)
    err_tight = float(jnp.max(jnp.abs(out - ref_match)))
    assert jnp.allclose(out, ref_match, rtol=2e-3, atol=2e-3), err_tight

    # Loose check: faithful full-f32 reference including the conv bias
    # (differences are bf16 operand + bf16 intermediate rounding only).
    ref_f32 = _reference(x, weight, bias, gamma, beta,
                         stride=stride, padding=padding,
                         conv_dtype=jnp.float32, quantize_y=False)
    err_loose = float(jnp.max(jnp.abs(out - ref_f32)))
    assert jnp.allclose(out, ref_f32, rtol=5e-2, atol=5e-2), err_loose

    print("KERNEL_OK")
</pallas_src>

<mosaic_0001>
module attributes {stable_mosaic.version = 11 : i64} {
  func.func @_bn_relu_kernel(%arg0: i32, %arg1: memref<1x14x14x8xbf16, #tpu.memory_space<vmem>>, %arg2: memref<1x1x1x8xf32, #tpu.memory_space<vmem>>, %arg3: memref<1x1x1x8xf32, #tpu.memory_space<vmem>>, %arg4: memref<1x14x14x8xf32, #tpu.memory_space<vmem>>) attributes {dimension_semantics = [#tpu.dimension_semantics<parallel>], iteration_bounds = array<i64: 2>, scalar_prefetch = 0 : i64, scratch_operands = 0 : i64, tpu.core_type = #tpu.core_type<tc>, window_params = [{transform_indices = @transform_0, window_bounds = array<i64: 1, 14, 14, 8>}, {pipeline_mode = #tpu.pipeline_mode<synchronous>, transform_indices = @transform_1, window_bounds = array<i64: 1, 1, 1, 8>}, {pipeline_mode = #tpu.pipeline_mode<synchronous>, transform_indices = @transform_2, window_bounds = array<i64: 1, 1, 1, 8>}, {transform_indices = @transform_3, window_bounds = array<i64: 1, 14, 14, 8>}]} {
    %c0 = arith.constant 0 : index
    %c0_0 = arith.constant 0 : index
    %c0_1 = arith.constant 0 : index
    %c0_2 = arith.constant 0 : index
    %0 = vector.load %arg1[%c0, %c0_0, %c0_1, %c0_2] : memref<1x14x14x8xbf16, #tpu.memory_space<vmem>>, vector<1x14x14x8xbf16>
    %1 = arith.extf %0 : vector<1x14x14x8xbf16> to vector<1x14x14x8xf32>
    %c0_3 = arith.constant 0 : index
    %c0_4 = arith.constant 0 : index
    %c0_5 = arith.constant 0 : index
    %c0_6 = arith.constant 0 : index
    %2 = vector.load %arg2[%c0_3, %c0_4, %c0_5, %c0_6] : memref<1x1x1x8xf32, #tpu.memory_space<vmem>>, vector<1x1x1x8xf32>
    %3 = vector.broadcast %2 : vector<1x1x1x8xf32> to vector<1x14x14x8xf32>
    %4 = arith.mulf %1, %3 : vector<1x14x14x8xf32>
    %c0_7 = arith.constant 0 : index
    %c0_8 = arith.constant 0 : index
    %c0_9 = arith.constant 0 : index
    %c0_10 = arith.constant 0 : index
    %5 = vector.load %arg3[%c0_7, %c0_8, %c0_9, %c0_10] : memref<1x1x1x8xf32, #tpu.memory_space<vmem>>, vector<1x1x1x8xf32>
    %6 = vector.broadcast %5 : vector<1x1x1x8xf32> to vector<1x14x14x8xf32>
    %7 = arith.addf %4, %6 : vector<1x14x14x8xf32>
    %cst = arith.constant 0.000000e+00 : f32
    %8 = vector.broadcast %cst : f32 to vector<1x14x14x8xf32>
    %9 = arith.maximumf %7, %8 : vector<1x14x14x8xf32>
    %c0_11 = arith.constant 0 : index
    %c0_12 = arith.constant 0 : index
    %c0_13 = arith.constant 0 : index
    %c0_14 = arith.constant 0 : index
    %10 = vector.load %arg4[%c0_11, %c0_12, %c0_13, %c0_14] : memref<1x14x14x8xf32, #tpu.memory_space<vmem>>, vector<1x14x14x8xf32>
    tpu.vector_store %arg4[%c0_11, %c0_12, %c0_13, %c0_14], %9 {strides = array<i32>} : memref<1x14x14x8xf32, #tpu.memory_space<vmem>>, vector<1x14x14x8xf32>,
    return
  }
  func.func @transform_0(%arg0: i32) -> (i32, i32, i32, i32) {
    %c0_i32 = arith.constant 0 : i32
    %c0_i32_0 = arith.constant 0 : i32
    %c0_i32_1 = arith.constant 0 : i32
    %c0_i32_2 = arith.constant 0 : i32
    return %arg0, %c0_i32, %c0_i32_0, %c0_i32_1 : i32, i32, i32, i32
  }
  func.func @transform_1(%arg0: i32) -> (i32, i32, i32, i32) {
    %c0_i32 = arith.constant 0 : i32
    %c0_i32_0 = arith.constant 0 : i32
    %c0_i32_1 = arith.constant 0 : i32
    %c0_i32_2 = arith.constant 0 : i32
    %c0_i32_3 = arith.constant 0 : i32
    return %c0_i32, %c0_i32_0, %c0_i32_1, %c0_i32_2 : i32, i32, i32, i32
  }
  func.func @transform_2(%arg0: i32) -> (i32, i32, i32, i32) {
    %c0_i32 = arith.constant 0 : i32
    %c0_i32_0 = arith.constant 0 : i32
    %c0_i32_1 = arith.constant 0 : i32
    %c0_i32_2 = arith.constant 0 : i32
    %c0_i32_3 = arith.constant 0 : i32
    return %c0_i32, %c0_i32_0, %c0_i32_1, %c0_i32_2 : i32, i32, i32, i32
  }
  func.func @transform_3(%arg0: i32) -> (i32, i32, i32, i32) {
    %c0_i32 = arith.constant 0 : i32
    %c0_i32_0 = arith.constant 0 : i32
    %c0_i32_1 = arith.constant 0 : i32
    %c0_i32_2 = arith.constant 0 : i32
    return %arg0, %c0_i32, %c0_i32_0, %c0_i32_1 : i32, i32, i32, i32
  }
}

module attributes {stable_mosaic.version = 11 : i64} {
  func.func @_conv_stats_kernel(%arg0: i32, %arg1: memref<1x16x16x4xbf16, #tpu.memory_space<vmem>>, %arg2: memref<36x8xbf16, #tpu.memory_space<vmem>>, %arg3: memref<1x14x14x8xbf16, #tpu.memory_space<vmem>>, %arg4: memref<1x1x8xf32, #tpu.memory_space<vmem>>, %arg5: memref<1x1x8xf32, #tpu.memory_space<vmem>>) attributes {dimension_semantics = [#tpu.dimension_semantics<parallel>], iteration_bounds = array<i64: 2>, scalar_prefetch = 0 : i64, scratch_operands = 0 : i64, tpu.core_type = #tpu.core_type<tc>, window_params = [{transform_indices = @transform_0, window_bounds = array<i64: 1, 16, 16, 4>}, {pipeline_mode = #tpu.pipeline_mode<synchronous>, transform_indices = @transform_1, window_bounds = array<i64: 36, 8>}, {transform_indices = @transform_2, window_bounds = array<i64: 1, 14, 14, 8>}, {transform_indices = @transform_3, window_bounds = array<i64: 1, 1, 8>}, {transform_indices = @transform_4, window_bounds = array<i64: 1, 1, 8>}]} {
    %c0 = arith.constant 0 : index
    %c0_0 = arith.constant 0 : index
    %0 = vector.load %arg2[%c0, %c0_0] : memref<36x8xbf16, #tpu.memory_space<vmem>>, vector<36x8xbf16>
    %cst = arith.constant 0.000000e+00 : f32
    %1 = vector.broadcast %cst : f32 to vector<1x8xf32>
    %cst_1 = arith.constant 0.000000e+00 : f32
    %2 = vector.broadcast %cst_1 : f32 to vector<1x8xf32>
    %c0_2 = arith.constant 0 : index
    %c0_3 = arith.constant 0 : index
    %c0_4 = arith.constant 0 : index
    %c0_5 = arith.constant 0 : index
    %3 = vector.load %arg1[%c0_2, %c0_3, %c0_4, %c0_5] : memref<1x16x16x4xbf16, #tpu.memory_space<vmem>>, vector<1x1x16x4xbf16>
    %4 = vector.shape_cast %3 : vector<1x1x16x4xbf16> to vector<16x4xbf16>
    %5 = vector.extract_strided_slice %4 {offsets = [0, 0], sizes = [14, 4], strides = [1, 1]} : vector<16x4xbf16> to vector<14x4xbf16>
    %6 = vector.extract_strided_slice %4 {offsets = [1, 0], sizes = [14, 4], strides = [1, 1]} : vector<16x4xbf16> to vector<14x4xbf16>
    %7 = vector.extract_strided_slice %4 {offsets = [2, 0], sizes = [14, 4], strides = [1, 1]} : vector<16x4xbf16> to vector<14x4xbf16>
    %c0_6 = arith.constant 0 : index
    %c1 = arith.constant 1 : index
    %c0_7 = arith.constant 0 : index
    %c0_8 = arith.constant 0 : index
    %8 = vector.load %arg1[%c0_6, %c1, %c0_7, %c0_8] : memref<1x16x16x4xbf16, #tpu.memory_space<vmem>>, vector<1x1x16x4xbf16>
    %9 = vector.shape_cast %8 : vector<1x1x16x4xbf16> to vector<16x4xbf16>
    %10 = vector.extract_strided_slice %9 {offsets = [0, 0], sizes = [14, 4], strides = [1, 1]} : vector<16x4xbf16> to vector<14x4xbf16>
    %11 = vector.extract_strided_slice %9 {offsets = [1, 0], sizes = [14, 4], strides = [1, 1]} : vector<16x4xbf16> to vector<14x4xbf16>
    %12 = vector.extract_strided_slice %9 {offsets = [2, 0], sizes = [14, 4], strides = [1, 1]} : vector<16x4xbf16> to vector<14x4xbf16>
    %c0_9 = arith.constant 0 : index
    %c2 = arith.constant 2 : index
    %c0_10 = arith.constant 0 : index
    %c0_11 = arith.constant 0 : index
    %13 = vector.load %arg1[%c0_9, %c2, %c0_10, %c0_11] : memref<1x16x16x4xbf16, #tpu.memory_space<vmem>>, vector<1x1x16x4xbf16>
    %14 = vector.shape_cast %13 : vector<1x1x16x4xbf16> to vector<16x4xbf16>
    %15 = vector.extract_strided_slice %14 {offsets = [0, 0], sizes = [14, 4], strides = [1, 1]} : vector<16x4xbf16> to vector<14x4xbf16>
    %16 = vector.extract_strided_slice %14 {offsets = [1, 0], sizes = [14, 4], strides = [1, 1]} : vector<16x4xbf16> to vector<14x4xbf16>
    %17 = vector.extract_strided_slice %14 {offsets = [2, 0], sizes = [14, 4], strides = [1, 1]} : vector<16x4xbf16> to vector<14x4xbf16>
    %18 = tpu.concatenate %5, %6, %7, %10, %11, %12, %15, %16, %17 in 1 : vector<14x4xbf16>, vector<14x4xbf16>, vector<14x4xbf16>, vector<14x4xbf16>, vector<14x4xbf16>, vector<14x4xbf16>, vector<14x4xbf16>, vector<14x4xbf16>, vector<14x4xbf16> -> vector<14x36xbf16>
    %cst_12 = arith.constant dense<0.000000e+00> : vector<14x8xf32>
    %19 = tpu.matmul %18, %0, %cst_12 {dimension_numbers = #tpu.dot_dimension_numbers<[1], [0], [0], [1], [0, 0, 1, 1], [], []>} : vector<14x36xbf16>, vector<36x8xbf16>, vector<14x8xf32> -> vector<14x8xf32>
    %20 = arith.truncf %19 : vector<14x8xf32> to vector<14x8xbf16>
    %c0_13 = arith.constant 0 : index
    %c0_14 = arith.constant 0 : index
    %c0_15 = arith.constant 0 : index
    %c0_16 = arith.constant 0 : index
    %21 = vector.load %arg3[%c0_13, %c0_14, %c0_15, %c0_16] : memref<1x14x14x8xbf16, #tpu.memory_space<vmem>>, vector<1x1x14x8xbf16>
    %22 = vector.shape_cast %21 : vector<1x1x14x8xbf16> to vector<14x8xbf16>
    %23 = vector.shape_cast %20 : vector<14x8xbf16> to vector<1x1x14x8xbf16>
    tpu.vector_store %arg3[%c0_13, %c0_14, %c0_15, %c0_16], %23 {strides = array<i32>} : memref<1x14x14x8xbf16, #tpu.memory_space<vmem>>, vector<1x1x14x8xbf16>,
    %cst_17 = arith.constant dense<0.000000e+00> : vector<8xf32>
    %24 = vector.multi_reduction <add>, %19, %cst_17 [0] : vector<14x8xf32> to vector<8xf32>
    %25 = vector.shape_cast %24 : vector<8xf32> to vector<1x8xf32>
    %26 = arith.addf %1, %25 : vector<1x8xf32>
    %27 = arith.mulf %19, %19 : vector<14x8xf32>
    %cst_18 = arith.constant dense<0.000000e+00> : vector<8xf32>
    %28 = vector.multi_reduction <add>, %27, %cst_18 [0] : vector<14x8xf32> to vector<8xf32>
    %29 = vector.shape_cast %28 : vector<8xf32> to vector<1x8xf32>
    %30 = arith.addf %2, %29 : vector<1x8xf32>
    %c0_19 = arith.constant 0 : index
    %c1_20 = arith.constant 1 : index
    %c0_21 = arith.constant 0 : index
    %c0_22 = arith.constant 0 : index
    %31 = vector.load %arg1[%c0_19, %c1_20, %c0_21, %c0_22] : memref<1x16x16x4xbf16, #tpu.memory_space<vmem>>, vector<1x1x16x4xbf16>
    %32 = vector.shape_cast %31 : vector<1x1x16x4xbf16> to vector<16x4xbf16>
    %33 = vector.extract_strided_slice %32 {offsets = [0, 0], sizes = [14, 4], strides = [1, 1]} : vector<16x4xbf16> to vector<14x4xbf16>
    %34 = vector.extract_strided_slice %32 {offsets = [1, 0], sizes = [14, 4], strides = [1, 1]} : vector<16x4xbf16> to vector<14x4xbf16>
    %35 = vector.extract_strided_slice %32 {offsets = [2, 0], sizes = [14, 4], strides = [1, 1]} : vector<16x4xbf16> to vector<14x4xbf16>
    %c0_23 = arith.constant 0 : index
    %c2_24 = arith.constant 2 : index
    %c0_25 = arith.constant 0 : index
    %c0_26 = arith.constant 0 : index
    %36 = vector.load %arg1[%c0_23, %c2_24, %c0_25, %c0_26] : memref<1x16x16x4xbf16, #tpu.memory_space<vmem>>, vector<1x1x16x4xbf16>
    %37 = vector.shape_cast %36 : vector<1x1x16x4xbf16> to vector<16x4xbf16>
    %38 = vector.extract_strided_slice %37 {offsets = [0, 0], sizes = [14, 4], strides = [1, 1]} : vector<16x4xbf16> to vector<14x4xbf16>
    %39 = vector.extract_strided_slice %37 {offsets = [1, 0], sizes = [14, 4], strides = [1, 1]} : vector<16x4xbf16> to vector<14x4xbf16>
    %40 = vector.extract_strided_slice %37 {offsets = [2, 0], sizes = [14, 4], strides = [1, 1]} : vector<16x4xbf16> to vector<14x4xbf16>
    %c0_27 = arith.constant 0 : index
    %c3 = arith.constant 3 : index
    %c0_28 = arith.constant 0 : index
    %c0_29 = arith.constant 0 : index
    %41 = vector.load %arg1[%c0_27, %c3, %c0_28, %c0_29] : memref<1x16x16x4xbf16, #tpu.memory_space<vmem>>, vector<1x1x16x4xbf16>
    %42 = vector.shape_cast %41 : vector<1x1x16x4xbf16> to vector<16x4xbf16>
    %43 = vector.extract_strided_slice %42 {offsets = [0, 0], sizes = [14, 4], strides = [1, 1]} : vector<16x4xbf16> to vector<14x4xbf16>
    %44 = vector.extract_strided_slice %42 {offsets = [1, 0], sizes = [14, 4], strides = [1, 1]} : vector<16x4xbf16> to vector<14x4xbf16>
    %45 = vector.extract_strided_slice %42 {offsets = [2, 0], sizes = [14, 4], strides = [1, 1]} : vector<16x4xbf16> to vector<14x4xbf16>
    %46 = tpu.concatenate %33, %34, %35, %38, %39, %40, %43, %44, %45 in 1 : vector<14x4xbf16>, vector<14x4xbf16>, vector<14x4xbf16>, vector<14x4xbf16>, vector<14x4xbf16>, vector<14x4xbf16>, vector<14x4xbf16>, vector<14x4xbf16>, vector<14x4xbf16> -> vector<14x36xbf16>
    %cst_30 = arith.constant dense<0.000000e+00> : vector<14x8xf32>
    %47 = tpu.matmul %46, %0, %cst_30 {dimension_numbers = #tpu.dot_dimension_numbers<[1], [0], [0], [1], [0, 0, 1, 1], [], []>} : vector<14x36xbf16>, vector<36x8xbf16>, vector<14x8xf32> -> vector<14x8xf32>
    %48 = arith.truncf %47 : vector<14x8xf32> to vector<14x8xbf16>
    %c0_31 = arith.constant 0 : index
    %c1_32 = arith.constant 1 : index
    %c0_33 = arith.constant 0 : index
    %c0_34 = arith.constant 0 : index
    %49 = vector.load %arg3[%c0_31, %c1_32, %c0_33, %c0_34] : memref<1x14x14x8xbf16, #tpu.memory_space<vmem>>, vector<1x1x14x8xbf16>
    %50 = vector.shape_cast %49 : vector<1x1x14x8xbf16> to vector<14x8xbf16>
    %51 = vector.shape_cast %48 : vector<14x8xbf16> to vector<1x1x14x8xbf16>
    tpu.vector_store %arg3[%c0_31, %c1_32, %c0_33, %c0_34], %51 {strides = array<i32>} : memref<1x14x14x8xbf16, #tpu.memory_space<vmem>>, vector<1x1x14x8xbf16>,
    %cst_35 = arith.constant dense<0.000000e+00> : vector<8xf32>
    %52 = vector.multi_reduction <add>, %47, %cst_35 [0] : vector<14x8xf32> to vector<8xf32>
    %53 = vector.shape_cast %52 : vector<8xf32> to vector<1x8xf32>
    %54 = arith.addf %26, %53 : vector<1x8xf32>
    %55 = arith.mulf %47, %47 : vector<14x8xf32>
    %cst_36 = arith.constant dense<0.000000e+00> : vector<8xf32>
    %56 = vector.multi_reduction <add>, %55, %cst_36 [0] : vector<14x8xf32> to vector<8xf32>
    %57 = vector.shape_cast %56 : vector<8xf32> to vector<1x8xf32>
    %58 = arith.addf %30, %57 : vector<1x8xf32>
    %c0_37 = arith.constant 0 : index
    %c2_38 = arith.constant 2 : index
    %c0_39 = arith.constant 0 : index
    %c0_40 = arith.constant 0 : index
    %59 = vector.load %arg1[%c0_37, %c2_38, %c0_39, %c0_40] : memref<1x16x16x4xbf16, #tpu.memory_space<vmem>>, vector<1x1x16x4xbf16>
    %60 = vector.shape_cast %59 : vector<1x1x16x4xbf16> to vector<16x4xbf16>
    %61 = vector.extract_strided_slice %60 {offsets = [0, 0], sizes = [14, 4], strides = [1, 1]} : vector<16x4xbf16> to vector<14x4xbf16>
    %62 = vector.extract_strided_slice %60 {offsets = [1, 0], sizes = [14, 4], strides = [1, 1]} : vector<16x4xbf16> to vector<14x4xbf16>
    %63 = vector.extract_strided_slice %60 {offsets = [2, 0], sizes = [14, 4], strides = [1, 1]} : vector<16x4xbf16> to vector<14x4xbf16>
    %c0_41 = arith.constant 0 : index
    %c3_42 = arith.constant 3 : index
    %c0_43 = arith.constant 0 : index
    %c0_44 = arith.constant 0 : index
    %64 = vector.load %arg1[%c0_41, %c3_42, %c0_43, %c0_44] : memref<1x16x16x4xbf16, #tpu.memory_space<vmem>>, vector<1x1x16x4xbf16>
    %65 = vector.shape_cast %64 : vector<1x1x16x4xbf16> to vector<16x4xbf16>
    %66 = vector.extract_strided_slice %65 {offsets = [0, 0], sizes = [14, 4], strides = [1, 1]} : vector<16x4xbf16> to vector<14x4xbf16>
    %67 = vector.extract_strided_slice %65 {offsets = [1, 0], sizes = [14, 4], strides = [1, 1]} : vector<16x4xbf16> to vector<14x4xbf16>
    %68 = vector.extract_strided_slice %65 {offsets = [2, 0], sizes = [14, 4], strides = [1, 1]} : vector<16x4xbf16> to vector<14x4xbf16>
    %c0_45 = arith.constant 0 : index
    %c4 = arith.constant 4 : index
    %c0_46 = arith.constant 0 : index
    %c0_47 = arith.constant 0 : index
    %69 = vector.load %arg1[%c0_45, %c4, %c0_46, %c0_47] : memref<1x16x16x4xbf16, #tpu.memory_space<vmem>>, vector<1x1x16x4xbf16>
    %70 = vector.shape_cast %69 : vector<1x1x16x4xbf16> to vector<16x4xbf16>
    %71 = vector.extract_strided_slice %70 {offsets = [0, 0], sizes = [14, 4], strides = [1, 1]} : vector<16x4xbf16> to vector<14x4xbf16>
    %72 = vector.extract_strided_slice %70 {offsets = [1, 0], sizes = [14, 4], strides = [1, 1]} : vector<16x4xbf16> to vector<14x4xbf16>
    %73 = vector.extract_strided_slice %70 {offsets = [2, 0], sizes = [14, 4], strides = [1, 1]} : vector<16x4xbf16> to vector<14x4xbf16>
    %74 = tpu.concatenate %61, %62, %63, %66, %67, %68, %71, %72, %73 in 1 : vector<14x4xbf16>, vector<14x4xbf16>, vector<14x4xbf16>, vector<14x4xbf16>, vector<14x4xbf16>, vector<14x4xbf16>, vector<14x4xbf16>, vector<14x4xbf16>, vector<14x4xbf16> -> vector<14x36xbf16>
    %cst_48 = arith.constant dense<0.000000e+00> : vector<14x8xf32>
    %75 = tpu.matmul %74, %0, %cst_48 {dimension_numbers = #tpu.dot_dimension_numbers<[1], [0], [0], [1], [0, 0, 1, 1], [], []>} : vector<14x36xbf16>, vector<36x8xbf16>, vector<14x8xf32> -> vector<14x8xf32>
    %76 = arith.truncf %75 : vector<14x8xf32> to vector<14x8xbf16>
    %c0_49 = arith.constant 0 : index
    %c2_50 = arith.constant 2 : index
    %c0_51 = arith.constant 0 : index
    %c0_52 = arith.constant 0 : index
    %77 = vector.load %arg3[%c0_49, %c2_50, %c0_51, %c0_52] : memref<1x14x14x8xbf16, #tpu.memory_space<vmem>>, vector<1x1x14x8xbf16>
    %78 = vector.shape_cast %77 : vector<1x1x14x8xbf16> to vector<14x8xbf16>
    %79 = vector.shape_cast %76 : vector<14x8xbf16> to vector<1x1x14x8xbf16>
    tpu.vector_store %arg3[%c0_49, %c2_50, %c0_51, %c0_52], %79 {strides = array<i32>} : memref<1x14x14x8xbf16, #tpu.memory_space<vmem>>, vector<1x1x14x8xbf16>,
    %cst_53 = arith.constant dense<0.000000e+00> : vector<8xf32>
    %80 = vector.multi_reduction <add>, %75, %cst_53 [0] : vector<14x8xf32> to vector<8xf32>
    %81 = vector.shape_cast %80 : vector<8xf32> to vector<1x8xf32>
    %82 = arith.addf %54, %81 : vector<1x8xf32>
    %83 = arith.mulf %75, %75 : vector<14x8xf32>
    %cst_54 = arith.constant dense<0.000000e+00> : vector<8xf32>
    %84 = vector.multi_reduction <add>, %83, %cst_54 [0] : vector<14x8xf32> to vector<8xf32>
    %85 = vector.shape_cast %84 : vector<8xf32> to vector<1x8xf32>
    %86 = arith.addf %58, %85 : vector<1x8xf32>
    %c0_55 = arith.constant 0 : index
    %c3_56 = arith.constant 3 : index
    %c0_57 = arith.constant 0 : index
    %c0_58 = arith.constant 0 : index
    %87 = vector.load %arg1[%c0_55, %c3_56, %c0_57, %c0_58] : memref<1x16x16x4xbf16, #tpu.memory_space<vmem>>, vector<1x1x16x4xbf16>
    %88 = vector.shape_cast %87 : vector<1x1x16x4xbf16> to vector<16x4xbf16>
    %89 = vector.extract_strided_slice %88 {offsets = [0, 0], sizes = [14, 4], strides = [1, 1]} : vector<16x4xbf16> to vector<14x4xbf16>
    %90 = vector.extract_strided_slice %88 {offsets = [1, 0], sizes = [14, 4], strides = [1, 1]} : vector<16x4xbf16> to vector<14x4xbf16>
    %91 = vector.extract_strided_slice %88 {offsets = [2, 0], sizes = [14, 4], strides = [1, 1]} : vector<16x4xbf16> to vector<14x4xbf16>
    %c0_59 = arith.constant 0 : index
    %c4_60 = arith.constant 4 : index
    %c0_61 = arith.constant 0 : index
    %c0_62 = arith.constant 0 : index
    %92 = vector.load %arg1[%c0_59, %c4_60, %c0_61, %c0_62] : memref<1x16x16x4xbf16, #tpu.memory_space<vmem>>, vector<1x1x16x4xbf16>
    %93 = vector.shape_cast %92 : vector<1x1x16x4xbf16> to vector<16x4xbf16>
    %94 = vector.extract_strided_slice %93 {offsets = [0, 0], sizes = [14, 4], strides = [1, 1]} : vector<16x4xbf16> to vector<14x4xbf16>
    %95 = vector.extract_strided_slice %93 {offsets = [1, 0], sizes = [14, 4], strides = [1, 1]} : vector<16x4xbf16> to vector<14x4xbf16>
    %96 = vector.extract_strided_slice %93 {offsets = [2, 0], sizes = [14, 4], strides = [1, 1]} : vector<16x4xbf16> to vector<14x4xbf16>
    %c0_63 = arith.constant 0 : index
    %c5 = arith.constant 5 : index
    %c0_64 = arith.constant 0 : index
    %c0_65 = arith.constant 0 : index
    %97 = vector.load %arg1[%c0_63, %c5, %c0_64, %c0_65] : memref<1x16x16x4xbf16, #tpu.memory_space<vmem>>, vector<1x1x16x4xbf16>
    %98 = vector.shape_cast %97 : vector<1x1x16x4xbf16> to vector<16x4xbf16>
    %99 = vector.extract_strided_slice %98 {offsets = [0, 0], sizes = [14, 4], strides = [1, 1]} : vector<16x4xbf16> to vector<14x4xbf16>
    %100 = vector.extract_strided_slice %98 {offsets = [1, 0], sizes = [14, 4], strides = [1, 1]} : vector<16x4xbf16> to vector<14x4xbf16>
    %101 = vector.extract_strided_slice %98 {offsets = [2, 0], sizes = [14, 4], strides = [1, 1]} : vector<16x4xbf16> to vector<14x4xbf16>
    %102 = tpu.concatenate %89, %90, %91, %94, %95, %96, %99, %100, %101 in 1 : vector<14x4xbf16>, vector<14x4xbf16>, vector<14x4xbf16>, vector<14x4xbf16>, vector<14x4xbf16>, vector<14x4xbf16>, vector<14x4xbf16>, vector<14x4xbf16>, vector<14x4xbf16> -> vector<14x36xbf16>
    %cst_66 = arith.constant dense<0.000000e+00> : vector<14x8xf32>
    %103 = tpu.matmul %102, %0, %cst_66 {dimension_numbers = #tpu.dot_dimension_numbers<[1], [0], [0], [1], [0, 0, 1, 1], [], []>} : vector<14x36xbf16>, vector<36x8xbf16>, vector<14x8xf32> -> vector<14x8xf32>
    %104 = arith.truncf %103 : vector<14x8xf32> to vector<14x8xbf16>
    %c0_67 = arith.constant 0 : index
    %c3_68 = arith.constant 3 : index
    %c0_69 = arith.constant 0 : index
    %c0_70 = arith.constant 0 : index
    %105 = vector.load %arg3[%c0_67, %c3_68, %c0_69, %c0_70] : memref<1x14x14x8xbf16, #tpu.memory_space<vmem>>, vector<1x1x14x8xbf16>
    %106 = vector.shape_cast %105 : vector<1x1x14x8xbf16> to vector<14x8xbf16>
    %107 = vector.shape_cast %104 : vector<14x8xbf16> to vector<1x1x14x8xbf16>
    tpu.vector_store %arg3[%c0_67, %c3_68, %c0_69, %c0_70], %107 {strides = array<i32>} : memref<1x14x14x8xbf16, #tpu.memory_space<vmem>>, vector<1x1x14x8xbf16>,
    %cst_71 = arith.constant dense<0.000000e+00> : vector<8xf32>
    %108 = vector.multi_reduction <add>, %103, %cst_71 [0] : vector<14x8xf32> to vector<8xf32>
    %109 = vector.shape_cast %108 : vector<8xf32> to vector<1x8xf32>
    %110 = arith.addf %82, %109 : vector<1x8xf32>
    %111 = arith.mulf %103, %103 : vector<14x8xf32>
    %cst_72 = arith.constant dense<0.000000e+00> : vector<8xf32>
    %112 = vector.multi_reduction <add>, %111, %cst_72 [0] : vector<14x8xf32> to vector<8xf32>
    %113 = vector.shape_cast %112 : vector<8xf32> to vector<1x8xf32>
    %114 = arith.addf %86, %113 : vector<1x8xf32>
    %c0_73 = arith.constant 0 : index
    %c4_74 = arith.constant 4 : index
    %c0_75 = arith.constant 0 : index
    %c0_76 = arith.constant 0 : index
    %115 = vector.load %arg1[%c0_73, %c4_74, %c0_75, %c0_76] : memref<1x16x16x4xbf16, #tpu.memory_space<vmem>>, vector<1x1x16x4xbf16>
    %116 = vector.shape_cast %115 : vector<1x1x16x4xbf16> to vector<16x4xbf16>
    %117 = vector.extract_strided_slice %116 {offsets = [0, 0], sizes = [14, 4], strides = [1, 1]} : vector<16x4xbf16> to vector<14x4xbf16>
    %118 = vector.extract_strided_slice %116 {offsets = [1, 0], sizes = [14, 4], strides = [1, 1]} : vector<16x4xbf16> to vector<14x4xbf16>
    %119 = vector.extract_strided_slice %116 {offsets = [2, 0], sizes = [14, 4], strides = [1, 1]} : vector<16x4xbf16> to vector<14x4xbf16>
    %c0_77 = arith.constant 0 : index
    %c5_78 = arith.constant 5 : index
    %c0_79 = arith.constant 0 : index
    %c0_80 = arith.constant 0 : index
    %120 = vector.load %arg1[%c0_77, %c5_78, %c0_79, %c0_80] : memref<1x16x16x4xbf16, #tpu.memory_space<vmem>>, vector<1x1x16x4xbf16>
    %121 = vector.shape_cast %120 : vector<1x1x16x4xbf16> to vector<16x4xbf16>
    %122 = vector.extract_strided_slice %121 {offsets = [0, 0], sizes = [14, 4], strides = [1, 1]} : vector<16x4xbf16> to vector<14x4xbf16>
    %123 = vector.extract_strided_slice %121 {offsets = [1, 0], sizes = [14, 4], strides = [1, 1]} : vector<16x4xbf16> to vector<14x4xbf16>
    %124 = vector.extract_strided_slice %121 {offsets = [2, 0], sizes = [14, 4], strides = [1, 1]} : vector<16x4xbf16> to vector<14x4xbf16>
    %c0_81 = arith.constant 0 : index
    %c6 = arith.constant 6 : index
    %c0_82 = arith.constant 0 : index
    %c0_83 = arith.constant 0 : index
    %125 = vector.load %arg1[%c0_81, %c6, %c0_82, %c0_83] : memref<1x16x16x4xbf16, #tpu.memory_space<vmem>>, vector<1x1x16x4xbf16>
    %126 = vector.shape_cast %125 : vector<1x1x16x4xbf16> to vector<16x4xbf16>
    %127 = vector.extract_strided_slice %126 {offsets = [0, 0], sizes = [14, 4], strides = [1, 1]} : vector<16x4xbf16> to vector<14x4xbf16>
    %128 = vector.extract_strided_slice %126 {offsets = [1, 0], sizes = [14, 4], strides = [1, 1]} : vector<16x4xbf16> to vector<14x4xbf16>
    %129 = vector.extract_strided_slice %126 {offsets = [2, 0], sizes = [14, 4], strides = [1, 1]} : vector<16x4xbf16> to vector<14x4xbf16>
    %130 = tpu.concatenate %117, %118, %119, %122, %123, %124, %127, %128, %129 in 1 : vector<14x4xbf16>, vector<14x4xbf16>, vector<14x4xbf16>, vector<14x4xbf16>, vector<14x4xbf16>, vector<14x4xbf16>, vector<14x4xbf16>, vector<14x4xbf16>, vector<14x4xbf16> -> vector<14x36xbf16>
    %cst_84 = arith.constant dense<0.000000e+00> : vector<14x8xf32>
    %131 = tpu.matmul %130, %0, %cst_84 {dimension_numbers = #tpu.dot_dimension_numbers<[1], [0], [0], [1], [0, 0, 1, 1], [], []>} : vector<14x36xbf16>, vector<36x8xbf16>, vector<14x8xf32> -> vector<14x8xf32>
    %132 = arith.truncf %131 : vector<14x8xf32> to vector<14x8xbf16>
    %c0_85 = arith.constant 0 : index
    %c4_86 = arith.constant 4 : index
    %c0_87 = arith.constant 0 : index
    %c0_88 = arith.constant 0 : index
    %133 = vector.load %arg3[%c0_85, %c4_86, %c0_87, %c0_88] : memref<1x14x14x8xbf16, #tpu.memory_space<vmem>>, vector<1x1x14x8xbf16>
    %134 = vector.shape_cast %133 : vector<1x1x14x8xbf16> to vector<14x8xbf16>
    %135 = vector.shape_cast %132 : vector<14x8xbf16> to vector<1x1x14x8xbf16>
    tpu.vector_store %arg3[%c0_85, %c4_86, %c0_87, %c0_88], %135 {strides = array<i32>} : memref<1x14x14x8xbf16, #tpu.memory_space<vmem>>, vector<1x1x14x8xbf16>,
    %cst_89 = arith.constant dense<0.000000e+00> : vector<8xf32>
    %136 = vector.multi_reduction <add>, %131, %cst_89 [0] : vector<14x8xf32> to vector<8xf32>
    %137 = vector.shape_cast %136 : vector<8xf32> to vector<1x8xf32>
    %138 = arith.addf %110, %137 : vector<1x8xf32>
    %139 = arith.mulf %131, %131 : vector<14x8xf32>
    %cst_90 = arith.constant dense<0.000000e+00> : vector<8xf32>
    %140 = vector.multi_reduction <add>, %139, %cst_90 [0] : vector<14x8xf32> to vector<8xf32>
    %141 = vector.shape_cast %140 : vector<8xf32> to vector<1x8xf32>
    %142 = arith.addf %114, %141 : vector<1x8xf32>
    %c0_91 = arith.constant 0 : index
    %c5_92 = arith.constant 5 : index
    %c0_93 = arith.constant 0 : index
    %c0_94 = arith.constant 0 : index
    %143 = vector.load %arg1[%c0_91, %c5_92, %c0_93, %c0_94] : memref<1x16x16x4xbf16, #tpu.memory_space<vmem>>, vector<1x1x16x4xbf16>
    %144 = vector.shape_cast %143 : vector<1x1x16x4xbf16> to vector<16x4xbf16>
    %145 = vector.extract_strided_slice %144 {offsets = [0, 0], sizes = [14, 4], strides = [1, 1]} : vector<16x4xbf16> to vector<14x4xbf16>
    %146 = vector.extract_strided_slice %144 {offsets = [1, 0], sizes = [14, 4], strides = [1, 1]} : vector<16x4xbf16> to vector<14x4xbf16>
    %147 = vector.extract_strided_slice %144 {offsets = [2, 0], sizes = [14, 4], strides = [1, 1]} : vector<16x4xbf16> to vector<14x4xbf16>
    %c0_95 = arith.constant 0 : index
    %c6_96 = arith.constant 6 : index
    %c0_97 = arith.constant 0 : index
    %c0_98 = arith.constant 0 : index
    %148 = vector.load %arg1[%c0_95, %c6_96, %c0_97, %c0_98] : memref<1x16x16x4xbf16, #tpu.memory_space<vmem>>, vector<1x1x16x4xbf16>
    %149 = vector.shape_cast %148 : vector<1x1x16x4xbf16> to vector<16x4xbf16>
    %150 = vector.extract_strided_slice %149 {offsets = [0, 0], sizes = [14, 4], strides = [1, 1]} : vector<16x4xbf16> to vector<14x4xbf16>
    %151 = vector.extract_strided_slice %149 {offsets = [1, 0], sizes = [14, 4], strides = [1, 1]} : vector<16x4xbf16> to vector<14x4xbf16>
    %152 = vector.extract_strided_slice %149 {offsets = [2, 0], sizes = [14, 4], strides = [1, 1]} : vector<16x4xbf16> to vector<14x4xbf16>
    %c0_99 = arith.constant 0 : index
    %c7 = arith.constant 7 : index
    %c0_100 = arith.constant 0 : index
    %c0_101 = arith.constant 0 : index
    %153 = vector.load %arg1[%c0_99, %c7, %c0_100, %c0_101] : memref<1x16x16x4xbf16, #tpu.memory_space<vmem>>, vector<1x1x16x4xbf16>
    %154 = vector.shape_cast %153 : vector<1x1x16x4xbf16> to vector<16x4xbf16>
    %155 = vector.extract_strided_slice %154 {offsets = [0, 0], sizes = [14, 4], strides = [1, 1]} : vector<16x4xbf16> to vector<14x4xbf16>
    %156 = vector.extract_strided_slice %154 {offsets = [1, 0], sizes = [14, 4], strides = [1, 1]} : vector<16x4xbf16> to vector<14x4xbf16>
    %157 = vector.extract_strided_slice %154 {offsets = [2, 0], sizes = [14, 4], strides = [1, 1]} : vector<16x4xbf16> to vector<14x4xbf16>
    %158 = tpu.concatenate %145, %146, %147, %150, %151, %152, %155, %156, %157 in 1 : vector<14x4xbf16>, vector<14x4xbf16>, vector<14x4xbf16>, vector<14x4xbf16>, vector<14x4xbf16>, vector<14x4xbf16>, vector<14x4xbf16>, vector<14x4xbf16>, vector<14x4xbf16> -> vector<14x36xbf16>
    %cst_102 = arith.constant dense<0.000000e+00> : vector<14x8xf32>
    %159 = tpu.matmul %158, %0, %cst_102 {dimension_numbers = #tpu.dot_dimension_numbers<[1], [0], [0], [1], [0, 0, 1, 1], [], []>} : vector<14x36xbf16>, vector<36x8xbf16>, vector<14x8xf32> -> vector<14x8xf32>
    %160 = arith.truncf %159 : vector<14x8xf32> to vector<14x8xbf16>
    %c0_103 = arith.constant 0 : index
    %c5_104 = arith.constant 5 : index
    %c0_105 = arith.constant 0 : index
    %c0_106 = arith.constant 0 : index
    %161 = vector.load %arg3[%c0_103, %c5_104, %c0_105, %c0_106] : memref<1x14x14x8xbf16, #tpu.memory_space<vmem>>, vector<1x1x14x8xbf16>
    %162 = vector.shape_cast %161 : vector<1x1x14x8xbf16> to vector<14x8xbf16>
    %163 = vector.shape_cast %160 : vector<14x8xbf16> to vector<1x1x14x8xbf16>
    tpu.vector_store %arg3[%c0_103, %c5_104, %c0_105, %c0_106], %163 {strides = array<i32>} : memref<1x14x14x8xbf16, #tpu.memory_space<vmem>>, vector<1x1x14x8xbf16>,
    %cst_107 = arith.constant dense<0.000000e+00> : vector<8xf32>
    %164 = vector.multi_reduction <add>, %159, %cst_107 [0] : vector<14x8xf32> to vector<8xf32>
    %165 = vector.shape_cast %164 : vector<8xf32> to vector<1x8xf32>
    %166 = arith.addf %138, %165 : vector<1x8xf32>
    %167 = arith.mulf %159, %159 : vector<14x8xf32>
    %cst_108 = arith.constant dense<0.000000e+00> : vector<8xf32>
    %168 = vector.multi_reduction <add>, %167, %cst_108 [0] : vector<14x8xf32> to vector<8xf32>
    %169 = vector.shape_cast %168 : vector<8xf32> to vector<1x8xf32>
    %170 = arith.addf %142, %169 : vector<1x8xf32>
    %c0_109 = arith.constant 0 : index
    %c6_110 = arith.constant 6 : index
    %c0_111 = arith.constant 0 : index
    %c0_112 = arith.constant 0 : index
    %171 = vector.load %arg1[%c0_109, %c6_110, %c0_111, %c0_112] : memref<1x16x16x4xbf16, #tpu.memory_space<vmem>>, vector<1x1x16x4xbf16>
    %172 = vector.shape_cast %171 : vector<1x1x16x4xbf16> to vector<16x4xbf16>
    %173 = vector.extract_strided_slice %172 {offsets = [0, 0], sizes = [14, 4], strides = [1, 1]} : vector<16x4xbf16> to vector<14x4xbf16>
    %174 = vector.extract_strided_slice %172 {offsets = [1, 0], sizes = [14, 4], strides = [1, 1]} : vector<16x4xbf16> to vector<14x4xbf16>
    %175 = vector.extract_strided_slice %172 {offsets = [2, 0], sizes = [14, 4], strides = [1, 1]} : vector<16x4xbf16> to vector<14x4xbf16>
    %c0_113 = arith.constant 0 : index
    %c7_114 = arith.constant 7 : index
    %c0_115 = arith.constant 0 : index
    %c0_116 = arith.constant 0 : index
    %176 = vector.load %arg1[%c0_113, %c7_114, %c0_115, %c0_116] : memref<1x16x16x4xbf16, #tpu.memory_space<vmem>>, vector<1x1x16x4xbf16>
    %177 = vector.shape_cast %176 : vector<1x1x16x4xbf16> to vector<16x4xbf16>
    %178 = vector.extract_strided_slice %177 {offsets = [0, 0], sizes = [14, 4], strides = [1, 1]} : vector<16x4xbf16> to vector<14x4xbf16>
    %179 = vector.extract_strided_slice %177 {offsets = [1, 0], sizes = [14, 4], strides = [1, 1]} : vector<16x4xbf16> to vector<14x4xbf16>
    %180 = vector.extract_strided_slice %177 {offsets = [2, 0], sizes = [14, 4], strides = [1, 1]} : vector<16x4xbf16> to vector<14x4xbf16>
    %c0_117 = arith.constant 0 : index
    %c8 = arith.constant 8 : index
    %c0_118 = arith.constant 0 : index
    %c0_119 = arith.constant 0 : index
    %181 = vector.load %arg1[%c0_117, %c8, %c0_118, %c0_119] : memref<1x16x16x4xbf16, #tpu.memory_space<vmem>>, vector<1x1x16x4xbf16>
    %182 = vector.shape_cast %181 : vector<1x1x16x4xbf16> to vector<16x4xbf16>
    %183 = vector.extract_strided_slice %182 {offsets = [0, 0], sizes = [14, 4], strides = [1, 1]} : vector<16x4xbf16> to vector<14x4xbf16>
    %184 = vector.extract_strided_slice %182 {offsets = [1, 0], sizes = [14, 4], strides = [1, 1]} : vector<16x4xbf16> to vector<14x4xbf16>
    %185 = vector.extract_strided_slice %182 {offsets = [2, 0], sizes = [14, 4], strides = [1, 1]} : vector<16x4xbf16> to vector<14x4xbf16>
    %186 = tpu.concatenate %173, %174, %175, %178, %179, %180, %183, %184, %185 in 1 : vector<14x4xbf16>, vector<14x4xbf16>, vector<14x4xbf16>, vector<14x4xbf16>, vector<14x4xbf16>, vector<14x4xbf16>, vector<14x4xbf16>, vector<14x4xbf16>, vector<14x4xbf16> -> vector<14x36xbf16>
    %cst_120 = arith.constant dense<0.000000e+00> : vector<14x8xf32>
    %187 = tpu.matmul %186, %0, %cst_120 {dimension_numbers = #tpu.dot_dimension_numbers<[1], [0], [0], [1], [0, 0, 1, 1], [], []>} : vector<14x36xbf16>, vector<36x8xbf16>, vector<14x8xf32> -> vector<14x8xf32>
    %188 = arith.truncf %187 : vector<14x8xf32> to vector<14x8xbf16>
    %c0_121 = arith.constant 0 : index
    %c6_122 = arith.constant 6 : index
    %c0_123 = arith.constant 0 : index
    %c0_124 = arith.constant 0 : index
    %189 = vector.load %arg3[%c0_121, %c6_122, %c0_123, %c0_124] : memref<1x14x14x8xbf16, #tpu.memory_space<vmem>>, vector<1x1x14x8xbf16>
    %190 = vector.shape_cast %189 : vector<1x1x14x8xbf16> to vector<14x8xbf16>
    %191 = vector.shape_cast %188 : vector<14x8xbf16> to vector<1x1x14x8xbf16>
    tpu.vector_store %arg3[%c0_121, %c6_122, %c0_123, %c0_124], %191 {strides = array<i32>} : memref<1x14x14x8xbf16, #tpu.memory_space<vmem>>, vector<1x1x14x8xbf16>,
    %cst_125 = arith.constant dense<0.000000e+00> : vector<8xf32>
    %192 = vector.multi_reduction <add>, %187, %cst_125 [0] : vector<14x8xf32> to vector<8xf32>
    %193 = vector.shape_cast %192 : vector<8xf32> to vector<1x8xf32>
    %194 = arith.addf %166, %193 : vector<1x8xf32>
    %195 = arith.mulf %187, %187 : vector<14x8xf32>
    %cst_126 = arith.constant dense<0.000000e+00> : vector<8xf32>
    %196 = vector.multi_reduction <add>, %195, %cst_126 [0] : vector<14x8xf32> to vector<8xf32>
    %197 = vector.shape_cast %196 : vector<8xf32> to vector<1x8xf32>
    %198 = arith.addf %170, %197 : vector<1x8xf32>
    %c0_127 = arith.constant 0 : index
    %c7_128 = arith.constant 7 : index
    %c0_129 = arith.constant 0 : index
    %c0_130 = arith.constant 0 : index
    %199 = vector.load %arg1[%c0_127, %c7_128, %c0_129, %c0_130] : memref<1x16x16x4xbf16, #tpu.memory_space<vmem>>, vector<1x1x16x4xbf16>
    %200 = vector.shape_cast %199 : vector<1x1x16x4xbf16> to vector<16x4xbf16>
    %201 = vector.extract_strided_slice %200 {offsets = [0, 0], sizes = [14, 4], strides = [1, 1]} : vector<16x4xbf16> to vector<14x4xbf16>
    %202 = vector.extract_strided_slice %200 {offsets = [1, 0], sizes = [14, 4], strides = [1, 1]} : vector<16x4xbf16> to vector<14x4xbf16>
    %203 = vector.extract_strided_slice %200 {offsets = [2, 0], sizes = [14, 4], strides = [1, 1]} : vector<16x4xbf16> to vector<14x4xbf16>
    %c0_131 = arith.constant 0 : index
    %c8_132 = arith.constant 8 : index
    %c0_133 = arith.constant 0 : index
    %c0_134 = arith.constant 0 : index
    %204 = vector.load %arg1[%c0_131, %c8_132, %c0_133, %c0_134] : memref<1x16x16x4xbf16, #tpu.memory_space<vmem>>, vector<1x1x16x4xbf16>
    %205 = vector.shape_cast %204 : vector<1x1x16x4xbf16> to vector<16x4xbf16>
    %206 = vector.extract_strided_slice %205 {offsets = [0, 0], sizes = [14, 4], strides = [1, 1]} : vector<16x4xbf16> to vector<14x4xbf16>
    %207 = vector.extract_strided_slice %205 {offsets = [1, 0], sizes = [14, 4], strides = [1, 1]} : vector<16x4xbf16> to vector<14x4xbf16>
    %208 = vector.extract_strided_slice %205 {offsets = [2, 0], sizes = [14, 4], strides = [1, 1]} : vector<16x4xbf16> to vector<14x4xbf16>
    %c0_135 = arith.constant 0 : index
    %c9 = arith.constant 9 : index
    %c0_136 = arith.constant 0 : index
    %c0_137 = arith.constant 0 : index
    %209 = vector.load %arg1[%c0_135, %c9, %c0_136, %c0_137] : memref<1x16x16x4xbf16, #tpu.memory_space<vmem>>, vector<1x1x16x4xbf16>
    %210 = vector.shape_cast %209 : vector<1x1x16x4xbf16> to vector<16x4xbf16>
    %211 = vector.extract_strided_slice %210 {offsets = [0, 0], sizes = [14, 4], strides = [1, 1]} : vector<16x4xbf16> to vector<14x4xbf16>
    %212 = vector.extract_strided_slice %210 {offsets = [1, 0], sizes = [14, 4], strides = [1, 1]} : vector<16x4xbf16> to vector<14x4xbf16>
    %213 = vector.extract_strided_slice %210 {offsets = [2, 0], sizes = [14, 4], strides = [1, 1]} : vector<16x4xbf16> to vector<14x4xbf16>
    %214 = tpu.concatenate %201, %202, %203, %206, %207, %208, %211, %212, %213 in 1 : vector<14x4xbf16>, vector<14x4xbf16>, vector<14x4xbf16>, vector<14x4xbf16>, vector<14x4xbf16>, vector<14x4xbf16>, vector<14x4xbf16>, vector<14x4xbf16>, vector<14x4xbf16> -> vector<14x36xbf16>
    %cst_138 = arith.constant dense<0.000000e+00> : vector<14x8xf32>
    %215 = tpu.matmul %214, %0, %cst_138 {dimension_numbers = #tpu.dot_dimension_numbers<[1], [0], [0], [1], [0, 0, 1, 1], [], []>} : vector<14x36xbf16>, vector<36x8xbf16>, vector<14x8xf32> -> vector<14x8xf32>
    %216 = arith.truncf %215 : vector<14x8xf32> to vector<14x8xbf16>
    %c0_139 = arith.constant 0 : index
    %c7_140 = arith.constant 7 : index
    %c0_141 = arith.constant 0 : index
    %c0_142 = arith.constant 0 : index
    %217 = vector.load %arg3[%c0_139, %c7_140, %c0_141, %c0_142] : memref<1x14x14x8xbf16, #tpu.memory_space<vmem>>, vector<1x1x14x8xbf16>
    %218 = vector.shape_cast %217 : vector<1x1x14x8xbf16> to vector<14x8xbf16>
    %219 = vector.shape_cast %216 : vector<14x8xbf16> to vector<1x1x14x8xbf16>
    tpu.vector_store %arg3[%c0_139, %c7_140, %c0_141, %c0_142], %219 {strides = array<i32>} : memref<1x14x14x8xbf16, #tpu.memory_space<vmem>>, vector<1x1x14x8xbf16>,
    %cst_143 = arith.constant dense<0.000000e+00> : vector<8xf32>
    %220 = vector.multi_reduction <add>, %215, %cst_143 [0] : vector<14x8xf32> to vector<8xf32>
    %221 = vector.shape_cast %220 : vector<8xf32> to vector<1x8xf32>
    %222 = arith.addf %194, %221 : vector<1x8xf32>
    %223 = arith.mulf %215, %215 : vector<14x8xf32>
    %cst_144 = arith.constant dense<0.000000e+00> : vector<8xf32>
    %224 = vector.multi_reduction <add>, %223, %cst_144 [0] : vector<14x8xf32> to vector<8xf32>
    %225 = vector.shape_cast %224 : vector<8xf32> to vector<1x8xf32>
    %226 = arith.addf %198, %225 : vector<1x8xf32>
    %c0_145 = arith.constant 0 : index
    %c8_146 = arith.constant 8 : index
    %c0_147 = arith.constant 0 : index
    %c0_148 = arith.constant 0 : index
    %227 = vector.load %arg1[%c0_145, %c8_146, %c0_147, %c0_148] : memref<1x16x16x4xbf16, #tpu.memory_space<vmem>>, vector<1x1x16x4xbf16>
    %228 = vector.shape_cast %227 : vector<1x1x16x4xbf16> to vector<16x4xbf16>
    %229 = vector.extract_strided_slice %228 {offsets = [0, 0], sizes = [14, 4], strides = [1, 1]} : vector<16x4xbf16> to vector<14x4xbf16>
    %230 = vector.extract_strided_slice %228 {offsets = [1, 0], sizes = [14, 4], strides = [1, 1]} : vector<16x4xbf16> to vector<14x4xbf16>
    %231 = vector.extract_strided_slice %228 {offsets = [2, 0], sizes = [14, 4], strides = [1, 1]} : vector<16x4xbf16> to vector<14x4xbf16>
    %c0_149 = arith.constant 0 : index
    %c9_150 = arith.constant 9 : index
    %c0_151 = arith.constant 0 : index
    %c0_152 = arith.constant 0 : index
    %232 = vector.load %arg1[%c0_149, %c9_150, %c0_151, %c0_152] : memref<1x16x16x4xbf16, #tpu.memory_space<vmem>>, vector<1x1x16x4xbf16>
    %233 = vector.shape_cast %232 : vector<1x1x16x4xbf16> to vector<16x4xbf16>
    %234 = vector.extract_strided_slice %233 {offsets = [0, 0], sizes = [14, 4], strides = [1, 1]} : vector<16x4xbf16> to vector<14x4xbf16>
    %235 = vector.extract_strided_slice %233 {offsets = [1, 0], sizes = [14, 4], strides = [1, 1]} : vector<16x4xbf16> to vector<14x4xbf16>
    %236 = vector.extract_strided_slice %233 {offsets = [2, 0], sizes = [14, 4], strides = [1, 1]} : vector<16x4xbf16> to vector<14x4xbf16>
    %c0_153 = arith.constant 0 : index
    %c10 = arith.constant 10 : index
    %c0_154 = arith.constant 0 : index
    %c0_155 = arith.constant 0 : index
    %237 = vector.load %arg1[%c0_153, %c10, %c0_154, %c0_155] : memref<1x16x16x4xbf16, #tpu.memory_space<vmem>>, vector<1x1x16x4xbf16>
    %238 = vector.shape_cast %237 : vector<1x1x16x4xbf16> to vector<16x4xbf16>
    %239 = vector.extract_strided_slice %238 {offsets = [0, 0], sizes = [14, 4], strides = [1, 1]} : vector<16x4xbf16> to vector<14x4xbf16>
    %240 = vector.extract_strided_slice %238 {offsets = [1, 0], sizes = [14, 4], strides = [1, 1]} : vector<16x4xbf16> to vector<14x4xbf16>
    %241 = vector.extract_strided_slice %238 {offsets = [2, 0], sizes = [14, 4], strides = [1, 1]} : vector<16x4xbf16> to vector<14x4xbf16>
    %242 = tpu.concatenate %229, %230, %231, %234, %235, %236, %239, %240, %241 in 1 : vector<14x4xbf16>, vector<14x4xbf16>, vector<14x4xbf16>, vector<14x4xbf16>, vector<14x4xbf16>, vector<14x4xbf16>, vector<14x4xbf16>, vector<14x4xbf16>, vector<14x4xbf16> -> vector<14x36xbf16>
    %cst_156 = arith.constant dense<0.000000e+00> : vector<14x8xf32>
    %243 = tpu.matmul %242, %0, %cst_156 {dimension_numbers = #tpu.dot_dimension_numbers<[1], [0], [0], [1], [0, 0, 1, 1], [], []>} : vector<14x36xbf16>, vector<36x8xbf16>, vector<14x8xf32> -> vector<14x8xf32>
    %244 = arith.truncf %243 : vector<14x8xf32> to vector<14x8xbf16>
    %c0_157 = arith.constant 0 : index
    %c8_158 = arith.constant 8 : index
    %c0_159 = arith.constant 0 : index
    %c0_160 = arith.constant 0 : index
    %245 = vector.load %arg3[%c0_157, %c8_158, %c0_159, %c0_160] : memref<1x14x14x8xbf16, #tpu.memory_space<vmem>>, vector<1x1x14x8xbf16>
    %246 = vector.shape_cast %245 : vector<1x1x14x8xbf16> to vector<14x8xbf16>
    %247 = vector.shape_cast %244 : vector<14x8xbf16> to vector<1x1x14x8xbf16>
    tpu.vector_store %arg3[%c0_157, %c8_158, %c0_159, %c0_160], %247 {strides = array<i32>} : memref<1x14x14x8xbf16, #tpu.memory_space<vmem>>, vector<1x1x14x8xbf16>,
    %cst_161 = arith.constant dense<0.000000e+00> : vector<8xf32>
    %248 = vector.multi_reduction <add>, %243, %cst_161 [0] : vector<14x8xf32> to vector<8xf32>
    %249 = vector.shape_cast %248 : vector<8xf32> to vector<1x8xf32>
    %250 = arith.addf %222, %249 : vector<1x8xf32>
    %251 = arith.mulf %243, %243 : vector<14x8xf32>
    %cst_162 = arith.constant dense<0.000000e+00> : vector<8xf32>
    %252 = vector.multi_reduction <add>, %251, %cst_162 [0] : vector<14x8xf32> to vector<8xf32>
    %253 = vector.shape_cast %252 : vector<8xf32> to vector<1x8xf32>
    %254 = arith.addf %226, %253 : vector<1x8xf32>
    %c0_163 = arith.constant 0 : index
    %c9_164 = arith.constant 9 : index
    %c0_165 = arith.constant 0 : index
    %c0_166 = arith.constant 0 : index
    %255 = vector.load %arg1[%c0_163, %c9_164, %c0_165, %c0_166] : memref<1x16x16x4xbf16, #tpu.memory_space<vmem>>, vector<1x1x16x4xbf16>
    %256 = vector.shape_cast %255 : vector<1x1x16x4xbf16> to vector<16x4xbf16>
    %257 = vector.extract_strided_slice %256 {offsets = [0, 0], sizes = [14, 4], strides = [1, 1]} : vector<16x4xbf16> to vector<14x4xbf16>
    %258 = vector.extract_strided_slice %256 {offsets = [1, 0], sizes = [14, 4], strides = [1, 1]} : vector<16x4xbf16> to vector<14x4xbf16>
    %259 = vector.extract_strided_slice %256 {offsets = [2, 0], sizes = [14, 4], strides = [1, 1]} : vector<16x4xbf16> to vector<14x4xbf16>
    %c0_167 = arith.constant 0 : index
    %c10_168 = arith.constant 10 : index
    %c0_169 = arith.constant 0 : index
    %c0_170 = arith.constant 0 : index
    %260 = vector.load %arg1[%c0_167, %c10_168, %c0_169, %c0_170] : memref<1x16x16x4xbf16, #tpu.memory_space<vmem>>, vector<1x1x16x4xbf16>
    %261 = vector.shape_cast %260 : vector<1x1x16x4xbf16> to vector<16x4xbf16>
    %262 = vector.extract_strided_slice %261 {offsets = [0, 0], sizes = [14, 4], strides = [1, 1]} : vector<16x4xbf16> to vector<14x4xbf16>
    %263 = vector.extract_strided_slice %261 {offsets = [1, 0], sizes = [14, 4], strides = [1, 1]} : vector<16x4xbf16> to vector<14x4xbf16>
    %264 = vector.extract_strided_slice %261 {offsets = [2, 0], sizes = [14, 4], strides = [1, 1]} : vector<16x4xbf16> to vector<14x4xbf16>
    %c0_171 = arith.constant 0 : index
    %c11 = arith.constant 11 : index
    %c0_172 = arith.constant 0 : index
    %c0_173 = arith.constant 0 : index
    %265 = vector.load %arg1[%c0_171, %c11, %c0_172, %c0_173] : memref<1x16x16x4xbf16, #tpu.memory_space<vmem>>, vector<1x1x16x4xbf16>
    %266 = vector.shape_cast %265 : vector<1x1x16x4xbf16> to vector<16x4xbf16>
    %267 = vector.extract_strided_slice %266 {offsets = [0, 0], sizes = [14, 4], strides = [1, 1]} : vector<16x4xbf16> to vector<14x4xbf16>
    %268 = vector.extract_strided_slice %266 {offsets = [1, 0], sizes = [14, 4], strides = [1, 1]} : vector<16x4xbf16> to vector<14x4xbf16>
    %269 = vector.extract_strided_slice %266 {offsets = [2, 0], sizes = [14, 4], strides = [1, 1]} : vector<16x4xbf16> to vector<14x4xbf16>
    %270 = tpu.concatenate %257, %258, %259, %262, %263, %264, %267, %268, %269 in 1 : vector<14x4xbf16>, vector<14x4xbf16>, vector<14x4xbf16>, vector<14x4xbf16>, vector<14x4xbf16>, vector<14x4xbf16>, vector<14x4xbf16>, vector<14x4xbf16>, vector<14x4xbf16> -> vector<14x36xbf16>
    %cst_174 = arith.constant dense<0.000000e+00> : vector<14x8xf32>
    %271 = tpu.matmul %270, %0, %cst_174 {dimension_numbers = #tpu.dot_dimension_numbers<[1], [0], [0], [1], [0, 0, 1, 1], [], []>} : vector<14x36xbf16>, vector<36x8xbf16>, vector<14x8xf32> -> vector<14x8xf32>
    %272 = arith.truncf %271 : vector<14x8xf32> to vector<14x8xbf16>
    %c0_175 = arith.constant 0 : index
    %c9_176 = arith.constant 9 : index
    %c0_177 = arith.constant 0 : index
    %c0_178 = arith.constant 0 : index
    %273 = vector.load %arg3[%c0_175, %c9_176, %c0_177, %c0_178] : memref<1x14x14x8xbf16, #tpu.memory_space<vmem>>, vector<1x1x14x8xbf16>
    %274 = vector.shape_cast %273 : vector<1x1x14x8xbf16> to vector<14x8xbf16>
    %275 = vector.shape_cast %272 : vector<14x8xbf16> to vector<1x1x14x8xbf16>
    tpu.vector_store %arg3[%c0_175, %c9_176, %c0_177, %c0_178], %275 {strides = array<i32>} : memref<1x14x14x8xbf16, #tpu.memory_space<vmem>>, vector<1x1x14x8xbf16>,
    %cst_179 = arith.constant dense<0.000000e+00> : vector<8xf32>
    %276 = vector.multi_reduction <add>, %271, %cst_179 [0] : vector<14x8xf32> to vector<8xf32>
    %277 = vector.shape_cast %276 : vector<8xf32> to vector<1x8xf32>
    %278 = arith.addf %250, %277 : vector<1x8xf32>
    %279 = arith.mulf %271, %271 : vector<14x8xf32>
    %cst_180 = arith.constant dense<0.000000e+00> : vector<8xf32>
    %280 = vector.multi_reduction <add>, %279, %cst_180 [0] : vector<14x8xf32> to vector<8xf32>
    %281 = vector.shape_cast %280 : vector<8xf32> to vector<1x8xf32>
    %282 = arith.addf %254, %281 : vector<1x8xf32>
    %c0_181 = arith.constant 0 : index
    %c10_182 = arith.constant 10 : index
    %c0_183 = arith.constant 0 : index
    %c0_184 = arith.constant 0 : index
    %283 = vector.load %arg1[%c0_181, %c10_182, %c0_183, %c0_184] : memref<1x16x16x4xbf16, #tpu.memory_space<vmem>>, vector<1x1x16x4xbf16>
    %284 = vector.shape_cast %283 : vector<1x1x16x4xbf16> to vector<16x4xbf16>
    %285 = vector.extract_strided_slice %284 {offsets = [0, 0], sizes = [14, 4], strides = [1, 1]} : vector<16x4xbf16> to vector<14x4xbf16>
    %286 = vector.extract_strided_slice %284 {offsets = [1, 0], sizes = [14, 4], strides = [1, 1]} : vector<16x4xbf16> to vector<14x4xbf16>
    %287 = vector.extract_strided_slice %284 {offsets = [2, 0], sizes = [14, 4], strides = [1, 1]} : vector<16x4xbf16> to vector<14x4xbf16>
    %c0_185 = arith.constant 0 : index
    %c11_186 = arith.constant 11 : index
    %c0_187 = arith.constant 0 : index
    %c0_188 = arith.constant 0 : index
    %288 = vector.load %arg1[%c0_185, %c11_186, %c0_187, %c0_188] : memref<1x16x16x4xbf16, #tpu.memory_space<vmem>>, vector<1x1x16x4xbf16>
    %289 = vector.shape_cast %288 : vector<1x1x16x4xbf16> to vector<16x4xbf16>
    %290 = vector.extract_strided_slice %289 {offsets = [0, 0], sizes = [14, 4], strides = [1, 1]} : vector<16x4xbf16> to vector<14x4xbf16>
    %291 = vector.extract_strided_slice %289 {offsets = [1, 0], sizes = [14, 4], strides = [1, 1]} : vector<16x4xbf16> to vector<14x4xbf16>
    %292 = vector.extract_strided_slice %289 {offsets = [2, 0], sizes = [14, 4], strides = [1, 1]} : vector<16x4xbf16> to vector<14x4xbf16>
    %c0_189 = arith.constant 0 : index
    %c12 = arith.constant 12 : index
    %c0_190 = arith.constant 0 : index
    %c0_191 = arith.constant 0 : index
    %293 = vector.load %arg1[%c0_189, %c12, %c0_190, %c0_191] : memref<1x16x16x4xbf16, #tpu.memory_space<vmem>>, vector<1x1x16x4xbf16>
    %294 = vector.shape_cast %293 : vector<1x1x16x4xbf16> to vector<16x4xbf16>
    %295 = vector.extract_strided_slice %294 {offsets = [0, 0], sizes = [14, 4], strides = [1, 1]} : vector<16x4xbf16> to vector<14x4xbf16>
    %296 = vector.extract_strided_slice %294 {offsets = [1, 0], sizes = [14, 4], strides = [1, 1]} : vector<16x4xbf16> to vector<14x4xbf16>
    %297 = vector.extract_strided_slice %294 {offsets = [2, 0], sizes = [14, 4], strides = [1, 1]} : vector<16x4xbf16> to vector<14x4xbf16>
    %298 = tpu.concatenate %285, %286, %287, %290, %291, %292, %295, %296, %297 in 1 : vector<14x4xbf16>, vector<14x4xbf16>, vector<14x4xbf16>, vector<14x4xbf16>, vector<14x4xbf16>, vector<14x4xbf16>, vector<14x4xbf16>, vector<14x4xbf16>, vector<14x4xbf16> -> vector<14x36xbf16>
    %cst_192 = arith.constant dense<0.000000e+00> : vector<14x8xf32>
    %299 = tpu.matmul %298, %0, %cst_192 {dimension_numbers = #tpu.dot_dimension_numbers<[1], [0], [0], [1], [0, 0, 1, 1], [], []>} : vector<14x36xbf16>, vector<36x8xbf16>, vector<14x8xf32> -> vector<14x8xf32>
    %300 = arith.truncf %299 : vector<14x8xf32> to vector<14x8xbf16>
    %c0_193 = arith.constant 0 : index
    %c10_194 = arith.constant 10 : index
    %c0_195 = arith.constant 0 : index
    %c0_196 = arith.constant 0 : index
    %301 = vector.load %arg3[%c0_193, %c10_194, %c0_195, %c0_196] : memref<1x14x14x8xbf16, #tpu.memory_space<vmem>>, vector<1x1x14x8xbf16>
    %302 = vector.shape_cast %301 : vector<1x1x14x8xbf16> to vector<14x8xbf16>
    %303 = vector.shape_cast %300 : vector<14x8xbf16> to vector<1x1x14x8xbf16>
    tpu.vector_store %arg3[%c0_193, %c10_194, %c0_195, %c0_196], %303 {strides = array<i32>} : memref<1x14x14x8xbf16, #tpu.memory_space<vmem>>, vector<1x1x14x8xbf16>,
    %cst_197 = arith.constant dense<0.000000e+00> : vector<8xf32>
    %304 = vector.multi_reduction <add>, %299, %cst_197 [0] : vector<14x8xf32> to vector<8xf32>
    %305 = vector.shape_cast %304 : vector<8xf32> to vector<1x8xf32>
    %306 = arith.addf %278, %305 : vector<1x8xf32>
    %307 = arith.mulf %299, %299 : vector<14x8xf32>
    %cst_198 = arith.constant dense<0.000000e+00> : vector<8xf32>
    %308 = vector.multi_reduction <add>, %307, %cst_198 [0] : vector<14x8xf32> to vector<8xf32>
    %309 = vector.shape_cast %308 : vector<8xf32> to vector<1x8xf32>
    %310 = arith.addf %282, %309 : vector<1x8xf32>
    %c0_199 = arith.constant 0 : index
    %c11_200 = arith.constant 11 : index
    %c0_201 = arith.constant 0 : index
    %c0_202 = arith.constant 0 : index
    %311 = vector.load %arg1[%c0_199, %c11_200, %c0_201, %c0_202] : memref<1x16x16x4xbf16, #tpu.memory_space<vmem>>, vector<1x1x16x4xbf16>
    %312 = vector.shape_cast %311 : vector<1x1x16x4xbf16> to vector<16x4xbf16>
    %313 = vector.extract_strided_slice %312 {offsets = [0, 0], sizes = [14, 4], strides = [1, 1]} : vector<16x4xbf16> to vector<14x4xbf16>
    %314 = vector.extract_strided_slice %312 {offsets = [1, 0], sizes = [14, 4], strides = [1, 1]} : vector<16x4xbf16> to vector<14x4xbf16>
    %315 = vector.extract_strided_slice %312 {offsets = [2, 0], sizes = [14, 4], strides = [1, 1]} : vector<16x4xbf16> to vector<14x4xbf16>
    %c0_203 = arith.constant 0 : index
    %c12_204 = arith.constant 12 : index
    %c0_205 = arith.constant 0 : index
    %c0_206 = arith.constant 0 : index
    %316 = vector.load %arg1[%c0_203, %c12_204, %c0_205, %c0_206] : memref<1x16x16x4xbf16, #tpu.memory_space<vmem>>, vector<1x1x16x4xbf16>
    %317 = vector.shape_cast %316 : vector<1x1x16x4xbf16> to vector<16x4xbf16>
    %318 = vector.extract_strided_slice %317 {offsets = [0, 0], sizes = [14, 4], strides = [1, 1]} : vector<16x4xbf16> to vector<14x4xbf16>
    %319 = vector.extract_strided_slice %317 {offsets = [1, 0], sizes = [14, 4], strides = [1, 1]} : vector<16x4xbf16> to vector<14x4xbf16>
    %320 = vector.extract_strided_slice %317 {offsets = [2, 0], sizes = [14, 4], strides = [1, 1]} : vector<16x4xbf16> to vector<14x4xbf16>
    %c0_207 = arith.constant 0 : index
    %c13 = arith.constant 13 : index
    %c0_208 = arith.constant 0 : index
    %c0_209 = arith.constant 0 : index
    %321 = vector.load %arg1[%c0_207, %c13, %c0_208, %c0_209] : memref<1x16x16x4xbf16, #tpu.memory_space<vmem>>, vector<1x1x16x4xbf16>
    %322 = vector.shape_cast %321 : vector<1x1x16x4xbf16> to vector<16x4xbf16>
    %323 = vector.extract_strided_slice %322 {offsets = [0, 0], sizes = [14, 4], strides = [1, 1]} : vector<16x4xbf16> to vector<14x4xbf16>
    %324 = vector.extract_strided_slice %322 {offsets = [1, 0], sizes = [14, 4], strides = [1, 1]} : vector<16x4xbf16> to vector<14x4xbf16>
    %325 = vector.extract_strided_slice %322 {offsets = [2, 0], sizes = [14, 4], strides = [1, 1]} : vector<16x4xbf16> to vector<14x4xbf16>
    %326 = tpu.concatenate %313, %314, %315, %318, %319, %320, %323, %324, %325 in 1 : vector<14x4xbf16>, vector<14x4xbf16>, vector<14x4xbf16>, vector<14x4xbf16>, vector<14x4xbf16>, vector<14x4xbf16>, vector<14x4xbf16>, vector<14x4xbf16>, vector<14x4xbf16> -> vector<14x36xbf16>
    %cst_210 = arith.constant dense<0.000000e+00> : vector<14x8xf32>
    %327 = tpu.matmul %326, %0, %cst_210 {dimension_numbers = #tpu.dot_dimension_numbers<[1], [0], [0], [1], [0, 0, 1, 1], [], []>} : vector<14x36xbf16>, vector<36x8xbf16>, vector<14x8xf32> -> vector<14x8xf32>
    %328 = arith.truncf %327 : vector<14x8xf32> to vector<14x8xbf16>
    %c0_211 = arith.constant 0 : index
    %c11_212 = arith.constant 11 : index
    %c0_213 = arith.constant 0 : index
    %c0_214 = arith.constant 0 : index
    %329 = vector.load %arg3[%c0_211, %c11_212, %c0_213, %c0_214] : memref<1x14x14x8xbf16, #tpu.memory_space<vmem>>, vector<1x1x14x8xbf16>
    %330 = vector.shape_cast %329 : vector<1x1x14x8xbf16> to vector<14x8xbf16>
    %331 = vector.shape_cast %328 : vector<14x8xbf16> to vector<1x1x14x8xbf16>
    tpu.vector_store %arg3[%c0_211, %c11_212, %c0_213, %c0_214], %331 {strides = array<i32>} : memref<1x14x14x8xbf16, #tpu.memory_space<vmem>>, vector<1x1x14x8xbf16>,
    %cst_215 = arith.constant dense<0.000000e+00> : vector<8xf32>
    %332 = vector.multi_reduction <add>, %327, %cst_215 [0] : vector<14x8xf32> to vector<8xf32>
    %333 = vector.shape_cast %332 : vector<8xf32> to vector<1x8xf32>
    %334 = arith.addf %306, %333 : vector<1x8xf32>
    %335 = arith.mulf %327, %327 : vector<14x8xf32>
    %cst_216 = arith.constant dense<0.000000e+00> : vector<8xf32>
    %336 = vector.multi_reduction <add>, %335, %cst_216 [0] : vector<14x8xf32> to vector<8xf32>
    %337 = vector.shape_cast %336 : vector<8xf32> to vector<1x8xf32>
    %338 = arith.addf %310, %337 : vector<1x8xf32>
    %c0_217 = arith.constant 0 : index
    %c12_218 = arith.constant 12 : index
    %c0_219 = arith.constant 0 : index
    %c0_220 = arith.constant 0 : index
    %339 = vector.load %arg1[%c0_217, %c12_218, %c0_219, %c0_220] : memref<1x16x16x4xbf16, #tpu.memory_space<vmem>>, vector<1x1x16x4xbf16>
    %340 = vector.shape_cast %339 : vector<1x1x16x4xbf16> to vector<16x4xbf16>
    %341 = vector.extract_strided_slice %340 {offsets = [0, 0], sizes = [14, 4], strides = [1, 1]} : vector<16x4xbf16> to vector<14x4xbf16>
    %342 = vector.extract_strided_slice %340 {offsets = [1, 0], sizes = [14, 4], strides = [1, 1]} : vector<16x4xbf16> to vector<14x4xbf16>
    %343 = vector.extract_strided_slice %340 {offsets = [2, 0], sizes = [14, 4], strides = [1, 1]} : vector<16x4xbf16> to vector<14x4xbf16>
    %c0_221 = arith.constant 0 : index
    %c13_222 = arith.constant 13 : index
    %c0_223 = arith.constant 0 : index
    %c0_224 = arith.constant 0 : index
    %344 = vector.load %arg1[%c0_221, %c13_222, %c0_223, %c0_224] : memref<1x16x16x4xbf16, #tpu.memory_space<vmem>>, vector<1x1x16x4xbf16>
    %345 = vector.shape_cast %344 : vector<1x1x16x4xbf16> to vector<16x4xbf16>
    %346 = vector.extract_strided_slice %345 {offsets = [0, 0], sizes = [14, 4], strides = [1, 1]} : vector<16x4xbf16> to vector<14x4xbf16>
    %347 = vector.extract_strided_slice %345 {offsets = [1, 0], sizes = [14, 4], strides = [1, 1]} : vector<16x4xbf16> to vector<14x4xbf16>
    %348 = vector.extract_strided_slice %345 {offsets = [2, 0], sizes = [14, 4], strides = [1, 1]} : vector<16x4xbf16> to vector<14x4xbf16>
    %c0_225 = arith.constant 0 : index
    %c14 = arith.constant 14 : index
    %c0_226 = arith.constant 0 : index
    %c0_227 = arith.constant 0 : index
    %349 = vector.load %arg1[%c0_225, %c14, %c0_226, %c0_227] : memref<1x16x16x4xbf16, #tpu.memory_space<vmem>>, vector<1x1x16x4xbf16>
    %350 = vector.shape_cast %349 : vector<1x1x16x4xbf16> to vector<16x4xbf16>
    %351 = vector.extract_strided_slice %350 {offsets = [0, 0], sizes = [14, 4], strides = [1, 1]} : vector<16x4xbf16> to vector<14x4xbf16>
    %352 = vector.extract_strided_slice %350 {offsets = [1, 0], sizes = [14, 4], strides = [1, 1]} : vector<16x4xbf16> to vector<14x4xbf16>
    %353 = vector.extract_strided_slice %350 {offsets = [2, 0], sizes = [14, 4], strides = [1, 1]} : vector<16x4xbf16> to vector<14x4xbf16>
    %354 = tpu.concatenate %341, %342, %343, %346, %347, %348, %351, %352, %353 in 1 : vector<14x4xbf16>, vector<14x4xbf16>, vector<14x4xbf16>, vector<14x4xbf16>, vector<14x4xbf16>, vector<14x4xbf16>, vector<14x4xbf16>, vector<14x4xbf16>, vector<14x4xbf16> -> vector<14x36xbf16>
    %cst_228 = arith.constant dense<0.000000e+00> : vector<14x8xf32>
    %355 = tpu.matmul %354, %0, %cst_228 {dimension_numbers = #tpu.dot_dimension_numbers<[1], [0], [0], [1], [0, 0, 1, 1], [], []>} : vector<14x36xbf16>, vector<36x8xbf16>, vector<14x8xf32> -> vector<14x8xf32>
    %356 = arith.truncf %355 : vector<14x8xf32> to vector<14x8xbf16>
    %c0_229 = arith.constant 0 : index
    %c12_230 = arith.constant 12 : index
    %c0_231 = arith.constant 0 : index
    %c0_232 = arith.constant 0 : index
    %357 = vector.load %arg3[%c0_229, %c12_230, %c0_231, %c0_232] : memref<1x14x14x8xbf16, #tpu.memory_space<vmem>>, vector<1x1x14x8xbf16>
    %358 = vector.shape_cast %357 : vector<1x1x14x8xbf16> to vector<14x8xbf16>
    %359 = vector.shape_cast %356 : vector<14x8xbf16> to vector<1x1x14x8xbf16>
    tpu.vector_store %arg3[%c0_229, %c12_230, %c0_231, %c0_232], %359 {strides = array<i32>} : memref<1x14x14x8xbf16, #tpu.memory_space<vmem>>, vector<1x1x14x8xbf16>,
    %cst_233 = arith.constant dense<0.000000e+00> : vector<8xf32>
    %360 = vector.multi_reduction <add>, %355, %cst_233 [0] : vector<14x8xf32> to vector<8xf32>
    %361 = vector.shape_cast %360 : vector<8xf32> to vector<1x8xf32>
    %362 = arith.addf %334, %361 : vector<1x8xf32>
    %363 = arith.mulf %355, %355 : vector<14x8xf32>
    %cst_234 = arith.constant dense<0.000000e+00> : vector<8xf32>
    %364 = vector.multi_reduction <add>, %363, %cst_234 [0] : vector<14x8xf32> to vector<8xf32>
    %365 = vector.shape_cast %364 : vector<8xf32> to vector<1x8xf32>
    %366 = arith.addf %338, %365 : vector<1x8xf32>
    %c0_235 = arith.constant 0 : index
    %c13_236 = arith.constant 13 : index
    %c0_237 = arith.constant 0 : index
    %c0_238 = arith.constant 0 : index
    %367 = vector.load %arg1[%c0_235, %c13_236, %c0_237, %c0_238] : memref<1x16x16x4xbf16, #tpu.memory_space<vmem>>, vector<1x1x16x4xbf16>
    %368 = vector.shape_cast %367 : vector<1x1x16x4xbf16> to vector<16x4xbf16>
    %369 = vector.extract_strided_slice %368 {offsets = [0, 0], sizes = [14, 4], strides = [1, 1]} : vector<16x4xbf16> to vector<14x4xbf16>
    %370 = vector.extract_strided_slice %368 {offsets = [1, 0], sizes = [14, 4], strides = [1, 1]} : vector<16x4xbf16> to vector<14x4xbf16>
    %371 = vector.extract_strided_slice %368 {offsets = [2, 0], sizes = [14, 4], strides = [1, 1]} : vector<16x4xbf16> to vector<14x4xbf16>
    %c0_239 = arith.constant 0 : index
    %c14_240 = arith.constant 14 : index
    %c0_241 = arith.constant 0 : index
    %c0_242 = arith.constant 0 : index
    %372 = vector.load %arg1[%c0_239, %c14_240, %c0_241, %c0_242] : memref<1x16x16x4xbf16, #tpu.memory_space<vmem>>, vector<1x1x16x4xbf16>
    %373 = vector.shape_cast %372 : vector<1x1x16x4xbf16> to vector<16x4xbf16>
    %374 = vector.extract_strided_slice %373 {offsets = [0, 0], sizes = [14, 4], strides = [1, 1]} : vector<16x4xbf16> to vector<14x4xbf16>
    %375 = vector.extract_strided_slice %373 {offsets = [1, 0], sizes = [14, 4], strides = [1, 1]} : vector<16x4xbf16> to vector<14x4xbf16>
    %376 = vector.extract_strided_slice %373 {offsets = [2, 0], sizes = [14, 4], strides = [1, 1]} : vector<16x4xbf16> to vector<14x4xbf16>
    %c0_243 = arith.constant 0 : index
    %c15 = arith.constant 15 : index
    %c0_244 = arith.constant 0 : index
    %c0_245 = arith.constant 0 : index
    %377 = vector.load %arg1[%c0_243, %c15, %c0_244, %c0_245] : memref<1x16x16x4xbf16, #tpu.memory_space<vmem>>, vector<1x1x16x4xbf16>
    %378 = vector.shape_cast %377 : vector<1x1x16x4xbf16> to vector<16x4xbf16>
    %379 = vector.extract_strided_slice %378 {offsets = [0, 0], sizes = [14, 4], strides = [1, 1]} : vector<16x4xbf16> to vector<14x4xbf16>
    %380 = vector.extract_strided_slice %378 {offsets = [1, 0], sizes = [14, 4], strides = [1, 1]} : vector<16x4xbf16> to vector<14x4xbf16>
    %381 = vector.extract_strided_slice %378 {offsets = [2, 0], sizes = [14, 4], strides = [1, 1]} : vector<16x4xbf16> to vector<14x4xbf16>
    %382 = tpu.concatenate %369, %370, %371, %374, %375, %376, %379, %380, %381 in 1 : vector<14x4xbf16>, vector<14x4xbf16>, vector<14x4xbf16>, vector<14x4xbf16>, vector<14x4xbf16>, vector<14x4xbf16>, vector<14x4xbf16>, vector<14x4xbf16>, vector<14x4xbf16> -> vector<14x36xbf16>
    %cst_246 = arith.constant dense<0.000000e+00> : vector<14x8xf32>
    %383 = tpu.matmul %382, %0, %cst_246 {dimension_numbers = #tpu.dot_dimension_numbers<[1], [0], [0], [1], [0, 0, 1, 1], [], []>} : vector<14x36xbf16>, vector<36x8xbf16>, vector<14x8xf32> -> vector<14x8xf32>
    %384 = arith.truncf %383 : vector<14x8xf32> to vector<14x8xbf16>
    %c0_247 = arith.constant 0 : index
    %c13_248 = arith.constant 13 : index
    %c0_249 = arith.constant 0 : index
    %c0_250 = arith.constant 0 : index
    %385 = vector.load %arg3[%c0_247, %c13_248, %c0_249, %c0_250] : memref<1x14x14x8xbf16, #tpu.memory_space<vmem>>, vector<1x1x14x8xbf16>
    %386 = vector.shape_cast %385 : vector<1x1x14x8xbf16> to vector<14x8xbf16>
    %387 = vector.shape_cast %384 : vector<14x8xbf16> to vector<1x1x14x8xbf16>
    tpu.vector_store %arg3[%c0_247, %c13_248, %c0_249, %c0_250], %387 {strides = array<i32>} : memref<1x14x14x8xbf16, #tpu.memory_space<vmem>>, vector<1x1x14x8xbf16>,
    %cst_251 = arith.constant dense<0.000000e+00> : vector<8xf32>
    %388 = vector.multi_reduction <add>, %383, %cst_251 [0] : vector<14x8xf32> to vector<8xf32>
    %389 = vector.shape_cast %388 : vector<8xf32> to vector<1x8xf32>
    %390 = arith.addf %362, %389 : vector<1x8xf32>
    %391 = arith.mulf %383, %383 : vector<14x8xf32>
    %cst_252 = arith.constant dense<0.000000e+00> : vector<8xf32>
    %392 = vector.multi_reduction <add>, %391, %cst_252 [0] : vector<14x8xf32> to vector<8xf32>
    %393 = vector.shape_cast %392 : vector<8xf32> to vector<1x8xf32>
    %394 = arith.addf %366, %393 : vector<1x8xf32>
    %c0_253 = arith.constant 0 : index
    %c0_254 = arith.constant 0 : index
    %c0_255 = arith.constant 0 : index
    %395 = vector.load %arg4[%c0_253, %c0_254, %c0_255] : memref<1x1x8xf32, #tpu.memory_space<vmem>>, vector<1x1x8xf32>
    %396 = vector.shape_cast %395 : vector<1x1x8xf32> to vector<1x8xf32>
    %397 = vector.shape_cast %390 : vector<1x8xf32> to vector<1x1x8xf32>
    tpu.vector_store %arg4[%c0_253, %c0_254, %c0_255], %397 {strides = array<i32>} : memref<1x1x8xf32, #tpu.memory_space<vmem>>, vector<1x1x8xf32>,
    %c0_256 = arith.constant 0 : index
    %c0_257 = arith.constant 0 : index
    %c0_258 = arith.constant 0 : index
    %398 = vector.load %arg5[%c0_256, %c0_257, %c0_258] : memref<1x1x8xf32, #tpu.memory_space<vmem>>, vector<1x1x8xf32>
    %399 = vector.shape_cast %398 : vector<1x1x8xf32> to vector<1x8xf32>
    %400 = vector.shape_cast %394 : vector<1x8xf32> to vector<1x1x8xf32>
    tpu.vector_store %arg5[%c0_256, %c0_257, %c0_258], %400 {strides = array<i32>} : memref<1x1x8xf32, #tpu.memory_space<vmem>>, vector<1x1x8xf32>,
    return
  }
  func.func @transform_0(%arg0: i32) -> (i32, i32, i32, i32) {
    %c0_i32 = arith.constant 0 : i32
    %c0_i32_0 = arith.constant 0 : i32
    %c0_i32_1 = arith.constant 0 : i32
    %c0_i32_2 = arith.constant 0 : i32
    return %arg0, %c0_i32, %c0_i32_0, %c0_i32_1 : i32, i32, i32, i32
  }
  func.func @transform_1(%arg0: i32) -> (i32, i32) {
    %c0_i32 = arith.constant 0 : i32
    %c0_i32_0 = arith.constant 0 : i32
    %c0_i32_1 = arith.constant 0 : i32
    return %c0_i32, %c0_i32_0 : i32, i32
  }
  func.func @transform_2(%arg0: i32) -> (i32, i32, i32, i32) {
    %c0_i32 = arith.constant 0 : i32
    %c0_i32_0 = arith.constant 0 : i32
    %c0_i32_1 = arith.constant 0 : i32
    %c0_i32_2 = arith.constant 0 : i32
    return %arg0, %c0_i32, %c0_i32_0, %c0_i32_1 : i32, i32, i32, i32
  }
  func.func @transform_3(%arg0: i32) -> (i32, i32, i32) {
    %c0_i32 = arith.constant 0 : i32
    %c0_i32_0 = arith.constant 0 : i32
    %c0_i32_1 = arith.constant 0 : i32
    return %arg0, %c0_i32, %c0_i32_0 : i32, i32, i32
  }
  func.func @transform_4(%arg0: i32) -> (i32, i32, i32) {
    %c0_i32 = arith.constant 0 : i32
    %c0_i32_0 = arith.constant 0 : i32
    %c0_i32_1 = arith.constant 0 : i32
    return %arg0, %c0_i32, %c0_i32_0 : i32, i32, i32
  }
}

</mosaic_0001>

<llo_original>
// kernel: conv_bn_relu.3
$region0: #{conv_bn_relu.3}
  #allocation0 [shape = 'u32[]', space=smem, size = 0x4, offset = 0x4, fixed_abs, tag = 'smem constant byte address 0x4 - core index']
  #allocation1 [shape = 'u32[144,128]{1,0:T(1,128)}', space=vmem, size = 0x12000, scoped, tag = 'internal scratch']
  %s0 = inlined_call_operand.vmem [shape: bf16[2,14,14,8], index: 0, kind: input, shape index: {}]
  %s1 = inlined_call_operand.vmem [shape: f32[1,1,1,8], index: 1, kind: input, shape index: {}]
  %s2 = inlined_call_operand.vmem [shape: f32[1,1,1,8], index: 2, kind: input, shape index: {}]
  %s3 = inlined_call_operand.vmem [shape: f32[2,14,14,8], index: 3, kind: output, shape index: {}]
  %s4 = sld [smem:[#allocation0]]
  $region45: #{conv_bn_relu.3} parent=0
    _
  %s6 = ssub.s32 1, %s4
  %s7 = scalar_select 0, %s6, %s4
  loop: start=0, step=1, limit=4
  $region2: #{conv_bn_relu.3} parent=0 // loop_pre_header
    _
  $region3: #{conv_bn_relu.3} parent=0 // loop_header
    %s9 = sphi 0, %s13
    %p10 = scmp.ge.s32.totalorder %s9, 4
    %s19 = sphi 0, %s21
    %s22 = sphi 0, %s19
    %s23 = sphi 0, %s22
    %s39 = sphi 0, %s23
    %s43 = sphi 0, %s43
    %s45 = sphi 0, %s43
    %s46 = sphi 0, %s45
    %s60 = sphi 0, %s46
    %s64 = sphi 0, %s64
    %s66 = sphi 0, %s64
    %s67 = sphi 0, %s66
    %s81 = sphi 0, %s67
    %s87 = sphi 0, %s89
    %s90 = sphi 0, %s87
    %s91 = sphi 0, %s90
    %s107 = sphi 0, %s91
  $region4: #{conv_bn_relu.3} parent=0 // loop_header_branch
    %12 = sbr.rel (%p10) target = $region8
  $region5: #{conv_bn_relu.3} parent=0 // loop_body
    %s14 = ssub.s32 %s9, 1
    %s15 = ssub.s32 %s9, 2
    %s16 = sadd.s32 %s9, 1
    %s17 = ssub.s32 %s9, %s16
    %p18 = scmp.eq.s32.totalorder %s17, 0
    %s20 = sadd.s32 %s19, 1
    %s21 = scalar_select %p18, %s19, %s20
    %p24 = pneg %p18
    %p25 = scmp.eq.s32.totalorder %s9, 1
    %p26 = por %p24, %p25
    %p27 = scmp.ne.s32.totalorder %s19, %s22
    %p28 = scmp.eq.s32.totalorder %s9, 0
    %p29 = por %p27, %p28
    %p30 = scmp.ne.s32.totalorder %s19, %s22
    %p31 = scmp.eq.s32.totalorder %s14, 1
    %p32 = por %p30, %p31
    %p33 = scmp.ne.s32.totalorder %s22, %s23
    %p34 = scmp.eq.s32.totalorder %s14, 0
    %p35 = por %p33, %p34
    %p36 = scmp.ne.s32.totalorder %s22, %s23
    %p37 = scmp.eq.s32.totalorder %s15, 1
    %p38 = por %p36, %p37
    %p40 = scmp.ne.s32.totalorder %s23, %s39
    %p41 = scmp.eq.s32.totalorder %s15, 0
    %p42 = por %p40, %p41
    %s44 = sadd.s32 %s43, 1
    %p47 = scmp.eq.s32.totalorder %s9, 1
    %p48 = scmp.ne.s32.totalorder %s43, %s45
    %p49 = scmp.eq.s32.totalorder %s9, 0
    %p50 = por %p48, %p49
    %p51 = scmp.ne.s32.totalorder %s43, %s45
    %p52 = scmp.eq.s32.totalorder %s14, 1
    %p53 = por %p51, %p52
    %p54 = scmp.ne.s32.totalorder %s45, %s46
    %p55 = scmp.eq.s32.totalorder %s14, 0
    %p56 = por %p54, %p55
    %p57 = scmp.ne.s32.totalorder %s45, %s46
    %p58 = scmp.eq.s32.totalorder %s15, 1
    %p59 = por %p57, %p58
    %p61 = scmp.ne.s32.totalorder %s46, %s60
    %p62 = scmp.eq.s32.totalorder %s15, 0
    %p63 = por %p61, %p62
    %s65 = sadd.s32 %s64, 1
    %p68 = scmp.eq.s32.totalorder %s9, 1
    %p69 = scmp.ne.s32.totalorder %s64, %s66
    %p70 = scmp.eq.s32.totalorder %s9, 0
    %p71 = por %p69, %p70
    %p72 = scmp.ne.s32.totalorder %s64, %s66
    %p73 = scmp.eq.s32.totalorder %s14, 1
    %p74 = por %p72, %p73
    %p75 = scmp.ne.s32.totalorder %s66, %s67
    %p76 = scmp.eq.s32.totalorder %s14, 0
    %p77 = por %p75, %p76
    %p78 = scmp.ne.s32.totalorder %s66, %s67
    %p79 = scmp.eq.s32.totalorder %s15, 1
    %p80 = por %p78, %p79
    %p82 = scmp.ne.s32.totalorder %s67, %s81
    %p83 = scmp.eq.s32.totalorder %s15, 0
    %p84 = por %p82, %p83
    %s85 = ssub.s32 %s9, %s16
    %p86 = scmp.eq.s32.totalorder %s85, 0
    %s88 = sadd.s32 %s87, 1
    %s89 = scalar_select %p86, %s87, %s88
    %p92 = pneg %p86
    %p93 = scmp.eq.s32.totalorder %s9, 1
    %p94 = por %p92, %p93
    %p95 = scmp.ne.s32.totalorder %s87, %s90
    %p96 = scmp.eq.s32.totalorder %s9, 0
    %p97 = por %p95, %p96
    %p98 = scmp.ne.s32.totalorder %s87, %s90
    %p99 = scmp.eq.s32.totalorder %s14, 1
    %p100 = por %p98, %p99
    %p101 = scmp.ne.s32.totalorder %s90, %s91
    %p102 = scmp.eq.s32.totalorder %s14, 0
    %p103 = por %p101, %p102
    %p104 = scmp.ne.s32.totalorder %s90, %s91
    %p105 = scmp.eq.s32.totalorder %s15, 1
    %p106 = por %p104, %p105
    %p108 = scmp.ne.s32.totalorder %s91, %s107
    %p109 = scmp.eq.s32.totalorder %s15, 0
    %p110 = por %p108, %p109
    %p111 = scmp.le.s32.totalorder 1, %s9
    %p112 = scmp.lt.s32.totalorder %s9, 3
    %p113 = pnand %p111, %p112
    %p114 = pneg %p113
    // Predicated region
    $region9: #{conv_bn_relu.3} parent=5 // pred_check
      _
    $region10: #{conv_bn_relu.3} parent=5 // pred_check_branch
      %116 = sbr.rel (%p113) target = $region12
    $region11: #{conv_bn_relu.3} parent=5 // pred_region
      %s117 = ssub.s32 %s9, 1
      // Predicated region
      $region13: #{conv_bn_relu.3} parent=11 // pred_check
        %p118 = pneg %p56
      $region14: #{conv_bn_relu.3} parent=11 // pred_check_branch
        %120 = sbr.rel (%p118) target = $region16
      $region15: #{conv_bn_relu.3} parent=11 // pred_region
        _
      $region16: #{conv_bn_relu.3} parent=11 // pred_fallthru
        _
      // Predicated region
      $region17: #{conv_bn_relu.3} parent=11 // pred_check
        %p121 = pneg %p77
      $region18: #{conv_bn_relu.3} parent=11 // pred_check_branch
        %123 = sbr.rel (%p121) target = $region20
      $region19: #{conv_bn_relu.3} parent=11 // pred_region
        _
      $region20: #{conv_bn_relu.3} parent=11 // pred_fallthru
        _
    $region12: #{conv_bn_relu.3} parent=5 // pred_fallthru
      _
    %p124 = scmp.lt.s32.totalorder %s9, 2
    // Predicated region
    $region21: #{conv_bn_relu.3} parent=5 // pred_check
      %p125 = pneg %p124
    $region22: #{conv_bn_relu.3} parent=5 // pred_check_branch
      %127 = sbr.rel (%p125) target = $region24
    $region23: #{conv_bn_relu.3} parent=5 // pred_region
      // Predicated region
      $region25: #{conv_bn_relu.3} parent=23 // pred_check
        %p128 = pneg %p29
      $region26: #{conv_bn_relu.3} parent=23 // pred_check_branch
        %130 = sbr.rel (%p128) target = $region28
      $region27: #{conv_bn_relu.3} parent=23 // pred_region
        %p131 = scmp.lt.s32.totalorder %s9, 1
        %s132 = scalar_select %p131, %s9, 1
        %s133 = smul.addr %s132, 28
        %s134 = smul.addr %s133, 4
        %s135 = scalar_lea.vmem %s0, %s134
      $region28: #{conv_bn_relu.3} parent=23 // pred_fallthru
        _
    $region24: #{conv_bn_relu.3} parent=5 // pred_fallthru
      _
    %p136 = scmp.le.s32.totalorder 1, %s9
    %p137 = scmp.lt.s32.totalorder %s9, 3
    %p138 = pnand %p136, %p137
    %p139 = pneg %p138
    // Predicated region
    $region29: #{conv_bn_relu.3} parent=5 // pred_check
      _
    $region30: #{conv_bn_relu.3} parent=5 // pred_check_branch
      %141 = sbr.rel (%p138) target = $region32
    $region31: #{conv_bn_relu.3} parent=5 // pred_region
      %s142 = ssub.s32 %s9, 1
      %p143 = scmp.lt.s32.totalorder %s14, 1
      %s144 = scalar_select %p143, %s14, 1
      %s145 = smul.addr %s144, 28
      %s146 = smul.addr %s145, 4
      %s147 = scalar_lea.vmem %s0, %s146
      %p148 = pneg %p35
      %p149 = pneg %p32
      %p150 = pneg %p56
      %p151 = pneg %p53
      %p152 = pneg %p77
      %p153 = pneg %p74
      %p154 = pneg %p103
      %p155 = pneg %p100
      %p156 = scmp.lt.s32.totalorder %s14, 1
      %s157 = scalar_select %p156, %s14, 1
      %s158 = smul.addr %s157, 28
      %s159 = smul.addr %s158, 8
      %s160 = scalar_lea.vmem %s3, %s159
      %p161 = scmp.lt.s32.totalorder %s14, 1
      %s162 = scalar_select %p161, %s14, 1
      %s163 = smul.addr %s162, 28
      %s164 = smul.addr %s163, 4
      %s165 = scalar_lea.vmem %s0, %s164
      %p166 = scmp.lt.s32.totalorder %s14, 1
      %s167 = scalar_select %p166, %s14, 1
      %s168 = smul.addr %s167, 28
      %s169 = smul.addr %s168, 8
      %s170 = scalar_lea.vmem %s3, %s169
      %v171 = vld [vmem:[%s165] sm:$0xf]
      %v172 = vld [vmem:[%s165 + $0x4] sm:$0x7]
      %v173 = vld [vmem:[%s165 + $0x8] sm:$0xf]
      %v174 = vld [vmem:[%s165 + $0xc] sm:$0x7]
      %v175 = vld [vmem:[%s165 + $0x10] sm:$0xf]
      %v176 = vld [vmem:[%s165 + $0x14] sm:$0x7]
      %v177 = vld [vmem:[%s165 + $0x18] sm:$0xf]
      %v178 = vld [vmem:[%s165 + $0x1c] sm:$0x7]
      %v179 = vld [vmem:[%s165 + $0x20] sm:$0xf]
      %v180 = vld [vmem:[%s165 + $0x24] sm:$0x7]
      %v181 = vld [vmem:[%s165 + $0x28] sm:$0xf]
      %v182 = vld [vmem:[%s165 + $0x2c] sm:$0x7]
      %v183 = vld [vmem:[%s165 + $0x30] sm:$0xf]
      %v184 = vld [vmem:[%s165 + $0x34] sm:$0x7]
      %v185 = vld [vmem:[%s165 + $0x38] sm:$0xf]
      %v186 = vld [vmem:[%s165 + $0x3c] sm:$0x7]
      %v187 = vld [vmem:[%s165 + $0x40] sm:$0xf]
      %v188 = vld [vmem:[%s165 + $0x44] sm:$0x7]
      %v189 = vld [vmem:[%s165 + $0x48] sm:$0xf]
      %v190 = vld [vmem:[%s165 + $0x4c] sm:$0x7]
      %v191 = vld [vmem:[%s165 + $0x50] sm:$0xf]
      %v192 = vld [vmem:[%s165 + $0x54] sm:$0x7]
      %v193 = vld [vmem:[%s165 + $0x58] sm:$0xf]
      %v194 = vld [vmem:[%s165 + $0x5c] sm:$0x7]
      %v195 = vld [vmem:[%s165 + $0x60] sm:$0xf]
      %v196 = vld [vmem:[%s165 + $0x64] sm:$0x7]
      %v197 = vld [vmem:[%s165 + $0x68] sm:$0xf]
      %v198 = vld [vmem:[%s165 + $0x6c] sm:$0x7]
      %v199 = vunpack.c.l.bf16 %v171
      %v200 = vunpack.c.l.bf16 %v172
      %v201 = vunpack.c.l.bf16 %v173
      %v202 = vunpack.c.l.bf16 %v174
      %v203 = vunpack.c.l.bf16 %v175
      %v204 = vunpack.c.l.bf16 %v176
      %v205 = vunpack.c.l.bf16 %v177
      %v206 = vunpack.c.l.bf16 %v178
      %v207 = vunpack.c.l.bf16 %v179
      %v208 = vunpack.c.l.bf16 %v180
      %v209 = vunpack.c.l.bf16 %v181
      %v210 = vunpack.c.l.bf16 %v182
      %v211 = vunpack.c.l.bf16 %v183
      %v212 = vunpack.c.l.bf16 %v184
      %v213 = vunpack.c.l.bf16 %v185
      %v214 = vunpack.c.l.bf16 %v186
      %v215 = vunpack.c.l.bf16 %v187
      %v216 = vunpack.c.l.bf16 %v188
      %v217 = vunpack.c.l.bf16 %v189
      %v218 = vunpack.c.l.bf16 %v190
      %v219 = vunpack.c.l.bf16 %v191
      %v220 = vunpack.c.l.bf16 %v192
      %v221 = vunpack.c.l.bf16 %v193
      %v222 = vunpack.c.l.bf16 %v194
      %v223 = vunpack.c.l.bf16 %v195
      %v224 = vunpack.c.l.bf16 %v196
      %v225 = vunpack.c.l.bf16 %v197
      %v226 = vunpack.c.l.bf16 %v198
      %v227 = vld [vmem:[%s1] sm:$0x1]
      %v229 = vlaneseq
      %v230 = vshrl.u32 %v229, 7
      %v231 = vsub.s32 0, %v230
      %v232 = vrot.slane %v227, %v231
      %v234 = vmul.f32 %v199, %v232
      %v235 = vmul.f32 %v200, %v232
      %v236 = vmul.f32 %v201, %v232
      %v237 = vmul.f32 %v202, %v232
      %v238 = vmul.f32 %v203, %v232
      %v239 = vmul.f32 %v204, %v232
      %v240 = vmul.f32 %v205, %v232
      %v241 = vmul.f32 %v206, %v232
      %v242 = vmul.f32 %v207, %v232
      %v243 = vmul.f32 %v208, %v232
      %v244 = vmul.f32 %v209, %v232
      %v245 = vmul.f32 %v210, %v232
      %v246 = vmul.f32 %v211, %v232
      %v247 = vmul.f32 %v212, %v232
      %v248 = vmul.f32 %v213, %v232
      %v249 = vmul.f32 %v214, %v232
      %v250 = vmul.f32 %v215, %v232
      %v251 = vmul.f32 %v216, %v232
      %v252 = vmul.f32 %v217, %v232
      %v253 = vmul.f32 %v218, %v232
      %v254 = vmul.f32 %v219, %v232
      %v255 = vmul.f32 %v220, %v232
      %v256 = vmul.f32 %v221, %v232
      %v257 = vmul.f32 %v222, %v232
      %v258 = vmul.f32 %v223, %v232
      %v259 = vmul.f32 %v224, %v232
      %v260 = vmul.f32 %v225, %v232
      %v261 = vmul.f32 %v226, %v232
      %v262 = vld [vmem:[%s2] sm:$0x1]
      %v264 = vlaneseq
      %v265 = vshrl.u32 %v264, 7
      %v266 = vsub.s32 0, %v265
      %v267 = vrot.slane %v262, %v266
      %v269 = vadd.f32 %v234, %v267
      %v270 = vadd.f32 %v235, %v267
      %v271 = vadd.f32 %v236, %v267
      %v272 = vadd.f32 %v237, %v267
      %v273 = vadd.f32 %v238, %v267
      %v274 = vadd.f32 %v239, %v267
      %v275 = vadd.f32 %v240, %v267
      %v276 = vadd.f32 %v241, %v267
      %v277 = vadd.f32 %v242, %v267
      %v278 = vadd.f32 %v243, %v267
      %v279 = vadd.f32 %v244, %v267
      %v280 = vadd.f32 %v245, %v267
      %v281 = vadd.f32 %v246, %v267
      %v282 = vadd.f32 %v247, %v267
      %v283 = vadd.f32 %v248, %v267
      %v284 = vadd.f32 %v249, %v267
      %v285 = vadd.f32 %v250, %v267
      %v286 = vadd.f32 %v251, %v267
      %v287 = vadd.f32 %v252, %v267
      %v288 = vadd.f32 %v253, %v267
      %v289 = vadd.f32 %v254, %v267
      %v290 = vadd.f32 %v255, %v267
      %v291 = vadd.f32 %v256, %v267
      %v292 = vadd.f32 %v257, %v267
      %v293 = vadd.f32 %v258, %v267
      %v294 = vadd.f32 %v259, %v267
      %v295 = vadd.f32 %v260, %v267
      %v296 = vadd.f32 %v261, %v267
      %v297 = vmax.f32 %v269, 0.0
      %v298 = vmax.f32 %v270, 0.0
      %v299 = vmax.f32 %v271, 0.0
      %v300 = vmax.f32 %v272, 0.0
      %v301 = vmax.f32 %v273, 0.0
      %v302 = vmax.f32 %v274, 0.0
      %v303 = vmax.f32 %v275, 0.0
      %v304 = vmax.f32 %v276, 0.0
      %v305 = vmax.f32 %v277, 0.0
      %v306 = vmax.f32 %v278, 0.0
      %v307 = vmax.f32 %v279, 0.0
      %v308 = vmax.f32 %v280, 0.0
      %v309 = vmax.f32 %v281, 0.0
      %v310 = vmax.f32 %v282, 0.0
      %v311 = vmax.f32 %v283, 0.0
      %v312 = vmax.f32 %v284, 0.0
      %v313 = vmax.f32 %v285, 0.0
      %v314 = vmax.f32 %v286, 0.0
      %v315 = vmax.f32 %v287, 0.0
      %v316 = vmax.f32 %v288, 0.0
      %v317 = vmax.f32 %v289, 0.0
      %v318 = vmax.f32 %v290, 0.0
      %v319 = vmax.f32 %v291, 0.0
      %v320 = vmax.f32 %v292, 0.0
      %v321 = vmax.f32 %v293, 0.0
      %v322 = vmax.f32 %v294, 0.0
      %v323 = vmax.f32 %v295, 0.0
      %v324 = vmax.f32 %v296, 0.0
      %vm325 = vcmask 64512
      %326 = vst.msk [vmem:[%s170] sm:$0xff] %vm325, %v297
      %vm327 = vcmask 62464
      %328 = vst.msk [vmem:[%s170 + $0x8] sm:$0x3f] %vm327, %v298
      %329 = vst.msk [vmem:[%s170 + $0x10] sm:$0xff] %vm325, %v299
      %330 = vst.msk [vmem:[%s170 + $0x18] sm:$0x3f] %vm327, %v300
      %331 = vst.msk [vmem:[%s170 + $0x20] sm:$0xff] %vm325, %v301
      %332 = vst.msk [vmem:[%s170 + $0x28] sm:$0x3f] %vm327, %v302
      %333 = vst.msk [vmem:[%s170 + $0x30] sm:$0xff] %vm325, %v303
      %334 = vst.msk [vmem:[%s170 + $0x38] sm:$0x3f] %vm327, %v304
      %335 = vst.msk [vmem:[%s170 + $0x40] sm:$0xff] %vm325, %v305
      %336 = vst.msk [vmem:[%s170 + $0x48] sm:$0x3f] %vm327, %v306
      %337 = vst.msk [vmem:[%s170 + $0x50] sm:$0xff] %vm325, %v307
      %338 = vst.msk [vmem:[%s170 + $0x58] sm:$0x3f] %vm327, %v308
      %339 = vst.msk [vmem:[%s170 + $0x60] sm:$0xff] %vm325, %v309
      %340 = vst.msk [vmem:[%s170 + $0x68] sm:$0x3f] %vm327, %v310
      %341 = vst.msk [vmem:[%s170 + $0x70] sm:$0xff] %vm325, %v311
      %342 = vst.msk [vmem:[%s170 + $0x78] sm:$0x3f] %vm327, %v312
      %343 = vst.msk [vmem:[%s170 + $0x80] sm:$0xff] %vm325, %v313
      %344 = vst.msk [vmem:[%s170 + $0x88] sm:$0x3f] %vm327, %v314
      %345 = vst.msk [vmem:[%s170 + $0x90] sm:$0xff] %vm325, %v315
      %346 = vst.msk [vmem:[%s170 + $0x98] sm:$0x3f] %vm327, %v316
      %347 = vst.msk [vmem:[%s170 + $0xa0] sm:$0xff] %vm325, %v317
      %348 = vst.msk [vmem:[%s170 + $0xa8] sm:$0x3f] %vm327, %v318
      %349 = vst.msk [vmem:[%s170 + $0xb0] sm:$0xff] %vm325, %v319
      %350 = vst.msk [vmem:[%s170 + $0xb8] sm:$0x3f] %vm327, %v320
      %351 = vst.msk [vmem:[%s170 + $0xc0] sm:$0xff] %vm325, %v321
      %352 = vst.msk [vmem:[%s170 + $0xc8] sm:$0x3f] %vm327, %v322
      %353 = vst.msk [vmem:[%s170 + $0xd0] sm:$0xff] %vm325, %v323
      %354 = vst.msk [vmem:[%s170 + $0xd8] sm:$0x3f] %vm327, %v324
      %p355 = scmp.lt.s32.totalorder %s14, 1
      %s356 = scalar_select %p355, %s14, 1
      %s357 = smul.addr %s356, 28
      %s358 = smul.addr %s357, 8
      %s359 = scalar_lea.vmem %s3, %s358
      // Predicated region
      $region33: #{conv_bn_relu.3} parent=31 // pred_check
        %p360 = pneg %p100
      $region34: #{conv_bn_relu.3} parent=31 // pred_check_branch
        %362 = sbr.rel (%p360) target = $region36
      $region35: #{conv_bn_relu.3} parent=31 // pred_region
        _
      $region36: #{conv_bn_relu.3} parent=31 // pred_fallthru
        _
    $region32: #{conv_bn_relu.3} parent=5 // pred_fallthru
      _
    %p363 = scmp.le.s32.totalorder 2, %s9
    // Predicated region
    $region37: #{conv_bn_relu.3} parent=5 // pred_check
      %p364 = pneg %p363
    $region38: #{conv_bn_relu.3} parent=5 // pred_check_branch
      %366 = sbr.rel (%p364) target = $region40
    $region39: #{conv_bn_relu.3} parent=5 // pred_region
      %s367 = ssub.s32 %s9, 2
      // Predicated region
      $region41: #{conv_bn_relu.3} parent=39 // pred_check
        %p368 = pneg %p106
      $region42: #{conv_bn_relu.3} parent=39 // pred_check_branch
        %370 = sbr.rel (%p368) target = $region44
      $region43: #{conv_bn_relu.3} parent=39 // pred_region
        %p371 = scmp.lt.s32.totalorder %s15, 1
        %s372 = scalar_select %p371, %s15, 1
        %s373 = smul.addr %s372, 28
        %s374 = smul.addr %s373, 8
        %s375 = scalar_lea.vmem %s3, %s374
      $region44: #{conv_bn_relu.3} parent=39 // pred_fallthru
        _
    $region40: #{conv_bn_relu.3} parent=5 // pred_fallthru
      _
  $region6: #{conv_bn_relu.3} parent=0 // loop_footer
    %s13 = sadd.s32 1, %s9
  $region7: #{conv_bn_relu.3} parent=0 // loop_footer_branch
    %8 = sbr.rel target = $region3
  $region8: #{conv_bn_relu.3} parent=0 // loop_exit
    _

// kernel: conv_bn_relu.2
$region0: #{conv_bn_relu.2}
  #allocation0 [shape = 'u32[]', space=smem, size = 0x4, offset = 0x4, fixed_abs, tag = 'smem constant byte address 0x4 - core index']
  #allocation1 [shape = 'u32[144,128]{1,0:T(1,128)}', space=vmem, size = 0x12000, scoped, tag = 'internal scratch']
  %s0 = inlined_call_operand.vmem [shape: bf16[2,16,16,4], index: 0, kind: input, shape index: {}]
  %s1 = inlined_call_operand.vmem [shape: bf16[36,8], index: 1, kind: input, shape index: {}]
  %s2 = inlined_call_operand.vmem [shape: bf16[2,14,14,8], index: 2, kind: output, shape index: {0}]
  %s3 = inlined_call_operand.vmem [shape: f32[2,1,8], index: 3, kind: output, shape index: {1}]
  %s4 = inlined_call_operand.vmem [shape: f32[2,1,8], index: 4, kind: output, shape index: {2}]
  %5 = xla_tuple %s2, %s3, %s4
  %s6 = sld [smem:[#allocation0]]
  $region57: #{conv_bn_relu.2} parent=0
    _
  %s8 = ssub.s32 1, %s6
  %s9 = scalar_select 0, %s8, %s6
  loop: start=0, step=1, limit=4
  $region2: #{conv_bn_relu.2} parent=0 // loop_pre_header
    _
  $region3: #{conv_bn_relu.2} parent=0 // loop_header
    %s11 = sphi 0, %s15
    %p12 = scmp.ge.s32.totalorder %s11, 4
    %s21 = sphi 0, %s23
    %s24 = sphi 0, %s21
    %s25 = sphi 0, %s24
    %s41 = sphi 0, %s25
    %s45 = sphi 0, %s45
    %s47 = sphi 0, %s45
    %s48 = sphi 0, %s47
    %s62 = sphi 0, %s48
    %s68 = sphi 0, %s70
    %s71 = sphi 0, %s68
    %s72 = sphi 0, %s71
    %s88 = sphi 0, %s72
    %s94 = sphi 0, %s96
    %s97 = sphi 0, %s94
    %s98 = sphi 0, %s97
    %s114 = sphi 0, %s98
    %s120 = sphi 0, %s122
    %s123 = sphi 0, %s120
    %s124 = sphi 0, %s123
    %s140 = sphi 0, %s124
  $region4: #{conv_bn_relu.2} parent=0 // loop_header_branch
    %14 = sbr.rel (%p12) target = $region8
  $region5: #{conv_bn_relu.2} parent=0 // loop_body
    %s16 = ssub.s32 %s11, 1
    %s17 = ssub.s32 %s11, 2
    %s18 = sadd.s32 %s11, 1
    %s19 = ssub.s32 %s11, %s18
    %p20 = scmp.eq.s32.totalorder %s19, 0
    %s22 = sadd.s32 %s21, 1
    %s23 = scalar_select %p20, %s21, %s22
    %p26 = pneg %p20
    %p27 = scmp.eq.s32.totalorder %s11, 1
    %p28 = por %p26, %p27
    %p29 = scmp.ne.s32.totalorder %s21, %s24
    %p30 = scmp.eq.s32.totalorder %s11, 0
    %p31 = por %p29, %p30
    %p32 = scmp.ne.s32.totalorder %s21, %s24
    %p33 = scmp.eq.s32.totalorder %s16, 1
    %p34 = por %p32, %p33
    %p35 = scmp.ne.s32.totalorder %s24, %s25
    %p36 = scmp.eq.s32.totalorder %s16, 0
    %p37 = por %p35, %p36
    %p38 = scmp.ne.s32.totalorder %s24, %s25
    %p39 = scmp.eq.s32.totalorder %s17, 1
    %p40 = por %p38, %p39
    %p42 = scmp.ne.s32.totalorder %s25, %s41
    %p43 = scmp.eq.s32.totalorder %s17, 0
    %p44 = por %p42, %p43
    %s46 = sadd.s32 %s45, 1
    %p49 = scmp.eq.s32.totalorder %s11, 1
    %p50 = scmp.ne.s32.totalorder %s45, %s47
    %p51 = scmp.eq.s32.totalorder %s11, 0
    %p52 = por %p50, %p51
    %p53 = scmp.ne.s32.totalorder %s45, %s47
    %p54 = scmp.eq.s32.totalorder %s16, 1
    %p55 = por %p53, %p54
    %p56 = scmp.ne.s32.totalorder %s47, %s48
    %p57 = scmp.eq.s32.totalorder %s16, 0
    %p58 = por %p56, %p57
    %p59 = scmp.ne.s32.totalorder %s47, %s48
    %p60 = scmp.eq.s32.totalorder %s17, 1
    %p61 = por %p59, %p60
    %p63 = scmp.ne.s32.totalorder %s48, %s62
    %p64 = scmp.eq.s32.totalorder %s17, 0
    %p65 = por %p63, %p64
    %s66 = ssub.s32 %s11, %s18
    %p67 = scmp.eq.s32.totalorder %s66, 0
    %s69 = sadd.s32 %s68, 1
    %s70 = scalar_select %p67, %s68, %s69
    %p73 = pneg %p67
    %p74 = scmp.eq.s32.totalorder %s11, 1
    %p75 = por %p73, %p74
    %p76 = scmp.ne.s32.totalorder %s68, %s71
    %p77 = scmp.eq.s32.totalorder %s11, 0
    %p78 = por %p76, %p77
    %p79 = scmp.ne.s32.totalorder %s68, %s71
    %p80 = scmp.eq.s32.totalorder %s16, 1
    %p81 = por %p79, %p80
    %p82 = scmp.ne.s32.totalorder %s71, %s72
    %p83 = scmp.eq.s32.totalorder %s16, 0
    %p84 = por %p82, %p83
    %p85 = scmp.ne.s32.totalorder %s71, %s72
    %p86 = scmp.eq.s32.totalorder %s17, 1
    %p87 = por %p85, %p86
    %p89 = scmp.ne.s32.totalorder %s72, %s88
    %p90 = scmp.eq.s32.totalorder %s17, 0
    %p91 = por %p89, %p90
    %s92 = ssub.s32 %s11, %s18
    %p93 = scmp.eq.s32.totalorder %s92, 0
    %s95 = sadd.s32 %s94, 1
    %s96 = scalar_select %p93, %s94, %s95
    %p99 = pneg %p93
    %p100 = scmp.eq.s32.totalorder %s11, 1
    %p101 = por %p99, %p100
    %p102 = scmp.ne.s32.totalorder %s94, %s97
    %p103 = scmp.eq.s32.totalorder %s11, 0
    %p104 = por %p102, %p103
    %p105 = scmp.ne.s32.totalorder %s94, %s97
    %p106 = scmp.eq.s32.totalorder %s16, 1
    %p107 = por %p105, %p106
    %p108 = scmp.ne.s32.totalorder %s97, %s98
    %p109 = scmp.eq.s32.totalorder %s16, 0
    %p110 = por %p108, %p109
    %p111 = scmp.ne.s32.totalorder %s97, %s98
    %p112 = scmp.eq.s32.totalorder %s17, 1
    %p113 = por %p111, %p112
    %p115 = scmp.ne.s32.totalorder %s98, %s114
    %p116 = scmp.eq.s32.totalorder %s17, 0
    %p117 = por %p115, %p116
    %s118 = ssub.s32 %s11, %s18
    %p119 = scmp.eq.s32.totalorder %s118, 0
    %s121 = sadd.s32 %s120, 1
    %s122 = scalar_select %p119, %s120, %s121
    %p125 = pneg %p119
    %p126 = scmp.eq.s32.totalorder %s11, 1
    %p127 = por %p125, %p126
    %p128 = scmp.ne.s32.totalorder %s120, %s123
    %p129 = scmp.eq.s32.totalorder %s11, 0
    %p130 = por %p128, %p129
    %p131 = scmp.ne.s32.totalorder %s120, %s123
    %p132 = scmp.eq.s32.totalorder %s16, 1
    %p133 = por %p131, %p132
    %p134 = scmp.ne.s32.totalorder %s123, %s124
    %p135 = scmp.eq.s32.totalorder %s16, 0
    %p136 = por %p134, %p135
    %p137 = scmp.ne.s32.totalorder %s123, %s124
    %p138 = scmp.eq.s32.totalorder %s17, 1
    %p139 = por %p137, %p138
    %p141 = scmp.ne.s32.totalorder %s124, %s140
    %p142 = scmp.eq.s32.totalorder %s17, 0
    %p143 = por %p141, %p142
    %p144 = scmp.le.s32.totalorder 1, %s11
    %p145 = scmp.lt.s32.totalorder %s11, 3
    %p146 = pnand %p144, %p145
    %p147 = pneg %p146
    // Predicated region
    $region9: #{conv_bn_relu.2} parent=5 // pred_check
      _
    $region10: #{conv_bn_relu.2} parent=5 // pred_check_branch
      %149 = sbr.rel (%p146) target = $region12
    $region11: #{conv_bn_relu.2} parent=5 // pred_region
      %s150 = ssub.s32 %s11, 1
      // Predicated region
      $region13: #{conv_bn_relu.2} parent=11 // pred_check
        %p151 = pneg %p58
      $region14: #{conv_bn_relu.2} parent=11 // pred_check_branch
        %153 = sbr.rel (%p151) target = $region16
      $region15: #{conv_bn_relu.2} parent=11 // pred_region
        _
      $region16: #{conv_bn_relu.2} parent=11 // pred_fallthru
        _
    $region12: #{conv_bn_relu.2} parent=5 // pred_fallthru
      _
    %p154 = scmp.lt.s32.totalorder %s11, 2
    // Predicated region
    $region17: #{conv_bn_relu.2} parent=5 // pred_check
      %p155 = pneg %p154
    $region18: #{conv_bn_relu.2} parent=5 // pred_check_branch
      %157 = sbr.rel (%p155) target = $region20
    $region19: #{conv_bn_relu.2} parent=5 // pred_region
      // Predicated region
      $region21: #{conv_bn_relu.2} parent=19 // pred_check
        %p158 = pneg %p31
      $region22: #{conv_bn_relu.2} parent=19 // pred_check_branch
        %160 = sbr.rel (%p158) target = $region24
      $region23: #{conv_bn_relu.2} parent=19 // pred_region
        %p161 = scmp.lt.s32.totalorder %s11, 1
        %s162 = scalar_select %p161, %s11, 1
        %s163 = smul.addr %s162, 32
        %s164 = smul.addr %s163, 4
        %s165 = scalar_lea.vmem %s0, %s164
      $region24: #{conv_bn_relu.2} parent=19 // pred_fallthru
        _
    $region20: #{conv_bn_relu.2} parent=5 // pred_fallthru
      _
    %p166 = scmp.le.s32.totalorder 1, %s11
    %p167 = scmp.lt.s32.totalorder %s11, 3
    %p168 = pnand %p166, %p167
    %p169 = pneg %p168
    // Predicated region
    $region25: #{conv_bn_relu.2} parent=5 // pred_check
      _
    $region26: #{conv_bn_relu.2} parent=5 // pred_check_branch
      %171 = sbr.rel (%p168) target = $region28
    $region27: #{conv_bn_relu.2} parent=5 // pred_region
      %s172 = ssub.s32 %s11, 1
      %p173 = scmp.lt.s32.totalorder %s16, 1
      %s174 = scalar_select %p173, %s16, 1
      %s175 = smul.addr %s174, 32
      %s176 = smul.addr %s175, 4
      %s177 = scalar_lea.vmem %s0, %s176
      %p178 = pneg %p37
      %p179 = pneg %p34
      %p180 = pneg %p58
      %p181 = pneg %p55
      %p182 = pneg %p84
      %p183 = pneg %p81
      %p184 = scmp.lt.s32.totalorder %s16, 1
      %s185 = scalar_select %p184, %s16, 1
      %s186 = smul.addr %s185, 28
      %s187 = smul.addr %s186, 4
      %s188 = scalar_lea.vmem %s2, %s187
      %p189 = pneg %p110
      %p190 = pneg %p107
      %p191 = scmp.lt.s32.totalorder %s16, 1
      %s192 = scalar_select %p191, %s16, 1
      %s193 = scalar_lea.vmem %s3, %s192
      %p194 = pneg %p136
      %p195 = pneg %p133
      %p196 = scmp.lt.s32.totalorder %s16, 1
      %s197 = scalar_select %p196, %s16, 1
      %s198 = scalar_lea.vmem %s4, %s197
      %p199 = scmp.lt.s32.totalorder %s16, 1
      %s200 = scalar_select %p199, %s16, 1
      %s201 = smul.addr %s200, 32
      %s202 = smul.addr %s201, 4
      %s203 = scalar_lea.vmem %s0, %s202
      %p204 = scmp.lt.s32.totalorder %s16, 1
      %s205 = scalar_select %p204, %s16, 1
      %s206 = smul.addr %s205, 28
      %s207 = smul.addr %s206, 4
      %s208 = scalar_lea.vmem %s2, %s207
      %p209 = scmp.lt.s32.totalorder %s16, 1
      %s210 = scalar_select %p209, %s16, 1
      %s211 = scalar_lea.vmem %s3, %s210
      %p212 = scmp.lt.s32.totalorder %s16, 1
      %s213 = scalar_select %p212, %s16, 1
      %s214 = scalar_lea.vmem %s4, %s213
      %v216 = vld [vmem:[%s1] sm:$0xf]
      %v217 = vld [vmem:[%s1 + $0x4] sm:$0xf]
      %v218 = vld [vmem:[%s1 + $0x8] sm:$0xf]
      %v219 = vld [vmem:[%s1 + $0xc] sm:$0xf]
      %v220 = vld [vmem:[%s1 + $0x10] sm:$0x3]
      %v221 = vld [vmem:[%s203] sm:$0xf]
      %v222 = vld [vmem:[%s203 + $0x4] sm:$0xf]
      %s223 = scalar_lea.vmem %s203, 8
      %v224 = vld [vmem:[%s223] sm:$0xf]
      %v225 = vld [vmem:[%s223 + $0x4] sm:$0xf]
      %s226 = scalar_lea.vmem %s203, 16
      %v227 = vld [vmem:[%s226] sm:$0xf]
      %v228 = vld [vmem:[%s226 + $0x4] sm:$0xf]
      %v231 = vunpack.c.l.b16 %v221
      %v232 = vunpack.c.l.b16 %v222
      %v233 = vpack.c.b16 %v232, %v231
      %v235 = vshrl.u32 %v233, 16
      %v237 = vshll.u32 %v233, 16
      %v239 = vrot.slane %v237, 1
      %v240 = vor.u32 %v235, %v239
      %241 = vrot.lane.b32.xlu0 %v240, 4
      %v242 = vpop.permute.xlu0 %241
      %v243 = vrot.slane %v233, 1
      %244 = vrot.lane.b32.xlu0 %v243, 8
      %v245 = vpop.permute.xlu0 %244
      %v248 = vunpack.c.l.b16 %v224
      %v249 = vunpack.c.l.b16 %v225
      %v250 = vpack.c.b16 %v249, %v248
      %251 = vrot.lane.b32.xlu0 %v250, 12
      %v252 = vpop.permute.xlu0 %251
      %v254 = vshrl.u32 %v250, 16
      %v256 = vshll.u32 %v250, 16
      %v258 = vrot.slane %v256, 1
      %v259 = vor.u32 %v254, %v258
      %260 = vrot.lane.b32.xlu0 %v259, 16
      %v261 = vpop.permute.xlu0 %260
      %v262 = vrot.slane %v250, 1
      %263 = vrot.lane.b32.xlu0 %v262, 20
      %v264 = vpop.permute.xlu0 %263
      %v267 = vunpack.c.l.b16 %v227
      %v268 = vunpack.c.l.b16 %v228
      %v269 = vpack.c.b16 %v268, %v267
      %270 = vrot.lane.b32.xlu0 %v269, 24
      %v271 = vpop.permute.xlu0 %270
      %v273 = vshrl.u32 %v269, 16
      %v275 = vshll.u32 %v269, 16
      %v277 = vrot.slane %v275, 1
      %v278 = vor.u32 %v273, %v277
      %279 = vrot.lane.b32.xlu0 %v278, 28
      %v280 = vpop.permute.xlu0 %279
      %v281 = vrot.slane %v269, 1
      %282 = vrot.lane.b32.xlu0 %v281, 32
      %v283 = vpop.permute.xlu0 %282
      %vm284 = vcmask 31744
      %v286 = vsel %vm284, %v233, %v242
      %vm287 = vcmask 64512
      %v289 = vsel %vm287, %v286, %v245
      %vm290 = vcmask 97280
      %v292 = vsel %vm290, %v289, %v252
      %vm293 = vcmask 130048
      %v295 = vsel %vm293, %v292, %v261
      %vm296 = vcmask 162816
      %v298 = vsel %vm296, %v295, %v264
      %vm299 = vcmask 195584
      %v301 = vsel %vm299, %v298, %v271
      %vm302 = vcmask 228352
      %v304 = vsel %vm302, %v301, %v280
      %vm305 = vcmask 261120
      %v307 = vsel %vm305, %v304, %v283
      %v313 = vunpack.c.l.b16 %v216
      %v314 = vunpack.c.l.b16 %v217
      %v315 = vunpack.c.l.b16 %v218
      %v316 = vunpack.c.l.b16 %v219
      %v317 = vunpack.c.l.b16 %v220
      %v318 = vpack.c.b16 %v314, %v313
      %v319 = vpack.c.b16 %v316, %v315
      %v320 = vpack.c.b16 %v317, %v317
      %vm323 = vcmask 293888
      %v324 = vsel %vm323, %v307, 0
      %vm326 = vcmask 1041408
      %v328 = vsel %vm326, %v320, 0
      %330 = vmatprep.subr.bf16.mxu0 0
      %331 = vmatpush1.bf16.msra.mxu0 %v318
      %332 = vmatprep.subr.bf16.mxu0 0
      %333 = vmatpush1.bf16.msra.mxu0 %v319
      %334 = vmatprep.subr.bf16.mxu0 0
      %335 = vmatpush1.bf16.msra.mxu0 %v328
      %336 = vmatprep.subr.bf16.mxu0 0
      %337 = vmatpush1.bf16.msra.mxu0 0
      %338 = vmatprep.subr.bf16.mxu0 0
      %339 = vmatpush1.bf16.msra.mxu0 0
      %340 = vmatprep.subr.bf16.mxu0 0
      %341 = vmatpush1.bf16.msra.mxu0 0
      %342 = vmatprep.subr.bf16.mxu0 0
      %343 = vmatpush1.bf16.msra.mxu0 0
      %344 = vmatprep.subr.bf16.mxu0 0
      %345 = vmatpush1.bf16.msra.mxu0 0
      %346 = vmatprep.subr.bf16.mxu0 0
      %347 = vmatpush1.bf16.msra.mxu0 0
      %348 = vmatprep.subr.bf16.mxu0 0
      %349 = vmatpush1.bf16.msra.mxu0 0
      %350 = vmatprep.subr.bf16.mxu0 0
      %351 = vmatpush1.bf16.msra.mxu0 0
      %352 = vmatprep.subr.bf16.mxu0 0
      %353 = vmatpush1.bf16.msra.mxu0 0
      %354 = vmatprep.subr.bf16.mxu0 0
      %355 = vmatpush1.bf16.msra.mxu0 0
      %356 = vmatprep.subr.bf16.mxu0 0
      %357 = vmatpush1.bf16.msra.mxu0 0
      %358 = vmatprep.subr.bf16.mxu0 0
      %359 = vmatpush1.bf16.msra.mxu0 0
      %360 = vmatprep.subr.bf16.mxu0 0
      %361 = vmatpush1.bf16.msra.mxu0 0
      %362 = vmatprep.mubr.bf16.mxu0 0
      %363 = vmatmul.mubr.bf16.gmra.mrb[0].mxu0 %v324
      %v364 = vpop.f32.mrb[0].mxu0
      %v365 = vadd.f32 0.0, %v364
      %v366 = vpop.f32.mrb[0].mxu0
      %v367 = vpop.f32.mrb[0].mxu0
      %v368 = vadd.f32 0.0, %v367
      %v369 = vpop.f32.mrb[0].mxu0
      %370 = vdwg.mxu0
      %v371 = vpack.c.bf16 %v368, %v365
      %v373 = vunpack.c.l.b16 %v371
      %v374 = vunpack.c.h.b16 %v371
      %v375 = vpack.c.b16 %v373, %v373
      %v376 = vpack.c.b16 %v374, %v374
      %vm379 = vcmask 60416
      %380 = vst.msk [vmem:[%s208] sm:$0xf] %vm379, %v375
      %vm381 = vcmask 59392
      %382 = vst.msk [vmem:[%s208 + $0x4] sm:$0x7] %vm381, %v376
      %v383 = vsel %vm287, %v365, 0.0
      %vm384 = vcmask 62464
      %v385 = vsel %vm384, %v368, 0.0
      %v386 = vadd.f32 %v383, %v385
      %v387 = vrot.slane %v386, 4
      %v388 = vadd.f32 %v386, %v387
      %v389 = vrot.slane %v388, 2
      %v390 = vadd.f32 %v388, %v389
      %v391 = vrot.slane %v390, 1
      %v392 = vadd.f32 %v390, %v391
      %v393 = vadd.f32 %v392, 0.0
      %v394 = vmul.f32 %v365, %v365
      %v395 = vmul.f32 %v368, %v368
      %v396 = vsel %vm287, %v394, 0.0
      %v397 = vsel %vm384, %v395, 0.0
      %v398 = vadd.f32 %v396, %v397
      %v399 = vrot.slane %v398, 4
      %v400 = vadd.f32 %v398, %v399
      %v401 = vrot.slane %v400, 2
      %v402 = vadd.f32 %v400, %v401
      %v403 = vrot.slane %v402, 1
      %v404 = vadd.f32 %v402, %v403
      %v405 = vadd.f32 %v404, 0.0
      %v406 = vld [vmem:[%s223] sm:$0xf]
      %v407 = vld [vmem:[%s223 + $0x4] sm:$0xf]
      %v408 = vld [vmem:[%s226] sm:$0xf]
      %v409 = vld [vmem:[%s226 + $0x4] sm:$0xf]
      %s410 = scalar_lea.vmem %s203, 24
      %v411 = vld [vmem:[%s410] sm:$0xf]
      %v412 = vld [vmem:[%s410 + $0x4] sm:$0xf]
      %v415 = vunpack.c.l.b16 %v406
      %v416 = vunpack.c.l.b16 %v407
      %v417 = vpack.c.b16 %v416, %v415
      %v419 = vshrl.u32 %v417, 16
      %v421 = vshll.u32 %v417, 16
      %v423 = vrot.slane %v421, 1
      %v424 = vor.u32 %v419, %v423
      %425 = vrot.lane.b32.xlu0 %v424, 4
      %v426 = vpop.permute.xlu0 %425
      %v427 = vrot.slane %v417, 1
      %428 = vrot.lane.b32.xlu0 %v427, 8
      %v429 = vpop.permute.xlu0 %428
      %v432 = vunpack.c.l.b16 %v408
      %v433 = vunpack.c.l.b16 %v409
      %v434 = vpack.c.b16 %v433, %v432
      %435 = vrot.lane.b32.xlu0 %v434, 12
      %v436 = vpop.permute.xlu0 %435
      %v438 = vshrl.u32 %v434, 16
      %v440 = vshll.u32 %v434, 16
      %v442 = vrot.slane %v440, 1
      %v443 = vor.u32 %v438, %v442
      %444 = vrot.lane.b32.xlu0 %v443, 16
      %v445 = vpop.permute.xlu0 %444
      %v446 = vrot.slane %v434, 1
      %447 = vrot.lane.b32.xlu0 %v446, 20
      %v448 = vpop.permute.xlu0 %447
      %v451 = vunpack.c.l.b16 %v411
      %v452 = vunpack.c.l.b16 %v412
      %v453 = vpack.c.b16 %v452, %v451
      %454 = vrot.lane.b32.xlu0 %v453, 24
      %v455 = vpop.permute.xlu0 %454
      %v457 = vshrl.u32 %v453, 16
      %v459 = vshll.u32 %v453, 16
      %v461 = vrot.slane %v459, 1
      %v462 = vor.u32 %v457, %v461
      %463 = vrot.lane.b32.xlu0 %v462, 28
      %v464 = vpop.permute.xlu0 %463
      %v465 = vrot.slane %v453, 1
      %466 = vrot.lane.b32.xlu0 %v465, 32
      %v467 = vpop.permute.xlu0 %466
      %v469 = vsel %vm284, %v417, %v426
      %v471 = vsel %vm287, %v469, %v429
      %v473 = vsel %vm290, %v471, %v436
      %v475 = vsel %vm293, %v473, %v445
      %v477 = vsel %vm296, %v475, %v448
      %v479 = vsel %vm299, %v477, %v455
      %v481 = vsel %vm302, %v479, %v464
      %v483 = vsel %vm305, %v481, %v467
      %v484 = vsel %vm323, %v483, 0
      %486 = vmatprep.subr.bf16.mxu0 0
      %487 = vmatpush1.bf16.msra.mxu0 %v318
      %488 = vmatprep.subr.bf16.mxu0 0
      %489 = vmatpush1.bf16.msra.mxu0 %v319
      %490 = vmatprep.subr.bf16.mxu0 0
      %491 = vmatpush1.bf16.msra.mxu0 %v328
      %492 = vmatprep.subr.bf16.mxu0 0
      %493 = vmatpush1.bf16.msra.mxu0 0
      %494 = vmatprep.subr.bf16.mxu0 0
      %495 = vmatpush1.bf16.msra.mxu0 0
      %496 = vmatprep.subr.bf16.mxu0 0
      %497 = vmatpush1.bf16.msra.mxu0 0
      %498 = vmatprep.subr.bf16.mxu0 0
      %499 = vmatpush1.bf16.msra.mxu0 0
      %500 = vmatprep.subr.bf16.mxu0 0
      %501 = vmatpush1.bf16.msra.mxu0 0
      %502 = vmatprep.subr.bf16.mxu0 0
      %503 = vmatpush1.bf16.msra.mxu0 0
      %504 = vmatprep.subr.bf16.mxu0 0
      %505 = vmatpush1.bf16.msra.mxu0 0
      %506 = vmatprep.subr.bf16.mxu0 0
      %507 = vmatpush1.bf16.msra.mxu0 0
      %508 = vmatprep.subr.bf16.mxu0 0
      %509 = vmatpush1.bf16.msra.mxu0 0
      %510 = vmatprep.subr.bf16.mxu0 0
      %511 = vmatpush1.bf16.msra.mxu0 0
      %512 = vmatprep.subr.bf16.mxu0 0
      %513 = vmatpush1.bf16.msra.mxu0 0
      %514 = vmatprep.subr.bf16.mxu0 0
      %515 = vmatpush1.bf16.msra.mxu0 0
      %516 = vmatprep.subr.bf16.mxu0 0
      %517 = vmatpush1.bf16.msra.mxu0 0
      %518 = vmatprep.mubr.bf16.mxu0 0
      %519 = vmatmul.mubr.bf16.gmra.mrb[0].mxu0 %v484
      %v520 = vpop.f32.mrb[0].mxu0
      %v521 = vadd.f32 0.0, %v520
      %v522 = vpop.f32.mrb[0].mxu0
      %v523 = vpop.f32.mrb[0].mxu0
      %v524 = vadd.f32 0.0, %v523
      %v525 = vpop.f32.mrb[0].mxu0
      %526 = vdwg.mxu0
      %v527 = vpack.c.bf16 %v524, %v521
      %v529 = vunpack.c.l.b16 %v527
      %v530 = vunpack.c.h.b16 %v527
      %v531 = vpack.c.b16 %v529, %v529
      %v532 = vpack.c.b16 %v530, %v530
      %s535 = scalar_lea.vmem %s208, 8
      %536 = vst.msk [vmem:[%s535] sm:$0xf] %vm379, %v531
      %537 = vst.msk [vmem:[%s535 + $0x4] sm:$0x7] %vm381, %v532
      %v538 = vsel %vm287, %v521, 0.0
      %v539 = vsel %vm384, %v524, 0.0
      %v540 = vadd.f32 %v538, %v539
      %v541 = vrot.slane %v540, 4
      %v542 = vadd.f32 %v540, %v541
      %v543 = vrot.slane %v542, 2
      %v544 = vadd.f32 %v542, %v543
      %v545 = vrot.slane %v544, 1
      %v546 = vadd.f32 %v544, %v545
      %v547 = vadd.f32 %v393, %v546
      %v548 = vmul.f32 %v521, %v521
      %v549 = vmul.f32 %v524, %v524
      %v550 = vsel %vm287, %v548, 0.0
      %v551 = vsel %vm384, %v549, 0.0
      %v552 = vadd.f32 %v550, %v551
      %v553 = vrot.slane %v552, 4
      %v554 = vadd.f32 %v552, %v553
      %v555 = vrot.slane %v554, 2
      %v556 = vadd.f32 %v554, %v555
      %v557 = vrot.slane %v556, 1
      %v558 = vadd.f32 %v556, %v557
      %v559 = vadd.f32 %v405, %v558
      %v560 = vld [vmem:[%s226] sm:$0xf]
      %v561 = vld [vmem:[%s226 + $0x4] sm:$0xf]
      %v562 = vld [vmem:[%s410] sm:$0xf]
      %v563 = vld [vmem:[%s410 + $0x4] sm:$0xf]
      %s564 = scalar_lea.vmem %s203, 32
      %v565 = vld [vmem:[%s564] sm:$0xf]
      %v566 = vld [vmem:[%s564 + $0x4] sm:$0xf]
      %v569 = vunpack.c.l.b16 %v560
      %v570 = vunpack.c.l.b16 %v561
      %v571 = vpack.c.b16 %v570, %v569
      %v573 = vshrl.u32 %v571, 16
      %v575 = vshll.u32 %v571, 16
      %v577 = vrot.slane %v575, 1
      %v578 = vor.u32 %v573, %v577
      %579 = vrot.lane.b32.xlu0 %v578, 4
      %v580 = vpop.permute.xlu0 %579
      %v581 = vrot.slane %v571, 1
      %582 = vrot.lane.b32.xlu0 %v581, 8
      %v583 = vpop.permute.xlu0 %582
      %v586 = vunpack.c.l.b16 %v562
      %v587 = vunpack.c.l.b16 %v563
      %v588 = vpack.c.b16 %v587, %v586
      %589 = vrot.lane.b32.xlu0 %v588, 12
      %v590 = vpop.permute.xlu0 %589
      %v592 = vshrl.u32 %v588, 16
      %v594 = vshll.u32 %v588, 16
      %v596 = vrot.slane %v594, 1
      %v597 = vor.u32 %v592, %v596
      %598 = vrot.lane.b32.xlu0 %v597, 16
      %v599 = vpop.permute.xlu0 %598
      %v600 = vrot.slane %v588, 1
      %601 = vrot.lane.b32.xlu0 %v600, 20
      %v602 = vpop.permute.xlu0 %601
      %v605 = vunpack.c.l.b16 %v565
      %v606 = vunpack.c.l.b16 %v566
      %v607 = vpack.c.b16 %v606, %v605
      %608 = vrot.lane.b32.xlu0 %v607, 24
      %v609 = vpop.permute.xlu0 %608
      %v611 = vshrl.u32 %v607, 16
      %v613 = vshll.u32 %v607, 16
      %v615 = vrot.slane %v613, 1
      %v616 = vor.u32 %v611, %v615
      %617 = vrot.lane.b32.xlu0 %v616, 28
      %v618 = vpop.permute.xlu0 %617
      %v619 = vrot.slane %v607, 1
      %620 = vrot.lane.b32.xlu0 %v619, 32
      %v621 = vpop.permute.xlu0 %620
      %v623 = vsel %vm284, %v571, %v580
      %v625 = vsel %vm287, %v623, %v583
      %v627 = vsel %vm290, %v625, %v590
      %v629 = vsel %vm293, %v627, %v599
      %v631 = vsel %vm296, %v629, %v602
      %v633 = vsel %vm299, %v631, %v609
      %v635 = vsel %vm302, %v633, %v618
      %v637 = vsel %vm305, %v635, %v621
      %v638 = vsel %vm323, %v637, 0
      %640 = vmatprep.subr.bf16.mxu0 0
      %641 = vmatpush1.bf16.msra.mxu0 %v318
      %642 = vmatprep.subr.bf16.mxu0 0
      %643 = vmatpush1.bf16.msra.mxu0 %v319
      %644 = vmatprep.subr.bf16.mxu0 0
      %645 = vmatpush1.bf16.msra.mxu0 %v328
      %646 = vmatprep.subr.bf16.mxu0 0
      %647 = vmatpush1.bf16.msra.mxu0 0
      %648 = vmatprep.subr.bf16.mxu0 0
      %649 = vmatpush1.bf16.msra.mxu0 0
      %650 = vmatprep.subr.bf16.mxu0 0
      %651 = vmatpush1.bf16.msra.mxu0 0
      %652 = vmatprep.subr.bf16.mxu0 0
      %653 = vmatpush1.bf16.msra.mxu0 0
      %654 = vmatprep.subr.bf16.mxu0 0
      %655 = vmatpush1.bf16.msra.mxu0 0
      %656 = vmatprep.subr.bf16.mxu0 0
      %657 = vmatpush1.bf16.msra.mxu0 0
      %658 = vmatprep.subr.bf16.mxu0 0
      %659 = vmatpush1.bf16.msra.mxu0 0
      %660 = vmatprep.subr.bf16.mxu0 0
      %661 = vmatpush1.bf16.msra.mxu0 0
      %662 = vmatprep.subr.bf16.mxu0 0
      %663 = vmatpush1.bf16.msra.mxu0 0
      %664 = vmatprep.subr.bf16.mxu0 0
      %665 = vmatpush1.bf16.msra.mxu0 0
      %666 = vmatprep.subr.bf16.mxu0 0
      %667 = vmatpush1.bf16.msra.mxu0 0
      %668 = vmatprep.subr.bf16.mxu0 0
      %669 = vmatpush1.bf16.msra.mxu0 0
      %670 = vmatprep.subr.bf16.mxu0 0
      %671 = vmatpush1.bf16.msra.mxu0 0
      %672 = vmatprep.mubr.bf16.mxu0 0
      %673 = vmatmul.mubr.bf16.gmra.mrb[0].mxu0 %v638
      %v674 = vpop.f32.mrb[0].mxu0
      %v675 = vadd.f32 0.0, %v674
      %v676 = vpop.f32.mrb[0].mxu0
      %v677 = vpop.f32.mrb[0].mxu0
      %v678 = vadd.f32 0.0, %v677
      %v679 = vpop.f32.mrb[0].mxu0
      %680 = vdwg.mxu0
      %v681 = vpack.c.bf16 %v678, %v675
      %v683 = vunpack.c.l.b16 %v681
      %v684 = vunpack.c.h.b16 %v681
      %v685 = vpack.c.b16 %v683, %v683
      %v686 = vpack.c.b16 %v684, %v684
      %s689 = scalar_lea.vmem %s208, 16
      %690 = vst.msk [vmem:[%s689] sm:$0xf] %vm379, %v685
      %691 = vst.msk [vmem:[%s689 + $0x4] sm:$0x7] %vm381, %v686
      %v692 = vsel %vm287, %v675, 0.0
      %v693 = vsel %vm384, %v678, 0.0
      %v694 = vadd.f32 %v692, %v693
      %v695 = vrot.slane %v694, 4
      %v696 = vadd.f32 %v694, %v695
      %v697 = vrot.slane %v696, 2
      %v698 = vadd.f32 %v696, %v697
      %v699 = vrot.slane %v698, 1
      %v700 = vadd.f32 %v698, %v699
      %v701 = vadd.f32 %v547, %v700
      %v702 = vmul.f32 %v675, %v675
      %v703 = vmul.f32 %v678, %v678
      %v704 = vsel %vm287, %v702, 0.0
      %v705 = vsel %vm384, %v703, 0.0
      %v706 = vadd.f32 %v704, %v705
      %v707 = vrot.slane %v706, 4
      %v708 = vadd.f32 %v706, %v707
      %v709 = vrot.slane %v708, 2
      %v710 = vadd.f32 %v708, %v709
      %v711 = vrot.slane %v710, 1
      %v712 = vadd.f32 %v710, %v711
      %v713 = vadd.f32 %v559, %v712
      %v714 = vld [vmem:[%s410] sm:$0xf]
      %v715 = vld [vmem:[%s410 + $0x4] sm:$0xf]
      %v716 = vld [vmem:[%s564] sm:$0xf]
      %v717 = vld [vmem:[%s564 + $0x4] sm:$0xf]
      %s718 = scalar_lea.vmem %s203, 40
      %v719 = vld [vmem:[%s718] sm:$0xf]
      %v720 = vld [vmem:[%s718 + $0x4] sm:$0xf]
      %v723 = vunpack.c.l.b16 %v714
      %v724 = vunpack.c.l.b16 %v715
      %v725 = vpack.c.b16 %v724, %v723
      %v727 = vshrl.u32 %v725, 16
      %v729 = vshll.u32 %v725, 16
      %v731 = vrot.slane %v729, 1
      %v732 = vor.u32 %v727, %v731
      %733 = vrot.lane.b32.xlu0 %v732, 4
      %v734 = vpop.permute.xlu0 %733
      %v735 = vrot.slane %v725, 1
      %736 = vrot.lane.b32.xlu0 %v735, 8
      %v737 = vpop.permute.xlu0 %736
      %v740 = vunpack.c.l.b16 %v716
      %v741 = vunpack.c.l.b16 %v717
      %v742 = vpack.c.b16 %v741, %v740
      %743 = vrot.lane.b32.xlu0 %v742, 12
      %v744 = vpop.permute.xlu0 %743
      %v746 = vshrl.u32 %v742, 16
      %v748 = vshll.u32 %v742, 16
      %v750 = vrot.slane %v748, 1
      %v751 = vor.u32 %v746, %v750
      %752 = vrot.lane.b32.xlu0 %v751, 16
      %v753 = vpop.permute.xlu0 %752
      %v754 = vrot.slane %v742, 1
      %755 = vrot.lane.b32.xlu0 %v754, 20
      %v756 = vpop.permute.xlu0 %755
      %v759 = vunpack.c.l.b16 %v719
      %v760 = vunpack.c.l.b16 %v720
      %v761 = vpack.c.b16 %v760, %v759
      %762 = vrot.lane.b32.xlu0 %v761, 24
      %v763 = vpop.permute.xlu0 %762
      %v765 = vshrl.u32 %v761, 16
      %v767 = vshll.u32 %v761, 16
      %v769 = vrot.slane %v767, 1
      %v770 = vor.u32 %v765, %v769
      %771 = vrot.lane.b32.xlu0 %v770, 28
      %v772 = vpop.permute.xlu0 %771
      %v773 = vrot.slane %v761, 1
      %774 = vrot.lane.b32.xlu0 %v773, 32
      %v775 = vpop.permute.xlu0 %774
      %v777 = vsel %vm284, %v725, %v734
      %v779 = vsel %vm287, %v777, %v737
      %v781 = vsel %vm290, %v779, %v744
      %v783 = vsel %vm293, %v781, %v753
      %v785 = vsel %vm296, %v783, %v756
      %v787 = vsel %vm299, %v785, %v763
      %v789 = vsel %vm302, %v787, %v772
      %v791 = vsel %vm305, %v789, %v775
      %v792 = vsel %vm323, %v791, 0
      %794 = vmatprep.subr.bf16.mxu0 0
      %795 = vmatpush1.bf16.msra.mxu0 %v318
      %796 = vmatprep.subr.bf16.mxu0 0
      %797 = vmatpush1.bf16.msra.mxu0 %v319
      %798 = vmatprep.subr.bf16.mxu0 0
      %799 = vmatpush1.bf16.msra.mxu0 %v328
      %800 = vmatprep.subr.bf16.mxu0 0
      %801 = vmatpush1.bf16.msra.mxu0 0
      %802 = vmatprep.subr.bf16.mxu0 0
      %803 = vmatpush1.bf16.msra.mxu0 0
      %804 = vmatprep.subr.bf16.mxu0 0
      %805 = vmatpush1.bf16.msra.mxu0 0
      %806 = vmatprep.subr.bf16.mxu0 0
      %807 = vmatpush1.bf16.msra.mxu0 0
      %808 = vmatprep.subr.bf16.mxu0 0
      %809 = vmatpush1.bf16.msra.mxu0 0
      %810 = vmatprep.subr.bf16.mxu0 0
      %811 = vmatpush1.bf16.msra.mxu0 0
      %812 = vmatprep.subr.bf16.mxu0 0
      %813 = vmatpush1.bf16.msra.mxu0 0
      %814 = vmatprep.subr.bf16.mxu0 0
      %815 = vmatpush1.bf16.msra.mxu0 0
      %816 = vmatprep.subr.bf16.mxu0 0
      %817 = vmatpush1.bf16.msra.mxu0 0
      %818 = vmatprep.subr.bf16.mxu0 0
      %819 = vmatpush1.bf16.msra.mxu0 0
      %820 = vmatprep.subr.bf16.mxu0 0
      %821 = vmatpush1.bf16.msra.mxu0 0
      %822 = vmatprep.subr.bf16.mxu0 0
      %823 = vmatpush1.bf16.msra.mxu0 0
      %824 = vmatprep.subr.bf16.mxu0 0
      %825 = vmatpush1.bf16.msra.mxu0 0
      %826 = vmatprep.mubr.bf16.mxu0 0
      %827 = vmatmul.mubr.bf16.gmra.mrb[0].mxu0 %v792
      %v828 = vpop.f32.mrb[0].mxu0
      %v829 = vadd.f32 0.0, %v828
      %v830 = vpop.f32.mrb[0].mxu0
      %v831 = vpop.f32.mrb[0].mxu0
      %v832 = vadd.f32 0.0, %v831
      %v833 = vpop.f32.mrb[0].mxu0
      %834 = vdwg.mxu0
      %v835 = vpack.c.bf16 %v832, %v829
      %v837 = vunpack.c.l.b16 %v835
      %v838 = vunpack.c.h.b16 %v835
      %v839 = vpack.c.b16 %v837, %v837
      %v840 = vpack.c.b16 %v838, %v838
      %s843 = scalar_lea.vmem %s208, 24
      %844 = vst.msk [vmem:[%s843] sm:$0xf] %vm379, %v839
      %845 = vst.msk [vmem:[%s843 + $0x4] sm:$0x7] %vm381, %v840
      %v846 = vsel %vm287, %v829, 0.0
      %v847 = vsel %vm384, %v832, 0.0
      %v848 = vadd.f32 %v846, %v847
      %v849 = vrot.slane %v848, 4
      %v850 = vadd.f32 %v848, %v849
      %v851 = vrot.slane %v850, 2
      %v852 = vadd.f32 %v850, %v851
      %v853 = vrot.slane %v852, 1
      %v854 = vadd.f32 %v852, %v853
      %v855 = vadd.f32 %v701, %v854
      %v856 = vmul.f32 %v829, %v829
      %v857 = vmul.f32 %v832, %v832
      %v858 = vsel %vm287, %v856, 0.0
      %v859 = vsel %vm384, %v857, 0.0
      %v860 = vadd.f32 %v858, %v859
      %v861 = vrot.slane %v860, 4
      %v862 = vadd.f32 %v860, %v861
      %v863 = vrot.slane %v862, 2
      %v864 = vadd.f32 %v862, %v863
      %v865 = vrot.slane %v864, 1
      %v866 = vadd.f32 %v864, %v865
      %v867 = vadd.f32 %v713, %v866
      %v868 = vld [vmem:[%s564] sm:$0xf]
      %v869 = vld [vmem:[%s564 + $0x4] sm:$0xf]
      %v870 = vld [vmem:[%s718] sm:$0xf]
      %v871 = vld [vmem:[%s718 + $0x4] sm:$0xf]
      %s872 = scalar_lea.vmem %s203, 48
      %v873 = vld [vmem:[%s872] sm:$0xf]
      %v874 = vld [vmem:[%s872 + $0x4] sm:$0xf]
      %v877 = vunpack.c.l.b16 %v868
      %v878 = vunpack.c.l.b16 %v869
      %v879 = vpack.c.b16 %v878, %v877
      %v881 = vshrl.u32 %v879, 16
      %v883 = vshll.u32 %v879, 16
      %v885 = vrot.slane %v883, 1
      %v886 = vor.u32 %v881, %v885
      %887 = vrot.lane.b32.xlu0 %v886, 4
      %v888 = vpop.permute.xlu0 %887
      %v889 = vrot.slane %v879, 1
      %890 = vrot.lane.b32.xlu0 %v889, 8
      %v891 = vpop.permute.xlu0 %890
      %v894 = vunpack.c.l.b16 %v870
      %v895 = vunpack.c.l.b16 %v871
      %v896 = vpack.c.b16 %v895, %v894
      %897 = vrot.lane.b32.xlu0 %v896, 12
      %v898 = vpop.permute.xlu0 %897
      %v900 = vshrl.u32 %v896, 16
      %v902 = vshll.u32 %v896, 16
      %v904 = vrot.slane %v902, 1
      %v905 = vor.u32 %v900, %v904
      %906 = vrot.lane.b32.xlu0 %v905, 16
      %v907 = vpop.permute.xlu0 %906
      %v908 = vrot.slane %v896, 1
      %909 = vrot.lane.b32.xlu0 %v908, 20
      %v910 = vpop.permute.xlu0 %909
      %v913 = vunpack.c.l.b16 %v873
      %v914 = vunpack.c.l.b16 %v874
      %v915 = vpack.c.b16 %v914, %v913
      %916 = vrot.lane.b32.xlu0 %v915, 24
      %v917 = vpop.permute.xlu0 %916
      %v919 = vshrl.u32 %v915, 16
      %v921 = vshll.u32 %v915, 16
      %v923 = vrot.slane %v921, 1
      %v924 = vor.u32 %v919, %v923
      %925 = vrot.lane.b32.xlu0 %v924, 28
      %v926 = vpop.permute.xlu0 %925
      %v927 = vrot.slane %v915, 1
      %928 = vrot.lane.b32.xlu0 %v927, 32
      %v929 = vpop.permute.xlu0 %928
      %v931 = vsel %vm284, %v879, %v888
      %v933 = vsel %vm287, %v931, %v891
      %v935 = vsel %vm290, %v933, %v898
      %v937 = vsel %vm293, %v935, %v907
      %v939 = vsel %vm296, %v937, %v910
      %v941 = vsel %vm299, %v939, %v917
      %v943 = vsel %vm302, %v941, %v926
      %v945 = vsel %vm305, %v943, %v929
      %v946 = vsel %vm323, %v945, 0
      %948 = vmatprep.subr.bf16.mxu0 0
      %949 = vmatpush1.bf16.msra.mxu0 %v318
      %950 = vmatprep.subr.bf16.mxu0 0
      %951 = vmatpush1.bf16.msra.mxu0 %v319
      %952 = vmatprep.subr.bf16.mxu0 0
      %953 = vmatpush1.bf16.msra.mxu0 %v328
      %954 = vmatprep.subr.bf16.mxu0 0
      %955 = vmatpush1.bf16.msra.mxu0 0
      %956 = vmatprep.subr.bf16.mxu0 0
      %957 = vmatpush1.bf16.msra.mxu0 0
      %958 = vmatprep.subr.bf16.mxu0 0
      %959 = vmatpush1.bf16.msra.mxu0 0
      %960 = vmatprep.subr.bf16.mxu0 0
      %961 = vmatpush1.bf16.msra.mxu0 0
      %962 = vmatprep.subr.bf16.mxu0 0
      %963 = vmatpush1.bf16.msra.mxu0 0
      %964 = vmatprep.subr.bf16.mxu0 0
      %965 = vmatpush1.bf16.msra.mxu0 0
      %966 = vmatprep.subr.bf16.mxu0 0
      %967 = vmatpush1.bf16.msra.mxu0 0
      %968 = vmatprep.subr.bf16.mxu0 0
      %969 = vmatpush1.bf16.msra.mxu0 0
      %970 = vmatprep.subr.bf16.mxu0 0
      %971 = vmatpush1.bf16.msra.mxu0 0
      %972 = vmatprep.subr.bf16.mxu0 0
      %973 = vmatpush1.bf16.msra.mxu0 0
      %974 = vmatprep.subr.bf16.mxu0 0
      %975 = vmatpush1.bf16.msra.mxu0 0
      %976 = vmatprep.subr.bf16.mxu0 0
      %977 = vmatpush1.bf16.msra.mxu0 0
      %978 = vmatprep.subr.bf16.mxu0 0
      %979 = vmatpush1.bf16.msra.mxu0 0
      %980 = vmatprep.mubr.bf16.mxu0 0
      %981 = vmatmul.mubr.bf16.gmra.mrb[0].mxu0 %v946
      %v982 = vpop.f32.mrb[0].mxu0
      %v983 = vadd.f32 0.0, %v982
      %v984 = vpop.f32.mrb[0].mxu0
      %v985 = vpop.f32.mrb[0].mxu0
      %v986 = vadd.f32 0.0, %v985
      %v987 = vpop.f32.mrb[0].mxu0
      %988 = vdwg.mxu0
      %v989 = vpack.c.bf16 %v986, %v983
      %v991 = vunpack.c.l.b16 %v989
      %v992 = vunpack.c.h.b16 %v989
      %v993 = vpack.c.b16 %v991, %v991
      %v994 = vpack.c.b16 %v992, %v992
      %s997 = scalar_lea.vmem %s208, 32
      %998 = vst.msk [vmem:[%s997] sm:$0xf] %vm379, %v993
      %999 = vst.msk [vmem:[%s997 + $0x4] sm:$0x7] %vm381, %v994
      %v1000 = vsel %vm287, %v983, 0.0
      %v1001 = vsel %vm384, %v986, 0.0
      %v1002 = vadd.f32 %v1000, %v1001
      %v1003 = vrot.slane %v1002, 4
      %v1004 = vadd.f32 %v1002, %v1003
      %v1005 = vrot.slane %v1004, 2
      %v1006 = vadd.f32 %v1004, %v1005
      %v1007 = vrot.slane %v1006, 1
      %v1008 = vadd.f32 %v1006, %v1007
      %v1009 = vadd.f32 %v855, %v1008
      %v1010 = vmul.f32 %v983, %v983
      %v1011 = vmul.f32 %v986, %v986
      %v1012 = vsel %vm287, %v1010, 0.0
      %v1013 = vsel %vm384, %v1011, 0.0
      %v1014 = vadd.f32 %v1012, %v1013
      %v1015 = vrot.slane %v1014, 4
      %v1016 = vadd.f32 %v1014, %v1015
      %v1017 = vrot.slane %v1016, 2
      %v1018 = vadd.f32 %v1016, %v1017
      %v1019 = vrot.slane %v1018, 1
      %v1020 = vadd.f32 %v1018, %v1019
      %v1021 = vadd.f32 %v867, %v1020
      %v1022 = vld [vmem:[%s718] sm:$0xf]
      %v1023 = vld [vmem:[%s718 + $0x4] sm:$0xf]
      %v1024 = vld [vmem:[%s872] sm:$0xf]
      %v1025 = vld [vmem:[%s872 + $0x4] sm:$0xf]
      %s1026 = scalar_lea.vmem %s203, 56
      %v1027 = vld [vmem:[%s1026] sm:$0xf]
      %v1028 = vld [vmem:[%s1026 + $0x4] sm:$0xf]
      %v1031 = vunpack.c.l.b16 %v1022
      %v1032 = vunpack.c.l.b16 %v1023
      %v1033 = vpack.c.b16 %v1032, %v1031
      %v1035 = vshrl.u32 %v1033, 16
      %v1037 = vshll.u32 %v1033, 16
      %v1039 = vrot.slane %v1037, 1
      %v1040 = vor.u32 %v1035, %v1039
      %1041 = vrot.lane.b32.xlu0 %v1040, 4
      %v1042 = vpop.permute.xlu0 %1041
      %v1043 = vrot.slane %v1033, 1
      %1044 = vrot.lane.b32.xlu0 %v1043, 8
      %v1045 = vpop.permute.xlu0 %1044
      %v1048 = vunpack.c.l.b16 %v1024
      %v1049 = vunpack.c.l.b16 %v1025
      %v1050 = vpack.c.b16 %v1049, %v1048
      %1051 = vrot.lane.b32.xlu0 %v1050, 12
      %v1052 = vpop.permute.xlu0 %1051
      %v1054 = vshrl.u32 %v1050, 16
      %v1056 = vshll.u32 %v1050, 16
      %v1058 = vrot.slane %v1056, 1
      %v1059 = vor.u32 %v1054, %v1058
      %1060 = vrot.lane.b32.xlu0 %v1059, 16
      %v1061 = vpop.permute.xlu0 %1060
      %v1062 = vrot.slane %v1050, 1
      %1063 = vrot.lane.b32.xlu0 %v1062, 20
      %v1064 = vpop.permute.xlu0 %1063
      %v1067 = vunpack.c.l.b16 %v1027
      %v1068 = vunpack.c.l.b16 %v1028
      %v1069 = vpack.c.b16 %v1068, %v1067
      %1070 = vrot.lane.b32.xlu0 %v1069, 24
      %v1071 = vpop.permute.xlu0 %1070
      %v1073 = vshrl.u32 %v1069, 16
      %v1075 = vshll.u32 %v1069, 16
      %v1077 = vrot.slane %v1075, 1
      %v1078 = vor.u32 %v1073, %v1077
      %1079 = vrot.lane.b32.xlu0 %v1078, 28
      %v1080 = vpop.permute.xlu0 %1079
      %v1081 = vrot.slane %v1069, 1
      %1082 = vrot.lane.b32.xlu0 %v1081, 32
      %v1083 = vpop.permute.xlu0 %1082
      %v1085 = vsel %vm284, %v1033, %v1042
      %v1087 = vsel %vm287, %v1085, %v1045
      %v1089 = vsel %vm290, %v1087, %v1052
      %v1091 = vsel %vm293, %v1089, %v1061
      %v1093 = vsel %vm296, %v1091, %v1064
      %v1095 = vsel %vm299, %v1093, %v1071
      %v1097 = vsel %vm302, %v1095, %v1080
      %v1099 = vsel %vm305, %v1097, %v1083
      %v1100 = vsel %vm323, %v1099, 0
      %1102 = vmatprep.subr.bf16.mxu0 0
      %1103 = vmatpush1.bf16.msra.mxu0 %v318
      %1104 = vmatprep.subr.bf16.mxu0 0
      %1105 = vmatpush1.bf16.msra.mxu0 %v319
      %1106 = vmatprep.subr.bf16.mxu0 0
      %1107 = vmatpush1.bf16.msra.mxu0 %v328
      %1108 = vmatprep.subr.bf16.mxu0 0
      %1109 = vmatpush1.bf16.msra.mxu0 0
      %1110 = vmatprep.subr.bf16.mxu0 0
      %1111 = vmatpush1.bf16.msra.mxu0 0
      %1112 = vmatprep.subr.bf16.mxu0 0
      %1113 = vmatpush1.bf16.msra.mxu0 0
      %1114 = vmatprep.subr.bf16.mxu0 0
      %1115 = vmatpush1.bf16.msra.mxu0 0
      %1116 = vmatprep.subr.bf16.mxu0 0
      %1117 = vmatpush1.bf16.msra.mxu0 0
      %1118 = vmatprep.subr.bf16.mxu0 0
      %1119 = vmatpush1.bf16.msra.mxu0 0
      %1120 = vmatprep.subr.bf16.mxu0 0
      %1121 = vmatpush1.bf16.msra.mxu0 0
      %1122 = vmatprep.subr.bf16.mxu0 0
      %1123 = vmatpush1.bf16.msra.mxu0 0
      %1124 = vmatprep.subr.bf16.mxu0 0
      %1125 = vmatpush1.bf16.msra.mxu0 0
      %1126 = vmatprep.subr.bf16.mxu0 0
      %1127 = vmatpush1.bf16.msra.mxu0 0
      %1128 = vmatprep.subr.bf16.mxu0 0
      %1129 = vmatpush1.bf16.msra.mxu0 0
      %1130 = vmatprep.subr.bf16.mxu0 0
      %1131 = vmatpush1.bf16.msra.mxu0 0
      %1132 = vmatprep.subr.bf16.mxu0 0
      %1133 = vmatpush1.bf16.msra.mxu0 0
      %1134 = vmatprep.mubr.bf16.mxu0 0
      %1135 = vmatmul.mubr.bf16.gmra.mrb[0].mxu0 %v1100
      %v1136 = vpop.f32.mrb[0].mxu0
      %v1137 = vadd.f32 0.0, %v1136
      %v1138 = vpop.f32.mrb[0].mxu0
      %v1139 = vpop.f32.mrb[0].mxu0
      %v1140 = vadd.f32 0.0, %v1139
      %v1141 = vpop.f32.mrb[0].mxu0
      %1142 = vdwg.mxu0
      %v1143 = vpack.c.bf16 %v1140, %v1137
      %v1145 = vunpack.c.l.b16 %v1143
      %v1146 = vunpack.c.h.b16 %v1143
      %v1147 = vpack.c.b16 %v1145, %v1145
      %v1148 = vpack.c.b16 %v1146, %v1146
      %s1151 = scalar_lea.vmem %s208, 40
      %1152 = vst.msk [vmem:[%s1151] sm:$0xf] %vm379, %v1147
      %1153 = vst.msk [vmem:[%s1151 + $0x4] sm:$0x7] %vm381, %v1148
      %v1154 = vsel %vm287, %v1137, 0.0
      %v1155 = vsel %vm384, %v1140, 0.0
      %v1156 = vadd.f32 %v1154, %v1155
      %v1157 = vrot.slane %v1156, 4
      %v1158 = vadd.f32 %v1156, %v1157
      %v1159 = vrot.slane %v1158, 2
      %v1160 = vadd.f32 %v1158, %v1159
      %v1161 = vrot.slane %v1160, 1
      %v1162 = vadd.f32 %v1160, %v1161
      %v1163 = vadd.f32 %v1009, %v1162
      %v1164 = vmul.f32 %v1137, %v1137
      %v1165 = vmul.f32 %v1140, %v1140
      %v1166 = vsel %vm287, %v1164, 0.0
      %v1167 = vsel %vm384, %v1165, 0.0
      %v1168 = vadd.f32 %v1166, %v1167
      %v1169 = vrot.slane %v1168, 4
      %v1170 = vadd.f32 %v1168, %v1169
      %v1171 = vrot.slane %v1170, 2
      %v1172 = vadd.f32 %v1170, %v1171
      %v1173 = vrot.slane %v1172, 1
      %v1174 = vadd.f32 %v1172, %v1173
      %v1175 = vadd.f32 %v1021, %v1174
      %v1176 = vld [vmem:[%s872] sm:$0xf]
      %v1177 = vld [vmem:[%s872 + $0x4] sm:$0xf]
      %v1178 = vld [vmem:[%s1026] sm:$0xf]
      %v1179 = vld [vmem:[%s1026 + $0x4] sm:$0xf]
      %s1180 = scalar_lea.vmem %s203, 64
      %v1181 = vld [vmem:[%s1180] sm:$0xf]
      %v1182 = vld [vmem:[%s1180 + $0x4] sm:$0xf]
      %v1185 = vunpack.c.l.b16 %v1176
      %v1186 = vunpack.c.l.b16 %v1177
      %v1187 = vpack.c.b16 %v1186, %v1185
      %v1189 = vshrl.u32 %v1187, 16
      %v1191 = vshll.u32 %v1187, 16
      %v1193 = vrot.slane %v1191, 1
      %v1194 = vor.u32 %v1189, %v1193
      %1195 = vrot.lane.b32.xlu0 %v1194, 4
      %v1196 = vpop.permute.xlu0 %1195
      %v1197 = vrot.slane %v1187, 1
      %1198 = vrot.lane.b32.xlu0 %v1197, 8
      %v1199 = vpop.permute.xlu0 %1198
      %v1202 = vunpack.c.l.b16 %v1178
      %v1203 = vunpack.c.l.b16 %v1179
      %v1204 = vpack.c.b16 %v1203, %v1202
      %1205 = vrot.lane.b32.xlu0 %v1204, 12
      %v1206 = vpop.permute.xlu0 %1205
      %v1208 = vshrl.u32 %v1204, 16
      %v1210 = vshll.u32 %v1204, 16
      %v1212 = vrot.slane %v1210, 1
      %v1213 = vor.u32 %v1208, %v1212
      %1214 = vrot.lane.b32.xlu0 %v1213, 16
      %v1215 = vpop.permute.xlu0 %1214
      %v1216 = vrot.slane %v1204, 1
      %1217 = vrot.lane.b32.xlu0 %v1216, 20
      %v1218 = vpop.permute.xlu0 %1217
      %v1221 = vunpack.c.l.b16 %v1181
      %v1222 = vunpack.c.l.b16 %v1182
      %v1223 = vpack.c.b16 %v1222, %v1221
      %1224 = vrot.lane.b32.xlu0 %v1223, 24
      %v1225 = vpop.permute.xlu0 %1224
      %v1227 = vshrl.u32 %v1223, 16
      %v1229 = vshll.u32 %v1223, 16
      %v1231 = vrot.slane %v1229, 1
      %v1232 = vor.u32 %v1227, %v1231
      %1233 = vrot.lane.b32.xlu0 %v1232, 28
      %v1234 = vpop.permute.xlu0 %1233
      %v1235 = vrot.slane %v1223, 1
      %1236 = vrot.lane.b32.xlu0 %v1235, 32
      %v1237 = vpop.permute.xlu0 %1236
      %v1239 = vsel %vm284, %v1187, %v1196
      %v1241 = vsel %vm287, %v1239, %v1199
      %v1243 = vsel %vm290, %v1241, %v1206
      %v1245 = vsel %vm293, %v1243, %v1215
      %v1247 = vsel %vm296, %v1245, %v1218
      %v1249 = vsel %vm299, %v1247, %v1225
      %v1251 = vsel %vm302, %v1249, %v1234
      %v1253 = vsel %vm305, %v1251, %v1237
      %v1254 = vsel %vm323, %v1253, 0
      %1256 = vmatprep.subr.bf16.mxu0 0
      %1257 = vmatpush1.bf16.msra.mxu0 %v318
      %1258 = vmatprep.subr.bf16.mxu0 0
      %1259 = vmatpush1.bf16.msra.mxu0 %v319
      %1260 = vmatprep.subr.bf16.mxu0 0
      %1261 = vmatpush1.bf16.msra.mxu0 %v328
      %1262 = vmatprep.subr.bf16.mxu0 0
      %1263 = vmatpush1.bf16.msra.mxu0 0
      %1264 = vmatprep.subr.bf16.mxu0 0
      %1265 = vmatpush1.bf16.msra.mxu0 0
      %1266 = vmatprep.subr.bf16.mxu0 0
      %1267 = vmatpush1.bf16.msra.mxu0 0
      %1268 = vmatprep.subr.bf16.mxu0 0
      %1269 = vmatpush1.bf16.msra.mxu0 0
      %1270 = vmatprep.subr.bf16.mxu0 0
      %1271 = vmatpush1.bf16.msra.mxu0 0
      %1272 = vmatprep.subr.bf16.mxu0 0
      %1273 = vmatpush1.bf16.msra.mxu0 0
      %1274 = vmatprep.subr.bf16.mxu0 0
      %1275 = vmatpush1.bf16.msra.mxu0 0
      %1276 = vmatprep.subr.bf16.mxu0 0
      %1277 = vmatpush1.bf16.msra.mxu0 0
      %1278 = vmatprep.subr.bf16.mxu0 0
      %1279 = vmatpush1.bf16.msra.mxu0 0
      %1280 = vmatprep.subr.bf16.mxu0 0
      %1281 = vmatpush1.bf16.msra.mxu0 0
      %1282 = vmatprep.subr.bf16.mxu0 0
      %1283 = vmatpush1.bf16.msra.mxu0 0
      %1284 = vmatprep.subr.bf16.mxu0 0
      %1285 = vmatpush1.bf16.msra.mxu0 0
      %1286 = vmatprep.subr.bf16.mxu0 0
      %1287 = vmatpush1.bf16.msra.mxu0 0
      %1288 = vmatprep.mubr.bf16.mxu0 0
      %1289 = vmatmul.mubr.bf16.gmra.mrb[0].mxu0 %v1254
      %v1290 = vpop.f32.mrb[0].mxu0
      %v1291 = vadd.f32 0.0, %v1290
      %v1292 = vpop.f32.mrb[0].mxu0
      %v1293 = vpop.f32.mrb[0].mxu0
      %v1294 = vadd.f32 0.0, %v1293
      %v1295 = vpop.f32.mrb[0].mxu0
      %1296 = vdwg.mxu0
      %v1297 = vpack.c.bf16 %v1294, %v1291
      %v1299 = vunpack.c.l.b16 %v1297
      %v1300 = vunpack.c.h.b16 %v1297
      %v1301 = vpack.c.b16 %v1299, %v1299
      %v1302 = vpack.c.b16 %v1300, %v1300
      %s1305 = scalar_lea.vmem %s208, 48
      %1306 = vst.msk [vmem:[%s1305] sm:$0xf] %vm379, %v1301
      %1307 = vst.msk [vmem:[%s1305 + $0x4] sm:$0x7] %vm381, %v1302
      %v1308 = vsel %vm287, %v1291, 0.0
      %v1309 = vsel %vm384, %v1294, 0.0
      %v1310 = vadd.f32 %v1308, %v1309
      %v1311 = vrot.slane %v1310, 4
      %v1312 = vadd.f32 %v1310, %v1311
      %v1313 = vrot.slane %v1312, 2
      %v1314 = vadd.f32 %v1312, %v1313
      %v1315 = vrot.slane %v1314, 1
      %v1316 = vadd.f32 %v1314, %v1315
      %v1317 = vadd.f32 %v1163, %v1316
      %v1318 = vmul.f32 %v1291, %v1291
      %v1319 = vmul.f32 %v1294, %v1294
      %v1320 = vsel %vm287, %v1318, 0.0
      %v1321 = vsel %vm384, %v1319, 0.0
      %v1322 = vadd.f32 %v1320, %v1321
      %v1323 = vrot.slane %v1322, 4
      %v1324 = vadd.f32 %v1322, %v1323
      %v1325 = vrot.slane %v1324, 2
      %v1326 = vadd.f32 %v1324, %v1325
      %v1327 = vrot.slane %v1326, 1
      %v1328 = vadd.f32 %v1326, %v1327
      %v1329 = vadd.f32 %v1175, %v1328
      %v1330 = vld [vmem:[%s1026] sm:$0xf]
      %v1331 = vld [vmem:[%s1026 + $0x4] sm:$0xf]
      %v1332 = vld [vmem:[%s1180] sm:$0xf]
      %v1333 = vld [vmem:[%s1180 + $0x4] sm:$0xf]
      %s1334 = scalar_lea.vmem %s203, 72
      %v1335 = vld [vmem:[%s1334] sm:$0xf]
      %v1336 = vld [vmem:[%s1334 + $0x4] sm:$0xf]
      %v1339 = vunpack.c.l.b16 %v1330
      %v1340 = vunpack.c.l.b16 %v1331
      %v1341 = vpack.c.b16 %v1340, %v1339
      %v1343 = vshrl.u32 %v1341, 16
      %v1345 = vshll.u32 %v1341, 16
      %v1347 = vrot.slane %v1345, 1
      %v1348 = vor.u32 %v1343, %v1347
      %1349 = vrot.lane.b32.xlu0 %v1348, 4
      %v1350 = vpop.permute.xlu0 %1349
      %v1351 = vrot.slane %v1341, 1
      %1352 = vrot.lane.b32.xlu0 %v1351, 8
      %v1353 = vpop.permute.xlu0 %1352
      %v1356 = vunpack.c.l.b16 %v1332
      %v1357 = vunpack.c.l.b16 %v1333
      %v1358 = vpack.c.b16 %v1357, %v1356
      %1359 = vrot.lane.b32.xlu0 %v1358, 12
      %v1360 = vpop.permute.xlu0 %1359
      %v1362 = vshrl.u32 %v1358, 16
      %v1364 = vshll.u32 %v1358, 16
      %v1366 = vrot.slane %v1364, 1
      %v1367 = vor.u32 %v1362, %v1366
      %1368 = vrot.lane.b32.xlu0 %v1367, 16
      %v1369 = vpop.permute.xlu0 %1368
      %v1370 = vrot.slane %v1358, 1
      %1371 = vrot.lane.b32.xlu0 %v1370, 20
      %v1372 = vpop.permute.xlu0 %1371
      %v1375 = vunpack.c.l.b16 %v1335
      %v1376 = vunpack.c.l.b16 %v1336
      %v1377 = vpack.c.b16 %v1376, %v1375
      %1378 = vrot.lane.b32.xlu0 %v1377, 24
      %v1379 = vpop.permute.xlu0 %1378
      %v1381 = vshrl.u32 %v1377, 16
      %v1383 = vshll.u32 %v1377, 16
      %v1385 = vrot.slane %v1383, 1
      %v1386 = vor.u32 %v1381, %v1385
      %1387 = vrot.lane.b32.xlu0 %v1386, 28
      %v1388 = vpop.permute.xlu0 %1387
      %v1389 = vrot.slane %v1377, 1
      %1390 = vrot.lane.b32.xlu0 %v1389, 32
      %v1391 = vpop.permute.xlu0 %1390
      %v1393 = vsel %vm284, %v1341, %v1350
      %v1395 = vsel %vm287, %v1393, %v1353
      %v1397 = vsel %vm290, %v1395, %v1360
      %v1399 = vsel %vm293, %v1397, %v1369
      %v1401 = vsel %vm296, %v1399, %v1372
      %v1403 = vsel %vm299, %v1401, %v1379
      %v1405 = vsel %vm302, %v1403, %v1388
      %v1407 = vsel %vm305, %v1405, %v1391
      %v1408 = vsel %vm323, %v1407, 0
      %1410 = vmatprep.subr.bf16.mxu0 0
      %1411 = vmatpush1.bf16.msra.mxu0 %v318
      %1412 = vmatprep.subr.bf16.mxu0 0
      %1413 = vmatpush1.bf16.msra.mxu0 %v319
      %1414 = vmatprep.subr.bf16.mxu0 0
      %1415 = vmatpush1.bf16.msra.mxu0 %v328
      %1416 = vmatprep.subr.bf16.mxu0 0
      %1417 = vmatpush1.bf16.msra.mxu0 0
      %1418 = vmatprep.subr.bf16.mxu0 0
      %1419 = vmatpush1.bf16.msra.mxu0 0
      %1420 = vmatprep.subr.bf16.mxu0 0
      %1421 = vmatpush1.bf16.msra.mxu0 0
      %1422 = vmatprep.subr.bf16.mxu0 0
      %1423 = vmatpush1.bf16.msra.mxu0 0
      %1424 = vmatprep.subr.bf16.mxu0 0
      %1425 = vmatpush1.bf16.msra.mxu0 0
      %1426 = vmatprep.subr.bf16.mxu0 0
      %1427 = vmatpush1.bf16.msra.mxu0 0
      %1428 = vmatprep.subr.bf16.mxu0 0
      %1429 = vmatpush1.bf16.msra.mxu0 0
      %1430 = vmatprep.subr.bf16.mxu0 0
      %1431 = vmatpush1.bf16.msra.mxu0 0
      %1432 = vmatprep.subr.bf16.mxu0 0
      %1433 = vmatpush1.bf16.msra.mxu0 0
      %1434 = vmatprep.subr.bf16.mxu0 0
      %1435 = vmatpush1.bf16.msra.mxu0 0
      %1436 = vmatprep.subr.bf16.mxu0 0
      %1437 = vmatpush1.bf16.msra.mxu0 0
      %1438 = vmatprep.subr.bf16.mxu0 0
      %1439 = vmatpush1.bf16.msra.mxu0 0
      %1440 = vmatprep.subr.bf16.mxu0 0
      %1441 = vmatpush1.bf16.msra.mxu0 0
      %1442 = vmatprep.mubr.bf16.mxu0 0
      %1443 = vmatmul.mubr.bf16.gmra.mrb[0].mxu0 %v1408
      %v1444 = vpop.f32.mrb[0].mxu0
      %v1445 = vadd.f32 0.0, %v1444
      %v1446 = vpop.f32.mrb[0].mxu0
      %v1447 = vpop.f32.mrb[0].mxu0
      %v1448 = vadd.f32 0.0, %v1447
      %v1449 = vpop.f32.mrb[0].mxu0
      %1450 = vdwg.mxu0
      %v1451 = vpack.c.bf16 %v1448, %v1445
      %v1453 = vunpack.c.l.b16 %v1451
      %v1454 = vunpack.c.h.b16 %v1451
      %v1455 = vpack.c.b16 %v1453, %v1453
      %v1456 = vpack.c.b16 %v1454, %v1454
      %s1459 = scalar_lea.vmem %s208, 56
      %1460 = vst.msk [vmem:[%s1459] sm:$0xf] %vm379, %v1455
      %1461 = vst.msk [vmem:[%s1459 + $0x4] sm:$0x7] %vm381, %v1456
      %v1462 = vsel %vm287, %v1445, 0.0
      %v1463 = vsel %vm384, %v1448, 0.0
      %v1464 = vadd.f32 %v1462, %v1463
      %v1465 = vrot.slane %v1464, 4
      %v1466 = vadd.f32 %v1464, %v1465
      %v1467 = vrot.slane %v1466, 2
      %v1468 = vadd.f32 %v1466, %v1467
      %v1469 = vrot.slane %v1468, 1
      %v1470 = vadd.f32 %v1468, %v1469
      %v1471 = vadd.f32 %v1317, %v1470
      %v1472 = vmul.f32 %v1445, %v1445
      %v1473 = vmul.f32 %v1448, %v1448
      %v1474 = vsel %vm287, %v1472, 0.0
      %v1475 = vsel %vm384, %v1473, 0.0
      %v1476 = vadd.f32 %v1474, %v1475
      %v1477 = vrot.slane %v1476, 4
      %v1478 = vadd.f32 %v1476, %v1477
      %v1479 = vrot.slane %v1478, 2
      %v1480 = vadd.f32 %v1478, %v1479
      %v1481 = vrot.slane %v1480, 1
      %v1482 = vadd.f32 %v1480, %v1481
      %v1483 = vadd.f32 %v1329, %v1482
      %v1484 = vld [vmem:[%s1180] sm:$0xf]
      %v1485 = vld [vmem:[%s1180 + $0x4] sm:$0xf]
      %v1486 = vld [vmem:[%s1334] sm:$0xf]
      %v1487 = vld [vmem:[%s1334 + $0x4] sm:$0xf]
      %s1488 = scalar_lea.vmem %s203, 80
      %v1489 = vld [vmem:[%s1488] sm:$0xf]
      %v1490 = vld [vmem:[%s1488 + $0x4] sm:$0xf]
      %v1493 = vunpack.c.l.b16 %v1484
      %v1494 = vunpack.c.l.b16 %v1485
      %v1495 = vpack.c.b16 %v1494, %v1493
      %v1497 = vshrl.u32 %v1495, 16
      %v1499 = vshll.u32 %v1495, 16
      %v1501 = vrot.slane %v1499, 1
      %v1502 = vor.u32 %v1497, %v1501
      %1503 = vrot.lane.b32.xlu0 %v1502, 4
      %v1504 = vpop.permute.xlu0 %1503
      %v1505 = vrot.slane %v1495, 1
      %1506 = vrot.lane.b32.xlu0 %v1505, 8
      %v1507 = vpop.permute.xlu0 %1506
      %v1510 = vunpack.c.l.b16 %v1486
      %v1511 = vunpack.c.l.b16 %v1487
      %v1512 = vpack.c.b16 %v1511, %v1510
      %1513 = vrot.lane.b32.xlu0 %v1512, 12
      %v1514 = vpop.permute.xlu0 %1513
      %v1516 = vshrl.u32 %v1512, 16
      %v1518 = vshll.u32 %v1512, 16
      %v1520 = vrot.slane %v1518, 1
      %v1521 = vor.u32 %v1516, %v1520
      %1522 = vrot.lane.b32.xlu0 %v1521, 16
      %v1523 = vpop.permute.xlu0 %1522
      %v1524 = vrot.slane %v1512, 1
      %1525 = vrot.lane.b32.xlu0 %v1524, 20
      %v1526 = vpop.permute.xlu0 %1525
      %v1529 = vunpack.c.l.b16 %v1489
      %v1530 = vunpack.c.l.b16 %v1490
      %v1531 = vpack.c.b16 %v1530, %v1529
      %1532 = vrot.lane.b32.xlu0 %v1531, 24
      %v1533 = vpop.permute.xlu0 %1532
      %v1535 = vshrl.u32 %v1531, 16
      %v1537 = vshll.u32 %v1531, 16
      %v1539 = vrot.slane %v1537, 1
      %v1540 = vor.u32 %v1535, %v1539
      %1541 = vrot.lane.b32.xlu0 %v1540, 28
      %v1542 = vpop.permute.xlu0 %1541
      %v1543 = vrot.slane %v1531, 1
      %1544 = vrot.lane.b32.xlu0 %v1543, 32
      %v1545 = vpop.permute.xlu0 %1544
      %v1547 = vsel %vm284, %v1495, %v1504
      %v1549 = vsel %vm287, %v1547, %v1507
      %v1551 = vsel %vm290, %v1549, %v1514
      %v1553 = vsel %vm293, %v1551, %v1523
      %v1555 = vsel %vm296, %v1553, %v1526
      %v1557 = vsel %vm299, %v1555, %v1533
      %v1559 = vsel %vm302, %v1557, %v1542
      %v1561 = vsel %vm305, %v1559, %v1545
      %v1562 = vsel %vm323, %v1561, 0
      %1564 = vmatprep.subr.bf16.mxu0 0
      %1565 = vmatpush1.bf16.msra.mxu0 %v318
      %1566 = vmatprep.subr.bf16.mxu0 0
      %1567 = vmatpush1.bf16.msra.mxu0 %v319
      %1568 = vmatprep.subr.bf16.mxu0 0
      %1569 = vmatpush1.bf16.msra.mxu0 %v328
      %1570 = vmatprep.subr.bf16.mxu0 0
      %1571 = vmatpush1.bf16.msra.mxu0 0
      %1572 = vmatprep.subr.bf16.mxu0 0
      %1573 = vmatpush1.bf16.msra.mxu0 0
      %1574 = vmatprep.subr.bf16.mxu0 0
      %1575 = vmatpush1.bf16.msra.mxu0 0
      %1576 = vmatprep.subr.bf16.mxu0 0
      %1577 = vmatpush1.bf16.msra.mxu0 0
      %1578 = vmatprep.subr.bf16.mxu0 0
      %1579 = vmatpush1.bf16.msra.mxu0 0
      %1580 = vmatprep.subr.bf16.mxu0 0
      %1581 = vmatpush1.bf16.msra.mxu0 0
      %1582 = vmatprep.subr.bf16.mxu0 0
      %1583 = vmatpush1.bf16.msra.mxu0 0
      %1584 = vmatprep.subr.bf16.mxu0 0
      %1585 = vmatpush1.bf16.msra.mxu0 0
      %1586 = vmatprep.subr.bf16.mxu0 0
      %1587 = vmatpush1.bf16.msra.mxu0 0
      %1588 = vmatprep.subr.bf16.mxu0 0
      %1589 = vmatpush1.bf16.msra.mxu0 0
      %1590 = vmatprep.subr.bf16.mxu0 0
      %1591 = vmatpush1.bf16.msra.mxu0 0
      %1592 = vmatprep.subr.bf16.mxu0 0
      %1593 = vmatpush1.bf16.msra.mxu0 0
      %1594 = vmatprep.subr.bf16.mxu0 0
      %1595 = vmatpush1.bf16.msra.mxu0 0
      %1596 = vmatprep.mubr.bf16.mxu0 0
      %1597 = vmatmul.mubr.bf16.gmra.mrb[0].mxu0 %v1562
      %v1598 = vpop.f32.mrb[0].mxu0
      %v1599 = vadd.f32 0.0, %v1598
      %v1600 = vpop.f32.mrb[0].mxu0
      %v1601 = vpop.f32.mrb[0].mxu0
      %v1602 = vadd.f32 0.0, %v1601
      %v1603 = vpop.f32.mrb[0].mxu0
      %1604 = vdwg.mxu0
      %v1605 = vpack.c.bf16 %v1602, %v1599
      %v1607 = vunpack.c.l.b16 %v1605
      %v1608 = vunpack.c.h.b16 %v1605
      %v1609 = vpack.c.b16 %v1607, %v1607
      %v1610 = vpack.c.b16 %v1608, %v1608
      %s1613 = scalar_lea.vmem %s208, 64
      %1614 = vst.msk [vmem:[%s1613] sm:$0xf] %vm379, %v1609
      %1615 = vst.msk [vmem:[%s1613 + $0x4] sm:$0x7] %vm381, %v1610
      %v1616 = vsel %vm287, %v1599, 0.0
      %v1617 = vsel %vm384, %v1602, 0.0
      %v1618 = vadd.f32 %v1616, %v1617
      %v1619 = vrot.slane %v1618, 4
      %v1620 = vadd.f32 %v1618, %v1619
      %v1621 = vrot.slane %v1620, 2
      %v1622 = vadd.f32 %v1620, %v1621
      %v1623 = vrot.slane %v1622, 1
      %v1624 = vadd.f32 %v1622, %v1623
      %v1625 = vadd.f32 %v1471, %v1624
      %v1626 = vmul.f32 %v1599, %v1599
      %v1627 = vmul.f32 %v1602, %v1602
      %v1628 = vsel %vm287, %v1626, 0.0
      %v1629 = vsel %vm384, %v1627, 0.0
      %v1630 = vadd.f32 %v1628, %v1629
      %v1631 = vrot.slane %v1630, 4
      %v1632 = vadd.f32 %v1630, %v1631
      %v1633 = vrot.slane %v1632, 2
      %v1634 = vadd.f32 %v1632, %v1633
      %v1635 = vrot.slane %v1634, 1
      %v1636 = vadd.f32 %v1634, %v1635
      %v1637 = vadd.f32 %v1483, %v1636
      %v1638 = vld [vmem:[%s1334] sm:$0xf]
      %v1639 = vld [vmem:[%s1334 + $0x4] sm:$0xf]
      %v1640 = vld [vmem:[%s1488] sm:$0xf]
      %v1641 = vld [vmem:[%s1488 + $0x4] sm:$0xf]
      %s1642 = scalar_lea.vmem %s203, 88
      %v1643 = vld [vmem:[%s1642] sm:$0xf]
      %v1644 = vld [vmem:[%s1642 + $0x4] sm:$0xf]
      %v1647 = vunpack.c.l.b16 %v1638
      %v1648 = vunpack.c.l.b16 %v1639
      %v1649 = vpack.c.b16 %v1648, %v1647
      %v1651 = vshrl.u32 %v1649, 16
      %v1653 = vshll.u32 %v1649, 16
      %v1655 = vrot.slane %v1653, 1
      %v1656 = vor.u32 %v1651, %v1655
      %1657 = vrot.lane.b32.xlu0 %v1656, 4
      %v1658 = vpop.permute.xlu0 %1657
      %v1659 = vrot.slane %v1649, 1
      %1660 = vrot.lane.b32.xlu0 %v1659, 8
      %v1661 = vpop.permute.xlu0 %1660
      %v1664 = vunpack.c.l.b16 %v1640
      %v1665 = vunpack.c.l.b16 %v1641
      %v1666 = vpack.c.b16 %v1665, %v1664
      %1667 = vrot.lane.b32.xlu0 %v1666, 12
      %v1668 = vpop.permute.xlu0 %1667
      %v1670 = vshrl.u32 %v1666, 16
      %v1672 = vshll.u32 %v1666, 16
      %v1674 = vrot.slane %v1672, 1
      %v1675 = vor.u32 %v1670, %v1674
      %1676 = vrot.lane.b32.xlu0 %v1675, 16
      %v1677 = vpop.permute.xlu0 %1676
      %v1678 = vrot.slane %v1666, 1
      %1679 = vrot.lane.b32.xlu0 %v1678, 20
      %v1680 = vpop.permute.xlu0 %1679
      %v1683 = vunpack.c.l.b16 %v1643
      %v1684 = vunpack.c.l.b16 %v1644
      %v1685 = vpack.c.b16 %v1684, %v1683
      %1686 = vrot.lane.b32.xlu0 %v1685, 24
      %v1687 = vpop.permute.xlu0 %1686
      %v1689 = vshrl.u32 %v1685, 16
      %v1691 = vshll.u32 %v1685, 16
      %v1693 = vrot.slane %v1691, 1
      %v1694 = vor.u32 %v1689, %v1693
      %1695 = vrot.lane.b32.xlu0 %v1694, 28
      %v1696 = vpop.permute.xlu0 %1695
      %v1697 = vrot.slane %v1685, 1
      %1698 = vrot.lane.b32.xlu0 %v1697, 32
      %v1699 = vpop.permute.xlu0 %1698
      %v1701 = vsel %vm284, %v1649, %v1658
      %v1703 = vsel %vm287, %v1701, %v1661
      %v1705 = vsel %vm290, %v1703, %v1668
      %v1707 = vsel %vm293, %v1705, %v1677
      %v1709 = vsel %vm296, %v1707, %v1680
      %v1711 = vsel %vm299, %v1709, %v1687
      %v1713 = vsel %vm302, %v1711, %v1696
      %v1715 = vsel %vm305, %v1713, %v1699
      %v1716 = vsel %vm323, %v1715, 0
      %1718 = vmatprep.subr.bf16.mxu0 0
      %1719 = vmatpush1.bf16.msra.mxu0 %v318
      %1720 = vmatprep.subr.bf16.mxu0 0
      %1721 = vmatpush1.bf16.msra.mxu0 %v319
      %1722 = vmatprep.subr.bf16.mxu0 0
      %1723 = vmatpush1.bf16.msra.mxu0 %v328
      %1724 = vmatprep.subr.bf16.mxu0 0
      %1725 = vmatpush1.bf16.msra.mxu0 0
      %1726 = vmatprep.subr.bf16.mxu0 0
      %1727 = vmatpush1.bf16.msra.mxu0 0
      %1728 = vmatprep.subr.bf16.mxu0 0
      %1729 = vmatpush1.bf16.msra.mxu0 0
      %1730 = vmatprep.subr.bf16.mxu0 0
      %1731 = vmatpush1.bf16.msra.mxu0 0
      %1732 = vmatprep.subr.bf16.mxu0 0
      %1733 = vmatpush1.bf16.msra.mxu0 0
      %1734 = vmatprep.subr.bf16.mxu0 0
      %1735 = vmatpush1.bf16.msra.mxu0 0
      %1736 = vmatprep.subr.bf16.mxu0 0
      %1737 = vmatpush1.bf16.msra.mxu0 0
      %1738 = vmatprep.subr.bf16.mxu0 0
      %1739 = vmatpush1.bf16.msra.mxu0 0
      %1740 = vmatprep.subr.bf16.mxu0 0
      %1741 = vmatpush1.bf16.msra.mxu0 0
      %1742 = vmatprep.subr.bf16.mxu0 0
      %1743 = vmatpush1.bf16.msra.mxu0 0
      %1744 = vmatprep.subr.bf16.mxu0 0
      %1745 = vmatpush1.bf16.msra.mxu0 0
      %1746 = vmatprep.subr.bf16.mxu0 0
      %1747 = vmatpush1.bf16.msra.mxu0 0
      %1748 = vmatprep.subr.bf16.mxu0 0
      %1749 = vmatpush1.bf16.msra.mxu0 0
      %1750 = vmatprep.mubr.bf16.mxu0 0
      %1751 = vmatmul.mubr.bf16.gmra.mrb[0].mxu0 %v1716
      %v1752 = vpop.f32.mrb[0].mxu0
      %v1753 = vadd.f32 0.0, %v1752
      %v1754 = vpop.f32.mrb[0].mxu0
      %v1755 = vpop.f32.mrb[0].mxu0
      %v1756 = vadd.f32 0.0, %v1755
      %v1757 = vpop.f32.mrb[0].mxu0
      %1758 = vdwg.mxu0
      %v1759 = vpack.c.bf16 %v1756, %v1753
      %v1761 = vunpack.c.l.b16 %v1759
      %v1762 = vunpack.c.h.b16 %v1759
      %v1763 = vpack.c.b16 %v1761, %v1761
      %v1764 = vpack.c.b16 %v1762, %v1762
      %s1767 = scalar_lea.vmem %s208, 72
      %1768 = vst.msk [vmem:[%s1767] sm:$0xf] %vm379, %v1763
      %1769 = vst.msk [vmem:[%s1767 + $0x4] sm:$0x7] %vm381, %v1764
      %v1770 = vsel %vm287, %v1753, 0.0
      %v1771 = vsel %vm384, %v1756, 0.0
      %v1772 = vadd.f32 %v1770, %v1771
      %v1773 = vrot.slane %v1772, 4
      %v1774 = vadd.f32 %v1772, %v1773
      %v1775 = vrot.slane %v1774, 2
      %v1776 = vadd.f32 %v1774, %v1775
      %v1777 = vrot.slane %v1776, 1
      %v1778 = vadd.f32 %v1776, %v1777
      %v1779 = vadd.f32 %v1625, %v1778
      %v1780 = vmul.f32 %v1753, %v1753
      %v1781 = vmul.f32 %v1756, %v1756
      %v1782 = vsel %vm287, %v1780, 0.0
      %v1783 = vsel %vm384, %v1781, 0.0
      %v1784 = vadd.f32 %v1782, %v1783
      %v1785 = vrot.slane %v1784, 4
      %v1786 = vadd.f32 %v1784, %v1785
      %v1787 = vrot.slane %v1786, 2
      %v1788 = vadd.f32 %v1786, %v1787
      %v1789 = vrot.slane %v1788, 1
      %v1790 = vadd.f32 %v1788, %v1789
      %v1791 = vadd.f32 %v1637, %v1790
      %v1792 = vld [vmem:[%s1488] sm:$0xf]
      %v1793 = vld [vmem:[%s1488 + $0x4] sm:$0xf]
      %v1794 = vld [vmem:[%s1642] sm:$0xf]
      %v1795 = vld [vmem:[%s1642 + $0x4] sm:$0xf]
      %s1796 = scalar_lea.vmem %s203, 96
      %v1797 = vld [vmem:[%s1796] sm:$0xf]
      %v1798 = vld [vmem:[%s1796 + $0x4] sm:$0xf]
      %v1801 = vunpack.c.l.b16 %v1792
      %v1802 = vunpack.c.l.b16 %v1793
      %v1803 = vpack.c.b16 %v1802, %v1801
      %v1805 = vshrl.u32 %v1803, 16
      %v1807 = vshll.u32 %v1803, 16
      %v1809 = vrot.slane %v1807, 1
      %v1810 = vor.u32 %v1805, %v1809
      %1811 = vrot.lane.b32.xlu0 %v1810, 4
      %v1812 = vpop.permute.xlu0 %1811
      %v1813 = vrot.slane %v1803, 1
      %1814 = vrot.lane.b32.xlu0 %v1813, 8
      %v1815 = vpop.permute.xlu0 %1814
      %v1818 = vunpack.c.l.b16 %v1794
      %v1819 = vunpack.c.l.b16 %v1795
      %v1820 = vpack.c.b16 %v1819, %v1818
      %1821 = vrot.lane.b32.xlu0 %v1820, 12
      %v1822 = vpop.permute.xlu0 %1821
      %v1824 = vshrl.u32 %v1820, 16
      %v1826 = vshll.u32 %v1820, 16
      %v1828 = vrot.slane %v1826, 1
      %v1829 = vor.u32 %v1824, %v1828
      %1830 = vrot.lane.b32.xlu0 %v1829, 16
      %v1831 = vpop.permute.xlu0 %1830
      %v1832 = vrot.slane %v1820, 1
      %1833 = vrot.lane.b32.xlu0 %v1832, 20
      %v1834 = vpop.permute.xlu0 %1833
      %v1837 = vunpack.c.l.b16 %v1797
      %v1838 = vunpack.c.l.b16 %v1798
      %v1839 = vpack.c.b16 %v1838, %v1837
      %1840 = vrot.lane.b32.xlu0 %v1839, 24
      %v1841 = vpop.permute.xlu0 %1840
      %v1843 = vshrl.u32 %v1839, 16
      %v1845 = vshll.u32 %v1839, 16
      %v1847 = vrot.slane %v1845, 1
      %v1848 = vor.u32 %v1843, %v1847
      %1849 = vrot.lane.b32.xlu0 %v1848, 28
      %v1850 = vpop.permute.xlu0 %1849
      %v1851 = vrot.slane %v1839, 1
      %1852 = vrot.lane.b32.xlu0 %v1851, 32
      %v1853 = vpop.permute.xlu0 %1852
      %v1855 = vsel %vm284, %v1803, %v1812
      %v1857 = vsel %vm287, %v1855, %v1815
      %v1859 = vsel %vm290, %v1857, %v1822
      %v1861 = vsel %vm293, %v1859, %v1831
      %v1863 = vsel %vm296, %v1861, %v1834
      %v1865 = vsel %vm299, %v1863, %v1841
      %v1867 = vsel %vm302, %v1865, %v1850
      %v1869 = vsel %vm305, %v1867, %v1853
      %v1870 = vsel %vm323, %v1869, 0
      %1872 = vmatprep.subr.bf16.mxu0 0
      %1873 = vmatpush1.bf16.msra.mxu0 %v318
      %1874 = vmatprep.subr.bf16.mxu0 0
      %1875 = vmatpush1.bf16.msra.mxu0 %v319
      %1876 = vmatprep.subr.bf16.mxu0 0
      %1877 = vmatpush1.bf16.msra.mxu0 %v328
      %1878 = vmatprep.subr.bf16.mxu0 0
      %1879 = vmatpush1.bf16.msra.mxu0 0
      %1880 = vmatprep.subr.bf16.mxu0 0
      %1881 = vmatpush1.bf16.msra.mxu0 0
      %1882 = vmatprep.subr.bf16.mxu0 0
      %1883 = vmatpush1.bf16.msra.mxu0 0
      %1884 = vmatprep.subr.bf16.mxu0 0
      %1885 = vmatpush1.bf16.msra.mxu0 0
      %1886 = vmatprep.subr.bf16.mxu0 0
      %1887 = vmatpush1.bf16.msra.mxu0 0
      %1888 = vmatprep.subr.bf16.mxu0 0
      %1889 = vmatpush1.bf16.msra.mxu0 0
      %1890 = vmatprep.subr.bf16.mxu0 0
      %1891 = vmatpush1.bf16.msra.mxu0 0
      %1892 = vmatprep.subr.bf16.mxu0 0
      %1893 = vmatpush1.bf16.msra.mxu0 0
      %1894 = vmatprep.subr.bf16.mxu0 0
      %1895 = vmatpush1.bf16.msra.mxu0 0
      %1896 = vmatprep.subr.bf16.mxu0 0
      %1897 = vmatpush1.bf16.msra.mxu0 0
      %1898 = vmatprep.subr.bf16.mxu0 0
      %1899 = vmatpush1.bf16.msra.mxu0 0
      %1900 = vmatprep.subr.bf16.mxu0 0
      %1901 = vmatpush1.bf16.msra.mxu0 0
      %1902 = vmatprep.subr.bf16.mxu0 0
      %1903 = vmatpush1.bf16.msra.mxu0 0
      %1904 = vmatprep.mubr.bf16.mxu0 0
      %1905 = vmatmul.mubr.bf16.gmra.mrb[0].mxu0 %v1870
      %v1906 = vpop.f32.mrb[0].mxu0
      %v1907 = vadd.f32 0.0, %v1906
      %v1908 = vpop.f32.mrb[0].mxu0
      %v1909 = vpop.f32.mrb[0].mxu0
      %v1910 = vadd.f32 0.0, %v1909
      %v1911 = vpop.f32.mrb[0].mxu0
      %1912 = vdwg.mxu0
      %v1913 = vpack.c.bf16 %v1910, %v1907
      %v1915 = vunpack.c.l.b16 %v1913
      %v1916 = vunpack.c.h.b16 %v1913
      %v1917 = vpack.c.b16 %v1915, %v1915
      %v1918 = vpack.c.b16 %v1916, %v1916
      %s1921 = scalar_lea.vmem %s208, 80
      %1922 = vst.msk [vmem:[%s1921] sm:$0xf] %vm379, %v1917
      %1923 = vst.msk [vmem:[%s1921 + $0x4] sm:$0x7] %vm381, %v1918
      %v1924 = vsel %vm287, %v1907, 0.0
      %v1925 = vsel %vm384, %v1910, 0.0
      %v1926 = vadd.f32 %v1924, %v1925
      %v1927 = vrot.slane %v1926, 4
      %v1928 = vadd.f32 %v1926, %v1927
      %v1929 = vrot.slane %v1928, 2
      %v1930 = vadd.f32 %v1928, %v1929
      %v1931 = vrot.slane %v1930, 1
      %v1932 = vadd.f32 %v1930, %v1931
      %v1933 = vadd.f32 %v1779, %v1932
      %v1934 = vmul.f32 %v1907, %v1907
      %v1935 = vmul.f32 %v1910, %v1910
      %v1936 = vsel %vm287, %v1934, 0.0
      %v1937 = vsel %vm384, %v1935, 0.0
      %v1938 = vadd.f32 %v1936, %v1937
      %v1939 = vrot.slane %v1938, 4
      %v1940 = vadd.f32 %v1938, %v1939
      %v1941 = vrot.slane %v1940, 2
      %v1942 = vadd.f32 %v1940, %v1941
      %v1943 = vrot.slane %v1942, 1
      %v1944 = vadd.f32 %v1942, %v1943
      %v1945 = vadd.f32 %v1791, %v1944
      %v1946 = vld [vmem:[%s1642] sm:$0xf]
      %v1947 = vld [vmem:[%s1642 + $0x4] sm:$0xf]
      %v1948 = vld [vmem:[%s1796] sm:$0xf]
      %v1949 = vld [vmem:[%s1796 + $0x4] sm:$0xf]
      %s1950 = scalar_lea.vmem %s203, 104
      %v1951 = vld [vmem:[%s1950] sm:$0xf]
      %v1952 = vld [vmem:[%s1950 + $0x4] sm:$0xf]
      %v1955 = vunpack.c.l.b16 %v1946
      %v1956 = vunpack.c.l.b16 %v1947
      %v1957 = vpack.c.b16 %v1956, %v1955
      %v1959 = vshrl.u32 %v1957, 16
      %v1961 = vshll.u32 %v1957, 16
      %v1963 = vrot.slane %v1961, 1
      %v1964 = vor.u32 %v1959, %v1963
      %1965 = vrot.lane.b32.xlu0 %v1964, 4
      %v1966 = vpop.permute.xlu0 %1965
      %v1967 = vrot.slane %v1957, 1
      %1968 = vrot.lane.b32.xlu0 %v1967, 8
      %v1969 = vpop.permute.xlu0 %1968
      %v1972 = vunpack.c.l.b16 %v1948
      %v1973 = vunpack.c.l.b16 %v1949
      %v1974 = vpack.c.b16 %v1973, %v1972
      %1975 = vrot.lane.b32.xlu0 %v1974, 12
      %v1976 = vpop.permute.xlu0 %1975
      %v1978 = vshrl.u32 %v1974, 16
      %v1980 = vshll.u32 %v1974, 16
      %v1982 = vrot.slane %v1980, 1
      %v1983 = vor.u32 %v1978, %v1982
      %1984 = vrot.lane.b32.xlu0 %v1983, 16
      %v1985 = vpop.permute.xlu0 %1984
      %v1986 = vrot.slane %v1974, 1
      %1987 = vrot.lane.b32.xlu0 %v1986, 20
      %v1988 = vpop.permute.xlu0 %1987
      %v1991 = vunpack.c.l.b16 %v1951
      %v1992 = vunpack.c.l.b16 %v1952
      %v1993 = vpack.c.b16 %v1992, %v1991
      %1994 = vrot.lane.b32.xlu0 %v1993, 24
      %v1995 = vpop.permute.xlu0 %1994
      %v1997 = vshrl.u32 %v1993, 16
      %v1999 = vshll.u32 %v1993, 16
      %v2001 = vrot.slane %v1999, 1
      %v2002 = vor.u32 %v1997, %v2001
      %2003 = vrot.lane.b32.xlu0 %v2002, 28
      %v2004 = vpop.permute.xlu0 %2003
      %v2005 = vrot.slane %v1993, 1
      %2006 = vrot.lane.b32.xlu0 %v2005, 32
      %v2007 = vpop.permute.xlu0 %2006
      %v2009 = vsel %vm284, %v1957, %v1966
      %v2011 = vsel %vm287, %v2009, %v1969
      %v2013 = vsel %vm290, %v2011, %v1976
      %v2015 = vsel %vm293, %v2013, %v1985
      %v2017 = vsel %vm296, %v2015, %v1988
      %v2019 = vsel %vm299, %v2017, %v1995
      %v2021 = vsel %vm302, %v2019, %v2004
      %v2023 = vsel %vm305, %v2021, %v2007
      %v2024 = vsel %vm323, %v2023, 0
      %2026 = vmatprep.subr.bf16.mxu0 0
      %2027 = vmatpush1.bf16.msra.mxu0 %v318
      %2028 = vmatprep.subr.bf16.mxu0 0
      %2029 = vmatpush1.bf16.msra.mxu0 %v319
      %2030 = vmatprep.subr.bf16.mxu0 0
      %2031 = vmatpush1.bf16.msra.mxu0 %v328
      %2032 = vmatprep.subr.bf16.mxu0 0
      %2033 = vmatpush1.bf16.msra.mxu0 0
      %2034 = vmatprep.subr.bf16.mxu0 0
      %2035 = vmatpush1.bf16.msra.mxu0 0
      %2036 = vmatprep.subr.bf16.mxu0 0
      %2037 = vmatpush1.bf16.msra.mxu0 0
      %2038 = vmatprep.subr.bf16.mxu0 0
      %2039 = vmatpush1.bf16.msra.mxu0 0
      %2040 = vmatprep.subr.bf16.mxu0 0
      %2041 = vmatpush1.bf16.msra.mxu0 0
      %2042 = vmatprep.subr.bf16.mxu0 0
      %2043 = vmatpush1.bf16.msra.mxu0 0
      %2044 = vmatprep.subr.bf16.mxu0 0
      %2045 = vmatpush1.bf16.msra.mxu0 0
      %2046 = vmatprep.subr.bf16.mxu0 0
      %2047 = vmatpush1.bf16.msra.mxu0 0
      %2048 = vmatprep.subr.bf16.mxu0 0
      %2049 = vmatpush1.bf16.msra.mxu0 0
      %2050 = vmatprep.subr.bf16.mxu0 0
      %2051 = vmatpush1.bf16.msra.mxu0 0
      %2052 = vmatprep.subr.bf16.mxu0 0
      %2053 = vmatpush1.bf16.msra.mxu0 0
      %2054 = vmatprep.subr.bf16.mxu0 0
      %2055 = vmatpush1.bf16.msra.mxu0 0
      %2056 = vmatprep.subr.bf16.mxu0 0
      %2057 = vmatpush1.bf16.msra.mxu0 0
      %2058 = vmatprep.mubr.bf16.mxu0 0
      %2059 = vmatmul.mubr.bf16.gmra.mrb[0].mxu0 %v2024
      %v2060 = vpop.f32.mrb[0].mxu0
      %v2061 = vadd.f32 0.0, %v2060
      %v2062 = vpop.f32.mrb[0].mxu0
      %v2063 = vpop.f32.mrb[0].mxu0
      %v2064 = vadd.f32 0.0, %v2063
      %v2065 = vpop.f32.mrb[0].mxu0
      %2066 = vdwg.mxu0
      %v2067 = vpack.c.bf16 %v2064, %v2061
      %v2069 = vunpack.c.l.b16 %v2067
      %v2070 = vunpack.c.h.b16 %v2067
      %v2071 = vpack.c.b16 %v2069, %v2069
      %v2072 = vpack.c.b16 %v2070, %v2070
      %s2075 = scalar_lea.vmem %s208, 88
      %2076 = vst.msk [vmem:[%s2075] sm:$0xf] %vm379, %v2071
      %2077 = vst.msk [vmem:[%s2075 + $0x4] sm:$0x7] %vm381, %v2072
      %v2078 = vsel %vm287, %v2061, 0.0
      %v2079 = vsel %vm384, %v2064, 0.0
      %v2080 = vadd.f32 %v2078, %v2079
      %v2081 = vrot.slane %v2080, 4
      %v2082 = vadd.f32 %v2080, %v2081
      %v2083 = vrot.slane %v2082, 2
      %v2084 = vadd.f32 %v2082, %v2083
      %v2085 = vrot.slane %v2084, 1
      %v2086 = vadd.f32 %v2084, %v2085
      %v2087 = vadd.f32 %v1933, %v2086
      %v2088 = vmul.f32 %v2061, %v2061
      %v2089 = vmul.f32 %v2064, %v2064
      %v2090 = vsel %vm287, %v2088, 0.0
      %v2091 = vsel %vm384, %v2089, 0.0
      %v2092 = vadd.f32 %v2090, %v2091
      %v2093 = vrot.slane %v2092, 4
      %v2094 = vadd.f32 %v2092, %v2093
      %v2095 = vrot.slane %v2094, 2
      %v2096 = vadd.f32 %v2094, %v2095
      %v2097 = vrot.slane %v2096, 1
      %v2098 = vadd.f32 %v2096, %v2097
      %v2099 = vadd.f32 %v1945, %v2098
      %v2100 = vld [vmem:[%s1796] sm:$0xf]
      %v2101 = vld [vmem:[%s1796 + $0x4] sm:$0xf]
      %v2102 = vld [vmem:[%s1950] sm:$0xf]
      %v2103 = vld [vmem:[%s1950 + $0x4] sm:$0xf]
      %s2104 = scalar_lea.vmem %s203, 112
      %v2105 = vld [vmem:[%s2104] sm:$0xf]
      %v2106 = vld [vmem:[%s2104 + $0x4] sm:$0xf]
      %v2109 = vunpack.c.l.b16 %v2100
      %v2110 = vunpack.c.l.b16 %v2101
      %v2111 = vpack.c.b16 %v2110, %v2109
      %v2113 = vshrl.u32 %v2111, 16
      %v2115 = vshll.u32 %v2111, 16
      %v2117 = vrot.slane %v2115, 1
      %v2118 = vor.u32 %v2113, %v2117
      %2119 = vrot.lane.b32.xlu0 %v2118, 4
      %v2120 = vpop.permute.xlu0 %2119
      %v2121 = vrot.slane %v2111, 1
      %2122 = vrot.lane.b32.xlu0 %v2121, 8
      %v2123 = vpop.permute.xlu0 %2122
      %v2126 = vunpack.c.l.b16 %v2102
      %v2127 = vunpack.c.l.b16 %v2103
      %v2128 = vpack.c.b16 %v2127, %v2126
      %2129 = vrot.lane.b32.xlu0 %v2128, 12
      %v2130 = vpop.permute.xlu0 %2129
      %v2132 = vshrl.u32 %v2128, 16
      %v2134 = vshll.u32 %v2128, 16
      %v2136 = vrot.slane %v2134, 1
      %v2137 = vor.u32 %v2132, %v2136
      %2138 = vrot.lane.b32.xlu0 %v2137, 16
      %v2139 = vpop.permute.xlu0 %2138
      %v2140 = vrot.slane %v2128, 1
      %2141 = vrot.lane.b32.xlu0 %v2140, 20
      %v2142 = vpop.permute.xlu0 %2141
      %v2145 = vunpack.c.l.b16 %v2105
      %v2146 = vunpack.c.l.b16 %v2106
      %v2147 = vpack.c.b16 %v2146, %v2145
      %2148 = vrot.lane.b32.xlu0 %v2147, 24
      %v2149 = vpop.permute.xlu0 %2148
      %v2151 = vshrl.u32 %v2147, 16
      %v2153 = vshll.u32 %v2147, 16
      %v2155 = vrot.slane %v2153, 1
      %v2156 = vor.u32 %v2151, %v2155
      %2157 = vrot.lane.b32.xlu0 %v2156, 28
      %v2158 = vpop.permute.xlu0 %2157
      %v2159 = vrot.slane %v2147, 1
      %2160 = vrot.lane.b32.xlu0 %v2159, 32
      %v2161 = vpop.permute.xlu0 %2160
      %v2163 = vsel %vm284, %v2111, %v2120
      %v2165 = vsel %vm287, %v2163, %v2123
      %v2167 = vsel %vm290, %v2165, %v2130
      %v2169 = vsel %vm293, %v2167, %v2139
      %v2171 = vsel %vm296, %v2169, %v2142
      %v2173 = vsel %vm299, %v2171, %v2149
      %v2175 = vsel %vm302, %v2173, %v2158
      %v2177 = vsel %vm305, %v2175, %v2161
      %v2178 = vsel %vm323, %v2177, 0
      %2180 = vmatprep.subr.bf16.mxu0 0
      %2181 = vmatpush1.bf16.msra.mxu0 %v318
      %2182 = vmatprep.subr.bf16.mxu0 0
      %2183 = vmatpush1.bf16.msra.mxu0 %v319
      %2184 = vmatprep.subr.bf16.mxu0 0
      %2185 = vmatpush1.bf16.msra.mxu0 %v328
      %2186 = vmatprep.subr.bf16.mxu0 0
      %2187 = vmatpush1.bf16.msra.mxu0 0
      %2188 = vmatprep.subr.bf16.mxu0 0
      %2189 = vmatpush1.bf16.msra.mxu0 0
      %2190 = vmatprep.subr.bf16.mxu0 0
      %2191 = vmatpush1.bf16.msra.mxu0 0
      %2192 = vmatprep.subr.bf16.mxu0 0
      %2193 = vmatpush1.bf16.msra.mxu0 0
      %2194 = vmatprep.subr.bf16.mxu0 0
      %2195 = vmatpush1.bf16.msra.mxu0 0
      %2196 = vmatprep.subr.bf16.mxu0 0
      %2197 = vmatpush1.bf16.msra.mxu0 0
      %2198 = vmatprep.subr.bf16.mxu0 0
      %2199 = vmatpush1.bf16.msra.mxu0 0
      %2200 = vmatprep.subr.bf16.mxu0 0
      %2201 = vmatpush1.bf16.msra.mxu0 0
      %2202 = vmatprep.subr.bf16.mxu0 0
      %2203 = vmatpush1.bf16.msra.mxu0 0
      %2204 = vmatprep.subr.bf16.mxu0 0
      %2205 = vmatpush1.bf16.msra.mxu0 0
      %2206 = vmatprep.subr.bf16.mxu0 0
      %2207 = vmatpush1.bf16.msra.mxu0 0
      %2208 = vmatprep.subr.bf16.mxu0 0
      %2209 = vmatpush1.bf16.msra.mxu0 0
      %2210 = vmatprep.subr.bf16.mxu0 0
      %2211 = vmatpush1.bf16.msra.mxu0 0
      %2212 = vmatprep.mubr.bf16.mxu0 0
      %2213 = vmatmul.mubr.bf16.gmra.mrb[0].mxu0 %v2178
      %v2214 = vpop.f32.mrb[0].mxu0
      %v2215 = vadd.f32 0.0, %v2214
      %v2216 = vpop.f32.mrb[0].mxu0
      %v2217 = vpop.f32.mrb[0].mxu0
      %v2218 = vadd.f32 0.0, %v2217
      %v2219 = vpop.f32.mrb[0].mxu0
      %2220 = vdwg.mxu0
      %v2221 = vpack.c.bf16 %v2218, %v2215
      %v2223 = vunpack.c.l.b16 %v2221
      %v2224 = vunpack.c.h.b16 %v2221
      %v2225 = vpack.c.b16 %v2223, %v2223
      %v2226 = vpack.c.b16 %v2224, %v2224
      %s2229 = scalar_lea.vmem %s208, 96
      %2230 = vst.msk [vmem:[%s2229] sm:$0xf] %vm379, %v2225
      %2231 = vst.msk [vmem:[%s2229 + $0x4] sm:$0x7] %vm381, %v2226
      %v2232 = vsel %vm287, %v2215, 0.0
      %v2233 = vsel %vm384, %v2218, 0.0
      %v2234 = vadd.f32 %v2232, %v2233
      %v2235 = vrot.slane %v2234, 4
      %v2236 = vadd.f32 %v2234, %v2235
      %v2237 = vrot.slane %v2236, 2
      %v2238 = vadd.f32 %v2236, %v2237
      %v2239 = vrot.slane %v2238, 1
      %v2240 = vadd.f32 %v2238, %v2239
      %v2241 = vadd.f32 %v2087, %v2240
      %v2242 = vmul.f32 %v2215, %v2215
      %v2243 = vmul.f32 %v2218, %v2218
      %v2244 = vsel %vm287, %v2242, 0.0
      %v2245 = vsel %vm384, %v2243, 0.0
      %v2246 = vadd.f32 %v2244, %v2245
      %v2247 = vrot.slane %v2246, 4
      %v2248 = vadd.f32 %v2246, %v2247
      %v2249 = vrot.slane %v2248, 2
      %v2250 = vadd.f32 %v2248, %v2249
      %v2251 = vrot.slane %v2250, 1
      %v2252 = vadd.f32 %v2250, %v2251
      %v2253 = vadd.f32 %v2099, %v2252
      %v2254 = vld [vmem:[%s1950] sm:$0xf]
      %v2255 = vld [vmem:[%s1950 + $0x4] sm:$0xf]
      %v2256 = vld [vmem:[%s2104] sm:$0xf]
      %v2257 = vld [vmem:[%s2104 + $0x4] sm:$0xf]
      %s2258 = scalar_lea.vmem %s203, 120
      %v2259 = vld [vmem:[%s2258] sm:$0xf]
      %v2260 = vld [vmem:[%s2258 + $0x4] sm:$0xf]
      %v2263 = vunpack.c.l.b16 %v2254
      %v2264 = vunpack.c.l.b16 %v2255
      %v2265 = vpack.c.b16 %v2264, %v2263
      %v2267 = vshrl.u32 %v2265, 16
      %v2269 = vshll.u32 %v2265, 16
      %v2271 = vrot.slane %v2269, 1
      %v2272 = vor.u32 %v2267, %v2271
      %2273 = vrot.lane.b32.xlu0 %v2272, 4
      %v2274 = vpop.permute.xlu0 %2273
      %v2275 = vrot.slane %v2265, 1
      %2276 = vrot.lane.b32.xlu0 %v2275, 8
      %v2277 = vpop.permute.xlu0 %2276
      %v2280 = vunpack.c.l.b16 %v2256
      %v2281 = vunpack.c.l.b16 %v2257
      %v2282 = vpack.c.b16 %v2281, %v2280
      %2283 = vrot.lane.b32.xlu0 %v2282, 12
      %v2284 = vpop.permute.xlu0 %2283
      %v2286 = vshrl.u32 %v2282, 16
      %v2288 = vshll.u32 %v2282, 16
      %v2290 = vrot.slane %v2288, 1
      %v2291 = vor.u32 %v2286, %v2290
      %2292 = vrot.lane.b32.xlu0 %v2291, 16
      %v2293 = vpop.permute.xlu0 %2292
      %v2294 = vrot.slane %v2282, 1
      %2295 = vrot.lane.b32.xlu0 %v2294, 20
      %v2296 = vpop.permute.xlu0 %2295
      %v2299 = vunpack.c.l.b16 %v2259
      %v2300 = vunpack.c.l.b16 %v2260
      %v2301 = vpack.c.b16 %v2300, %v2299
      %2302 = vrot.lane.b32.xlu0 %v2301, 24
      %v2303 = vpop.permute.xlu0 %2302
      %v2305 = vshrl.u32 %v2301, 16
      %v2307 = vshll.u32 %v2301, 16
      %v2309 = vrot.slane %v2307, 1
      %v2310 = vor.u32 %v2305, %v2309
      %2311 = vrot.lane.b32.xlu0 %v2310, 28
      %v2312 = vpop.permute.xlu0 %2311
      %v2313 = vrot.slane %v2301, 1
      %2314 = vrot.lane.b32.xlu0 %v2313, 32
      %v2315 = vpop.permute.xlu0 %2314
      %v2317 = vsel %vm284, %v2265, %v2274
      %v2319 = vsel %vm287, %v2317, %v2277
      %v2321 = vsel %vm290, %v2319, %v2284
      %v2323 = vsel %vm293, %v2321, %v2293
      %v2325 = vsel %vm296, %v2323, %v2296
      %v2327 = vsel %vm299, %v2325, %v2303
      %v2329 = vsel %vm302, %v2327, %v2312
      %v2331 = vsel %vm305, %v2329, %v2315
      %v2332 = vsel %vm323, %v2331, 0
      %2334 = vmatprep.subr.bf16.mxu0 0
      %2335 = vmatpush1.bf16.msra.mxu0 %v318
      %2336 = vmatprep.subr.bf16.mxu0 0
      %2337 = vmatpush1.bf16.msra.mxu0 %v319
      %2338 = vmatprep.subr.bf16.mxu0 0
      %2339 = vmatpush1.bf16.msra.mxu0 %v328
      %2340 = vmatprep.subr.bf16.mxu0 0
      %2341 = vmatpush1.bf16.msra.mxu0 0
      %2342 = vmatprep.subr.bf16.mxu0 0
      %2343 = vmatpush1.bf16.msra.mxu0 0
      %2344 = vmatprep.subr.bf16.mxu0 0
      %2345 = vmatpush1.bf16.msra.mxu0 0
      %2346 = vmatprep.subr.bf16.mxu0 0
      %2347 = vmatpush1.bf16.msra.mxu0 0
      %2348 = vmatprep.subr.bf16.mxu0 0
      %2349 = vmatpush1.bf16.msra.mxu0 0
      %2350 = vmatprep.subr.bf16.mxu0 0
      %2351 = vmatpush1.bf16.msra.mxu0 0
      %2352 = vmatprep.subr.bf16.mxu0 0
      %2353 = vmatpush1.bf16.msra.mxu0 0
      %2354 = vmatprep.subr.bf16.mxu0 0
      %2355 = vmatpush1.bf16.msra.mxu0 0
      %2356 = vmatprep.subr.bf16.mxu0 0
      %2357 = vmatpush1.bf16.msra.mxu0 0
      %2358 = vmatprep.subr.bf16.mxu0 0
      %2359 = vmatpush1.bf16.msra.mxu0 0
      %2360 = vmatprep.subr.bf16.mxu0 0
      %2361 = vmatpush1.bf16.msra.mxu0 0
      %2362 = vmatprep.subr.bf16.mxu0 0
      %2363 = vmatpush1.bf16.msra.mxu0 0
      %2364 = vmatprep.subr.bf16.mxu0 0
      %2365 = vmatpush1.bf16.msra.mxu0 0
      %2366 = vmatprep.mubr.bf16.mxu0 0
      %2367 = vmatmul.mubr.bf16.gmra.mrb[0].mxu0 %v2332
      %v2368 = vpop.f32.mrb[0].mxu0
      %v2369 = vadd.f32 0.0, %v2368
      %v2370 = vpop.f32.mrb[0].mxu0
      %v2371 = vpop.f32.mrb[0].mxu0
      %v2372 = vadd.f32 0.0, %v2371
      %v2373 = vpop.f32.mrb[0].mxu0
      %2374 = vdwg.mxu0
      %v2375 = vpack.c.bf16 %v2372, %v2369
      %v2377 = vunpack.c.l.b16 %v2375
      %v2378 = vunpack.c.h.b16 %v2375
      %v2379 = vpack.c.b16 %v2377, %v2377
      %v2380 = vpack.c.b16 %v2378, %v2378
      %s2383 = scalar_lea.vmem %s208, 104
      %2384 = vst.msk [vmem:[%s2383] sm:$0xf] %vm379, %v2379
      %2385 = vst.msk [vmem:[%s2383 + $0x4] sm:$0x7] %vm381, %v2380
      %v2386 = vsel %vm287, %v2369, 0.0
      %v2387 = vsel %vm384, %v2372, 0.0
      %v2388 = vadd.f32 %v2386, %v2387
      %v2389 = vrot.slane %v2388, 4
      %v2390 = vadd.f32 %v2388, %v2389
      %v2391 = vrot.slane %v2390, 2
      %v2392 = vadd.f32 %v2390, %v2391
      %v2393 = vrot.slane %v2392, 1
      %v2394 = vadd.f32 %v2392, %v2393
      %v2395 = vadd.f32 %v2241, %v2394
      %v2396 = vmul.f32 %v2369, %v2369
      %v2397 = vmul.f32 %v2372, %v2372
      %v2398 = vsel %vm287, %v2396, 0.0
      %v2399 = vsel %vm384, %v2397, 0.0
      %v2400 = vadd.f32 %v2398, %v2399
      %v2401 = vrot.slane %v2400, 4
      %v2402 = vadd.f32 %v2400, %v2401
      %v2403 = vrot.slane %v2402, 2
      %v2404 = vadd.f32 %v2402, %v2403
      %v2405 = vrot.slane %v2404, 1
      %v2406 = vadd.f32 %v2404, %v2405
      %v2407 = vadd.f32 %v2253, %v2406
      %vm2408 = vcmask 57344
      %2409 = vst.msk [vmem:[%s211] sm:$0x1] %vm2408, %v2395
      %2410 = vst.msk [vmem:[%s214] sm:$0x1] %vm2408, %v2407
      %p2411 = scmp.lt.s32.totalorder %s16, 1
      %s2412 = scalar_select %p2411, %s16, 1
      %s2413 = smul.addr %s2412, 28
      %s2414 = smul.addr %s2413, 4
      %s2415 = scalar_lea.vmem %s2, %s2414
      %p2416 = scmp.lt.s32.totalorder %s16, 1
      %s2417 = scalar_select %p2416, %s16, 1
      %s2418 = scalar_lea.vmem %s3, %s2417
      %p2419 = scmp.lt.s32.totalorder %s16, 1
      %s2420 = scalar_select %p2419, %s16, 1
      %s2421 = scalar_lea.vmem %s4, %s2420
      // Predicated region
      $region29: #{conv_bn_relu.2} parent=27 // pred_check
        %p2422 = pneg %p81
      $region30: #{conv_bn_relu.2} parent=27 // pred_check_branch
        %2424 = sbr.rel (%p2422) target = $region32
      $region31: #{conv_bn_relu.2} parent=27 // pred_region
        _
      $region32: #{conv_bn_relu.2} parent=27 // pred_fallthru
        _
      // Predicated region
      $region33: #{conv_bn_relu.2} parent=27 // pred_check
        %p2425 = pneg %p107
      $region34: #{conv_bn_relu.2} parent=27 // pred_check_branch
        %2427 = sbr.rel (%p2425) target = $region36
      $region35: #{conv_bn_relu.2} parent=27 // pred_region
        _
      $region36: #{conv_bn_relu.2} parent=27 // pred_fallthru
        _
      // Predicated region
      $region37: #{conv_bn_relu.2} parent=27 // pred_check
        %p2428 = pneg %p133
      $region38: #{conv_bn_relu.2} parent=27 // pred_check_branch
        %2430 = sbr.rel (%p2428) target = $region40
      $region39: #{conv_bn_relu.2} parent=27 // pred_region
        _
      $region40: #{conv_bn_relu.2} parent=27 // pred_fallthru
        _
    $region28: #{conv_bn_relu.2} parent=5 // pred_fallthru
      _
    %p2431 = scmp.le.s32.totalorder 2, %s11
    // Predicated region
    $region41: #{conv_bn_relu.2} parent=5 // pred_check
      %p2432 = pneg %p2431
    $region42: #{conv_bn_relu.2} parent=5 // pred_check_branch
      %2434 = sbr.rel (%p2432) target = $region44
    $region43: #{conv_bn_relu.2} parent=5 // pred_region
      %s2435 = ssub.s32 %s11, 2
      // Predicated region
      $region45: #{conv_bn_relu.2} parent=43 // pred_check
        %p2436 = pneg %p87
      $region46: #{conv_bn_relu.2} parent=43 // pred_check_branch
        %2438 = sbr.rel (%p2436) target = $region48
      $region47: #{conv_bn_relu.2} parent=43 // pred_region
        %p2439 = scmp.lt.s32.totalorder %s17, 1
        %s2440 = scalar_select %p2439, %s17, 1
        %s2441 = smul.addr %s2440, 28
        %s2442 = smul.addr %s2441, 4
        %s2443 = scalar_lea.vmem %s2, %s2442
      $region48: #{conv_bn_relu.2} parent=43 // pred_fallthru
        _
      // Predicated region
      $region49: #{conv_bn_relu.2} parent=43 // pred_check
        %p2444 = pneg %p113
      $region50: #{conv_bn_relu.2} parent=43 // pred_check_branch
        %2446 = sbr.rel (%p2444) target = $region52
      $region51: #{conv_bn_relu.2} parent=43 // pred_region
        %p2447 = scmp.lt.s32.totalorder %s17, 1
        %s2448 = scalar_select %p2447, %s17, 1
        %s2449 = scalar_lea.vmem %s3, %s2448
      $region52: #{conv_bn_relu.2} parent=43 // pred_fallthru
        _
      // Predicated region
      $region53: #{conv_bn_relu.2} parent=43 // pred_check
        %p2450 = pneg %p139
      $region54: #{conv_bn_relu.2} parent=43 // pred_check_branch
        %2452 = sbr.rel (%p2450) target = $region56
      $region55: #{conv_bn_relu.2} parent=43 // pred_region
        %p2453 = scmp.lt.s32.totalorder %s17, 1
        %s2454 = scalar_select %p2453, %s17, 1
        %s2455 = scalar_lea.vmem %s4, %s2454
      $region56: #{conv_bn_relu.2} parent=43 // pred_fallthru
        _
    $region44: #{conv_bn_relu.2} parent=5 // pred_fallthru
      _
  $region6: #{conv_bn_relu.2} parent=0 // loop_footer
    %s15 = sadd.s32 1, %s11
  $region7: #{conv_bn_relu.2} parent=0 // loop_footer_branch
    %10 = sbr.rel target = $region3
  $region8: #{conv_bn_relu.2} parent=0 // loop_exit
    _

</llo_original>
